<compile_context>
chip_gen: v5e
topology: v5e:2x2
jax: 0.10.0
libtpu: 0.0.40
codegen_flags: <defaults>
</compile_context>

<pallas_src>
import jax
import jax.numpy as jnp
from jax.experimental import pallas as pl
from jax.experimental.pallas import tpu as pltpu


# ----------------------------------------------------------------------------
# Kernels
# ----------------------------------------------------------------------------
def _layer1_kernel(dd_ref, ds_ref, a_ref, z1_ref, b1_ref, w2_ref, z2_ref, acc_ref):
    """Layer 1: acc += A_tile @ Z1_tile (Z1 = D_src^-1/2 X W1, precomputed).
    Finalize applies D_dst^-1/2 + bias + relu, then fuses the layer-2 pre-scale
    (D_src^-1/2) and W2 projection so H1 never hits HBM."""
    k = pl.program_id(1)

    @pl.when(k == 0)
    def _init():
        acc_ref[...] = jnp.zeros_like(acc_ref)

    # int8 A in HBM -> one cheap VPU convert to bf16, straight into the MXU.
    acc_ref[...] += jnp.dot(a_ref[...].astype(jnp.bfloat16), z1_ref[...],
                            preferred_element_type=jnp.float32)

    @pl.when(k == pl.num_programs(1) - 1)
    def _finalize():
        h1 = jnp.maximum(dd_ref[...] * acc_ref[...] + b1_ref[...], 0.0)  # (tm, hid)
        z2 = jnp.dot((ds_ref[...] * h1).astype(jnp.bfloat16), w2_ref[...],
                     preferred_element_type=jnp.float32)                 # (tm, out)
        z2_ref[...] = z2.astype(z2_ref.dtype)


def _layer2_kernel(dd_ref, a_ref, z2_ref, b2_ref, out_ref, acc_ref):
    """Layer 2: acc += A_tile @ Z2_tile; finalize applies D_dst^-1/2 and bias."""
    k = pl.program_id(1)

    @pl.when(k == 0)
    def _init():
        acc_ref[...] = jnp.zeros_like(acc_ref)

    acc_ref[...] += jnp.dot(a_ref[...].astype(jnp.bfloat16), z2_ref[...],
                            preferred_element_type=jnp.float32)

    @pl.when(k == pl.num_programs(1) - 1)
    def _finalize():
        out_ref[...] = (dd_ref[...] * acc_ref[...] + b2_ref[...]).astype(out_ref.dtype)


# ----------------------------------------------------------------------------
# pallas_call wrappers (one per layer)
# ----------------------------------------------------------------------------
def _run_layer1(dd, ds, a_i8, z1, b1, w2, *, tm, tk):
    n_pad = a_i8.shape[0]
    hid = z1.shape[1]
    out = w2.shape[1]
    grid = (n_pad // tm, n_pad // tk)
    row_tiles = grid[0]

    flops = 2 * n_pad * n_pad * hid + 2 * n_pad * hid * out
    bytes_accessed = int(
        a_i8.size                          # int8 A, streamed once
        + row_tiles * n_pad * hid * 2      # Z1 re-streamed once per row tile (bf16)
        + row_tiles * hid * out * 2        # resident W2 (counted per row tile)
        + n_pad * out * 2                  # Z2 written (bf16)
        + 2 * n_pad * 4 + hid * 4)         # dd, ds, b1

    return pl.pallas_call(
        _layer1_kernel,
        out_shape=jax.ShapeDtypeStruct((n_pad, out), jnp.bfloat16),
        grid_spec=pltpu.PrefetchScalarGridSpec(
            num_scalar_prefetch=0,
            grid=grid,
            in_specs=[
                pl.BlockSpec((tm, 1), lambda i, k: (i, 0)),       # d_dst column
                pl.BlockSpec((tm, 1), lambda i, k: (i, 0)),       # d_src column
                pl.BlockSpec((tm, tk), lambda i, k: (i, k)),      # raw A tile (int8)
                pl.BlockSpec((tk, hid), lambda i, k: (k, 0)),     # Z1 source rows
                pl.BlockSpec((1, hid), lambda i, k: (0, 0)),      # b1 (resident)
                pl.BlockSpec((hid, out), lambda i, k: (0, 0)),    # W2 (resident)
            ],
            out_specs=pl.BlockSpec((tm, out), lambda i, k: (i, 0)),
            scratch_shapes=[pltpu.VMEM((tm, hid), jnp.float32)],
        ),
        compiler_params=pltpu.CompilerParams(
            dimension_semantics=("parallel", "arbitrary")),
        cost_estimate=pl.CostEstimate(flops=flops, transcendentals=0,
                                      bytes_accessed=bytes_accessed),
    )(dd, ds, a_i8, z1, b1, w2)


def _run_layer2(dd, a_i8, z2, b2, *, tm, tk):
    n_pad = a_i8.shape[0]
    out = z2.shape[1]
    grid = (n_pad // tm, n_pad // tk)
    row_tiles = grid[0]

    flops = 2 * n_pad * n_pad * out
    bytes_accessed = int(
        a_i8.size
        + row_tiles * n_pad * out * 2      # Z2 re-streamed once per row tile (bf16)
        + n_pad * out * 4                  # f32 logits out
        + n_pad * 4 + out * 4)             # dd, b2

    return pl.pallas_call(
        _layer2_kernel,
        out_shape=jax.ShapeDtypeStruct((n_pad, out), jnp.float32),
        grid_spec=pltpu.PrefetchScalarGridSpec(
            num_scalar_prefetch=0,
            grid=grid,
            in_specs=[
                pl.BlockSpec((tm, 1), lambda i, k: (i, 0)),       # d_dst column
                pl.BlockSpec((tm, tk), lambda i, k: (i, k)),      # raw A tile (int8)
                pl.BlockSpec((tk, out), lambda i, k: (k, 0)),     # Z2 source rows
                pl.BlockSpec((1, out), lambda i, k: (0, 0)),      # b2 (resident)
            ],
            out_specs=pl.BlockSpec((tm, out), lambda i, k: (i, 0)),
            scratch_shapes=[pltpu.VMEM((tm, out), jnp.float32)],
        ),
        compiler_params=pltpu.CompilerParams(
            dimension_semantics=("parallel", "arbitrary")),
        cost_estimate=pl.CostEstimate(flops=flops, transcendentals=0,
                                      bytes_accessed=bytes_accessed),
    )(dd, a_i8, z2, b2)


# ----------------------------------------------------------------------------
# Wrapper: padding, compact adjacency, degree scales, feature pre-projection.
# ----------------------------------------------------------------------------
def _round_up(v, m):
    return (v + m - 1) // m * m


def _pad2(a, rows, cols):
    return jnp.pad(a, ((0, rows - a.shape[0]), (0, cols - a.shape[1])))


def gcn_node_classifier(adj, x, w1, b1, w2, b2, *, tm=256, tk=512):
    """adj: (N, N) dense adjacency with adj[dst, src] != 0 <=> edge src -> dst."""
    n, in_dim = x.shape
    hid_dim = w1.shape[1]
    out_dim = w2.shape[1]

    # Lane-dense padding: node dim -> multiple of 256, feature dims -> 128.
    n_pad = _round_up(n, 256)
    in_pad = _round_up(in_dim, 128)
    hid_pad = _round_up(hid_dim, 128)
    out_pad = _round_up(out_dim, 128)

    # Tile selection: big tiles for HBM efficiency / MXU fill, but keep >= 2
    # row tiles so the "parallel" axis can shard across two TensorCores (v7x).
    tm = min(tm, n_pad)
    tk = min(tk, n_pad)
    while n_pad % tm:
        tm //= 2
    while n_pad % tk:
        tk //= 2
    if n_pad // tm < 2 and tm >= 256:
        tm //= 2

    # Compact int8 adjacency, padded once; degrees computed from the compact array
    # (single wrapper pass over A instead of separate f32 sum + pad/cast passes).
    a_i8 = _pad2((adj != 0).astype(jnp.int8), n_pad, n_pad)
    deg_dst = jnp.sum(a_i8, axis=1, dtype=jnp.float32)   # in-degree of destination
    deg_src = jnp.sum(a_i8, axis=0, dtype=jnp.float32)   # out-degree of source
    d_dst = jnp.clip(deg_dst, 1.0, None) ** -0.5
    d_src = jnp.clip(deg_src, 1.0, None) ** -0.5
    dd = d_dst.reshape(n_pad, 1)
    ds = d_src.reshape(n_pad, 1)

    # Pre-scale by D_src^-1/2 and pre-project by W1 once (O(N*F), in f32):
    #   Z1 = D_src^-1/2 X W1   so the kernels only do the O(N^2) A @ Z contraction.
    x_p = _pad2(x.astype(jnp.float32), n_pad, in_pad)
    w1_p = _pad2(w1.astype(jnp.float32), in_pad, hid_pad)
    z1 = ((d_src[:, None] * x_p) @ w1_p).astype(jnp.bfloat16)      # (n_pad, hid_pad)

    b1_p = _pad2(b1.reshape(1, -1).astype(jnp.float32), 1, hid_pad)
    b2_p = _pad2(b2.reshape(1, -1).astype(jnp.float32), 1, out_pad)
    w2_p = _pad2(w2, hid_pad, out_pad).astype(jnp.bfloat16)

    # Layer 1 (relu fused) emits Z2 = D_src^-1/2 H1 W2 directly (no H1 round trip).
    # Note: padded node rows of Z2 can be nonzero when b1 != 0; they are masked by
    # the zero A columns in layer 2 and dropped by the final slice.
    z2 = _run_layer1(dd, ds, a_i8, z1, b1_p, w2_p, tm=tm, tk=tk)
    # Layer 2: f32 logits.
    out = _run_layer2(dd, a_i8, z2, b2_p, tm=tm, tk=tk)
    return out[:n, :out_dim]


def xavier_uniform(key, shape):
    fan_in, fan_out = shape
    limit = (6.0 / (fan_in + fan_out)) ** 0.5
    return jax.random.uniform(key, shape, jnp.float32, -limit, limit)


if __name__ == "__main__":
    key = jax.random.PRNGKey(0)
    k_adj, k_x, k_w1, k_b1, k_w2, k_b2 = jax.random.split(key, 6)

    # Small but large enough to exercise the tiled grid (n_pad=512 -> 2x1 tiles
    # of 256x512) and the node-dim padding path (500 -> 512).
    N, IN_DIM, HID_DIM, OUT_DIM = 500, 16, 32, 8

    # Deterministic synthetic directed graph (dense 0/1 adjacency, A[dst, src]).
    adj = (jax.random.uniform(k_adj, (N, N)) < 0.05).astype(jnp.float32)
    x = jax.random.normal(k_x, (N, IN_DIM), jnp.float32)

    # GraphConv params (xavier weights; small nonzero biases to exercise bias path).
    w1 = xavier_uniform(k_w1, (IN_DIM, HID_DIM))
    b1 = 0.1 * jax.random.normal(k_b1, (HID_DIM,), jnp.float32)
    w2 = xavier_uniform(k_w2, (HID_DIM, OUT_DIM))
    b2 = 0.1 * jax.random.normal(k_b2, (OUT_DIM,), jnp.float32)

    fn = jax.jit(gcn_node_classifier)
    out = jax.block_until_ready(fn(adj, x, w1, b1, w2, b2))
    assert out.shape == (N, OUT_DIM)

    # Pure f32 reference (same math; bf16 kernel operands -> loose tolerance).
    deg_dst = jnp.clip(adj.sum(axis=1), 1.0, None)
    deg_src = jnp.clip(adj.sum(axis=0), 1.0, None)
    a_hat = (deg_dst ** -0.5)[:, None] * adj * (deg_src ** -0.5)[None, :]
    ref = jnp.maximum(a_hat @ (x @ w1) + b1, 0.0)
    ref = a_hat @ (ref @ w2) + b2

    max_err = jnp.max(jnp.abs(out - ref))
    assert jnp.allclose(out, ref, atol=2e-2, rtol=2e-2), f"max abs err {max_err}"

    print("KERNEL_OK")
</pallas_src>

<mosaic_0001>
module attributes {stable_mosaic.version = 11 : i64} {
  func.func @_layer1_kernel(%arg0: i32, %arg1: i32, %arg2: memref<256x1xf32, #tpu.memory_space<vmem>>, %arg3: memref<256x1xf32, #tpu.memory_space<vmem>>, %arg4: memref<256x512xi8, #tpu.memory_space<vmem>>, %arg5: memref<512x128xbf16, #tpu.memory_space<vmem>>, %arg6: memref<1x128xf32, #tpu.memory_space<vmem>>, %arg7: memref<128x128xbf16, #tpu.memory_space<vmem>>, %arg8: memref<256x128xbf16, #tpu.memory_space<vmem>>, %arg9: memref<256x128xf32, #tpu.memory_space<vmem>>) attributes {dimension_semantics = [#tpu.dimension_semantics<parallel>, #tpu.dimension_semantics<arbitrary>], iteration_bounds = array<i64: 2, 1>, scalar_prefetch = 0 : i64, scratch_operands = 1 : i64, tpu.core_type = #tpu.core_type<tc>, window_params = [{transform_indices = @transform_0, window_bounds = array<i64: 256, 1>}, {transform_indices = @transform_1, window_bounds = array<i64: 256, 1>}, {transform_indices = @transform_2, window_bounds = array<i64: 256, 512>}, {transform_indices = @transform_3, window_bounds = array<i64: 512, 128>}, {pipeline_mode = #tpu.pipeline_mode<synchronous>, transform_indices = @transform_4, window_bounds = array<i64: 1, 128>}, {pipeline_mode = #tpu.pipeline_mode<synchronous>, transform_indices = @transform_5, window_bounds = array<i64: 128, 128>}, {transform_indices = @transform_6, window_bounds = array<i64: 256, 128>}]} {
    %c0_i32 = arith.constant 0 : i32
    %0 = arith.cmpi eq, %arg1, %c0_i32 : i32
    %1 = arith.extui %0 : i1 to i32
    %c0_i32_0 = arith.constant 0 : i32
    %2 = arith.cmpi ne, %1, %c0_i32_0 : i32
    scf.if %2 {
      %cst_10 = arith.constant 0.000000e+00 : f32
      %13 = vector.broadcast %cst_10 : f32 to vector<256x128xf32>
      %c0_11 = arith.constant 0 : index
      %c0_12 = arith.constant 0 : index
      %14 = vector.load %arg9[%c0_11, %c0_12] : memref<256x128xf32, #tpu.memory_space<vmem>>, vector<256x128xf32>
      tpu.vector_store %arg9[%c0_11, %c0_12], %13 {strides = array<i32>} : memref<256x128xf32, #tpu.memory_space<vmem>>, vector<256x128xf32>,
    } else {
    }
    %c0 = arith.constant 0 : index
    %c0_1 = arith.constant 0 : index
    %3 = vector.load %arg9[%c0, %c0_1] : memref<256x128xf32, #tpu.memory_space<vmem>>, vector<256x128xf32>
    %c0_2 = arith.constant 0 : index
    %c0_3 = arith.constant 0 : index
    %4 = vector.load %arg4[%c0_2, %c0_3] : memref<256x512xi8, #tpu.memory_space<vmem>>, vector<256x512xi8>
    %5 = arith.sitofp %4 : vector<256x512xi8> to vector<256x512xbf16>
    %c0_4 = arith.constant 0 : index
    %c0_5 = arith.constant 0 : index
    %6 = vector.load %arg5[%c0_4, %c0_5] : memref<512x128xbf16, #tpu.memory_space<vmem>>, vector<512x128xbf16>
    %cst = arith.constant dense<0.000000e+00> : vector<256x128xf32>
    %7 = tpu.matmul %5, %6, %cst {dimension_numbers = #tpu.dot_dimension_numbers<[1], [0], [0], [1], [0, 0, 1, 1], [], []>} : vector<256x512xbf16>, vector<512x128xbf16>, vector<256x128xf32> -> vector<256x128xf32>
    %8 = arith.addf %3, %7 : vector<256x128xf32>
    %c0_6 = arith.constant 0 : index
    %c0_7 = arith.constant 0 : index
    %9 = vector.load %arg9[%c0_6, %c0_7] : memref<256x128xf32, #tpu.memory_space<vmem>>, vector<256x128xf32>
    tpu.vector_store %arg9[%c0_6, %c0_7], %8 {strides = array<i32>} : memref<256x128xf32, #tpu.memory_space<vmem>>, vector<256x128xf32>,
    %c0_i32_8 = arith.constant 0 : i32
    %10 = arith.cmpi eq, %arg1, %c0_i32_8 : i32
    %11 = arith.extui %10 : i1 to i32
    %c0_i32_9 = arith.constant 0 : i32
    %12 = arith.cmpi ne, %11, %c0_i32_9 : i32
    scf.if %12 {
      %c0_10 = arith.constant 0 : index
      %c0_11 = arith.constant 0 : index
      %13 = vector.load %arg2[%c0_10, %c0_11] : memref<256x1xf32, #tpu.memory_space<vmem>>, vector<256x1xf32>
      %c0_12 = arith.constant 0 : index
      %c0_13 = arith.constant 0 : index
      %14 = vector.load %arg9[%c0_12, %c0_13] : memref<256x128xf32, #tpu.memory_space<vmem>>, vector<256x128xf32>
      %15 = vector.broadcast %13 : vector<256x1xf32> to vector<256x128xf32>
      %16 = arith.mulf %15, %14 : vector<256x128xf32>
      %c0_14 = arith.constant 0 : index
      %c0_15 = arith.constant 0 : index
      %17 = vector.load %arg6[%c0_14, %c0_15] : memref<1x128xf32, #tpu.memory_space<vmem>>, vector<1x128xf32>
      %18 = vector.broadcast %17 : vector<1x128xf32> to vector<256x128xf32>
      %19 = arith.addf %16, %18 : vector<256x128xf32>
      %cst_16 = arith.constant 0.000000e+00 : f32
      %20 = vector.broadcast %cst_16 : f32 to vector<256x128xf32>
      %21 = arith.maximumf %19, %20 : vector<256x128xf32>
      %c0_17 = arith.constant 0 : index
      %c0_18 = arith.constant 0 : index
      %22 = vector.load %arg3[%c0_17, %c0_18] : memref<256x1xf32, #tpu.memory_space<vmem>>, vector<256x1xf32>
      %23 = vector.broadcast %22 : vector<256x1xf32> to vector<256x128xf32>
      %24 = arith.mulf %23, %21 : vector<256x128xf32>
      %25 = arith.truncf %24 : vector<256x128xf32> to vector<256x128xbf16>
      %c0_19 = arith.constant 0 : index
      %c0_20 = arith.constant 0 : index
      %26 = vector.load %arg7[%c0_19, %c0_20] : memref<128x128xbf16, #tpu.memory_space<vmem>>, vector<128x128xbf16>
      %cst_21 = arith.constant dense<0.000000e+00> : vector<256x128xf32>
      %27 = tpu.matmul %25, %26, %cst_21 {dimension_numbers = #tpu.dot_dimension_numbers<[1], [0], [0], [1], [0, 0, 1, 1], [], []>} : vector<256x128xbf16>, vector<128x128xbf16>, vector<256x128xf32> -> vector<256x128xf32>
      %28 = arith.truncf %27 : vector<256x128xf32> to vector<256x128xbf16>
      %c0_22 = arith.constant 0 : index
      %c0_23 = arith.constant 0 : index
      %29 = vector.load %arg8[%c0_22, %c0_23] : memref<256x128xbf16, #tpu.memory_space<vmem>>, vector<256x128xbf16>
      tpu.vector_store %arg8[%c0_22, %c0_23], %28 {strides = array<i32>} : memref<256x128xbf16, #tpu.memory_space<vmem>>, vector<256x128xbf16>,
    } else {
    }
    return
  }
  func.func @transform_0(%arg0: i32, %arg1: i32) -> (i32, i32) {
    %c0_i32 = arith.constant 0 : i32
    %c0_i32_0 = arith.constant 0 : i32
    return %arg0, %c0_i32 : i32, i32
  }
  func.func @transform_1(%arg0: i32, %arg1: i32) -> (i32, i32) {
    %c0_i32 = arith.constant 0 : i32
    %c0_i32_0 = arith.constant 0 : i32
    return %arg0, %c0_i32 : i32, i32
  }
  func.func @transform_2(%arg0: i32, %arg1: i32) -> (i32, i32) {
    %c0_i32 = arith.constant 0 : i32
    return %arg0, %arg1 : i32, i32
  }
  func.func @transform_3(%arg0: i32, %arg1: i32) -> (i32, i32) {
    %c0_i32 = arith.constant 0 : i32
    %c0_i32_0 = arith.constant 0 : i32
    return %arg1, %c0_i32 : i32, i32
  }
  func.func @transform_4(%arg0: i32, %arg1: i32) -> (i32, i32) {
    %c0_i32 = arith.constant 0 : i32
    %c0_i32_0 = arith.constant 0 : i32
    %c0_i32_1 = arith.constant 0 : i32
    return %c0_i32, %c0_i32_0 : i32, i32
  }
  func.func @transform_5(%arg0: i32, %arg1: i32) -> (i32, i32) {
    %c0_i32 = arith.constant 0 : i32
    %c0_i32_0 = arith.constant 0 : i32
    %c0_i32_1 = arith.constant 0 : i32
    return %c0_i32, %c0_i32_0 : i32, i32
  }
  func.func @transform_6(%arg0: i32, %arg1: i32) -> (i32, i32) {
    %c0_i32 = arith.constant 0 : i32
    %c0_i32_0 = arith.constant 0 : i32
    return %arg0, %c0_i32 : i32, i32
  }
}

module attributes {stable_mosaic.version = 11 : i64} {
  func.func @_layer2_kernel(%arg0: i32, %arg1: i32, %arg2: memref<256x1xf32, #tpu.memory_space<vmem>>, %arg3: memref<256x512xi8, #tpu.memory_space<vmem>>, %arg4: memref<512x128xbf16, #tpu.memory_space<vmem>>, %arg5: memref<1x128xf32, #tpu.memory_space<vmem>>, %arg6: memref<256x128xf32, #tpu.memory_space<vmem>>, %arg7: memref<256x128xf32, #tpu.memory_space<vmem>>) attributes {dimension_semantics = [#tpu.dimension_semantics<parallel>, #tpu.dimension_semantics<arbitrary>], iteration_bounds = array<i64: 2, 1>, scalar_prefetch = 0 : i64, scratch_operands = 1 : i64, tpu.core_type = #tpu.core_type<tc>, window_params = [{transform_indices = @transform_0, window_bounds = array<i64: 256, 1>}, {transform_indices = @transform_1, window_bounds = array<i64: 256, 512>}, {transform_indices = @transform_2, window_bounds = array<i64: 512, 128>}, {pipeline_mode = #tpu.pipeline_mode<synchronous>, transform_indices = @transform_3, window_bounds = array<i64: 1, 128>}, {transform_indices = @transform_4, window_bounds = array<i64: 256, 128>}]} {
    %c0_i32 = arith.constant 0 : i32
    %0 = arith.cmpi eq, %arg1, %c0_i32 : i32
    %1 = arith.extui %0 : i1 to i32
    %c0_i32_0 = arith.constant 0 : i32
    %2 = arith.cmpi ne, %1, %c0_i32_0 : i32
    scf.if %2 {
      %cst_10 = arith.constant 0.000000e+00 : f32
      %13 = vector.broadcast %cst_10 : f32 to vector<256x128xf32>
      %c0_11 = arith.constant 0 : index
      %c0_12 = arith.constant 0 : index
      %14 = vector.load %arg7[%c0_11, %c0_12] : memref<256x128xf32, #tpu.memory_space<vmem>>, vector<256x128xf32>
      tpu.vector_store %arg7[%c0_11, %c0_12], %13 {strides = array<i32>} : memref<256x128xf32, #tpu.memory_space<vmem>>, vector<256x128xf32>,
    } else {
    }
    %c0 = arith.constant 0 : index
    %c0_1 = arith.constant 0 : index
    %3 = vector.load %arg7[%c0, %c0_1] : memref<256x128xf32, #tpu.memory_space<vmem>>, vector<256x128xf32>
    %c0_2 = arith.constant 0 : index
    %c0_3 = arith.constant 0 : index
    %4 = vector.load %arg3[%c0_2, %c0_3] : memref<256x512xi8, #tpu.memory_space<vmem>>, vector<256x512xi8>
    %5 = arith.sitofp %4 : vector<256x512xi8> to vector<256x512xbf16>
    %c0_4 = arith.constant 0 : index
    %c0_5 = arith.constant 0 : index
    %6 = vector.load %arg4[%c0_4, %c0_5] : memref<512x128xbf16, #tpu.memory_space<vmem>>, vector<512x128xbf16>
    %cst = arith.constant dense<0.000000e+00> : vector<256x128xf32>
    %7 = tpu.matmul %5, %6, %cst {dimension_numbers = #tpu.dot_dimension_numbers<[1], [0], [0], [1], [0, 0, 1, 1], [], []>} : vector<256x512xbf16>, vector<512x128xbf16>, vector<256x128xf32> -> vector<256x128xf32>
    %8 = arith.addf %3, %7 : vector<256x128xf32>
    %c0_6 = arith.constant 0 : index
    %c0_7 = arith.constant 0 : index
    %9 = vector.load %arg7[%c0_6, %c0_7] : memref<256x128xf32, #tpu.memory_space<vmem>>, vector<256x128xf32>
    tpu.vector_store %arg7[%c0_6, %c0_7], %8 {strides = array<i32>} : memref<256x128xf32, #tpu.memory_space<vmem>>, vector<256x128xf32>,
    %c0_i32_8 = arith.constant 0 : i32
    %10 = arith.cmpi eq, %arg1, %c0_i32_8 : i32
    %11 = arith.extui %10 : i1 to i32
    %c0_i32_9 = arith.constant 0 : i32
    %12 = arith.cmpi ne, %11, %c0_i32_9 : i32
    scf.if %12 {
      %c0_10 = arith.constant 0 : index
      %c0_11 = arith.constant 0 : index
      %13 = vector.load %arg2[%c0_10, %c0_11] : memref<256x1xf32, #tpu.memory_space<vmem>>, vector<256x1xf32>
      %c0_12 = arith.constant 0 : index
      %c0_13 = arith.constant 0 : index
      %14 = vector.load %arg7[%c0_12, %c0_13] : memref<256x128xf32, #tpu.memory_space<vmem>>, vector<256x128xf32>
      %15 = vector.broadcast %13 : vector<256x1xf32> to vector<256x128xf32>
      %16 = arith.mulf %15, %14 : vector<256x128xf32>
      %c0_14 = arith.constant 0 : index
      %c0_15 = arith.constant 0 : index
      %17 = vector.load %arg5[%c0_14, %c0_15] : memref<1x128xf32, #tpu.memory_space<vmem>>, vector<1x128xf32>
      %18 = vector.broadcast %17 : vector<1x128xf32> to vector<256x128xf32>
      %19 = arith.addf %16, %18 : vector<256x128xf32>
      %c0_16 = arith.constant 0 : index
      %c0_17 = arith.constant 0 : index
      %20 = vector.load %arg6[%c0_16, %c0_17] : memref<256x128xf32, #tpu.memory_space<vmem>>, vector<256x128xf32>
      tpu.vector_store %arg6[%c0_16, %c0_17], %19 {strides = array<i32>} : memref<256x128xf32, #tpu.memory_space<vmem>>, vector<256x128xf32>,
    } else {
    }
    return
  }
  func.func @transform_0(%arg0: i32, %arg1: i32) -> (i32, i32) {
    %c0_i32 = arith.constant 0 : i32
    %c0_i32_0 = arith.constant 0 : i32
    return %arg0, %c0_i32 : i32, i32
  }
  func.func @transform_1(%arg0: i32, %arg1: i32) -> (i32, i32) {
    %c0_i32 = arith.constant 0 : i32
    return %arg0, %arg1 : i32, i32
  }
  func.func @transform_2(%arg0: i32, %arg1: i32) -> (i32, i32) {
    %c0_i32 = arith.constant 0 : i32
    %c0_i32_0 = arith.constant 0 : i32
    return %arg1, %c0_i32 : i32, i32
  }
  func.func @transform_3(%arg0: i32, %arg1: i32) -> (i32, i32) {
    %c0_i32 = arith.constant 0 : i32
    %c0_i32_0 = arith.constant 0 : i32
    %c0_i32_1 = arith.constant 0 : i32
    return %c0_i32, %c0_i32_0 : i32, i32
  }
  func.func @transform_4(%arg0: i32, %arg1: i32) -> (i32, i32) {
    %c0_i32 = arith.constant 0 : i32
    %c0_i32_0 = arith.constant 0 : i32
    return %arg0, %c0_i32 : i32, i32
  }
}

</mosaic_0001>

<llo_original>
// kernel: gcn_node_classifier.3
$region0: #{gcn_node_classifier.3}
  #allocation0 [shape = 'u32[]', space=smem, size = 0x4, offset = 0x4, fixed_abs, tag = 'smem constant byte address 0x4 - core index']
  #allocation1 [shape = 'u32[72,128]{1,0:T(1,128)}', space=vmem, size = 0x9000, scoped, tag = 'internal scratch']
  #allocation2 [shape = 'f32[256,128]{1,0:T(8,128)}', space=vmem, size = 0x20000, scoped, tag = 'scratch operand']
  %s0 = inlined_call_operand.vmem [shape: f32[512,1], index: 0, kind: input, shape index: {}]
  %s1 = inlined_call_operand.vmem [shape: s8[512,512], index: 1, kind: input, shape index: {}]
  %s2 = inlined_call_operand.vmem [shape: bf16[512,128], index: 2, kind: input, shape index: {}]
  %s3 = inlined_call_operand.vmem [shape: f32[1,128], index: 3, kind: input, shape index: {}]
  %s4 = inlined_call_operand.vmem [shape: f32[512,128], index: 4, kind: output, shape index: {}]
  %s5 = sld [smem:[#allocation0]]
  $region57: #{gcn_node_classifier.3} parent=0
    _
  %s7 = ssub.s32 1, %s5
  %s8 = scalar_select 0, %s7, %s5
  loop: start=0, step=1, limit=4
  $region2: #{gcn_node_classifier.3} parent=0 // loop_pre_header
    _
  $region3: #{gcn_node_classifier.3} parent=0 // loop_header
    %s10 = sphi 0, %s14
    %p11 = scmp.ge.s32.totalorder %s10, 4
    %s17 = sphi 0, %s29
    %s18 = sphi 0, %s25
    %s19 = sphi 0, %s17
    %s20 = sphi 0, %s18
    %s21 = sphi 0, %s19
    %s22 = sphi 0, %s20
    %s32 = sphi 0, %s34
    %s35 = sphi 0, %s32
    %s36 = sphi 0, %s35
    %s52 = sphi 0, %s36
    %s60 = sphi 0, %s62
    %s63 = sphi 0, %s60
    %s64 = sphi 0, %s63
    %s80 = sphi 0, %s64
    %s86 = sphi 0, %s88
    %s89 = sphi 0, %s86
    %s90 = sphi 0, %s89
    %s106 = sphi 0, %s90
    %s110 = sphi 0, %s110
    %s112 = sphi 0, %s110
    %s113 = sphi 0, %s112
    %s127 = sphi 0, %s113
    %s133 = sphi 0, %s135
    %s136 = sphi 0, %s133
    %s137 = sphi 0, %s136
    %s153 = sphi 0, %s137
  $region4: #{gcn_node_classifier.3} parent=0 // loop_header_branch
    %13 = sbr.rel (%p11) target = $region8
  $region5: #{gcn_node_classifier.3} parent=0 // loop_body
    %s15 = ssub.s32 %s10, 1
    %s16 = ssub.s32 %s10, 2
    %s23 = sadd.s32 1, %s18
    %p24 = scmp.ge.s32.totalorder %s23, 1
    %s25 = scalar_select %p24, 0, %s23
    %s26 = sadd.s32 1, %s17
    %s27 = scalar_select %p24, %s26, %s17
    %p28 = scmp.ge.s32.totalorder %s27, 2
    %s29 = scalar_select %p28, 0, %s27
    %s30 = ssub.s32 %s17, %s29
    %p31 = scmp.eq.s32.totalorder %s30, 0
    %s33 = sadd.s32 %s32, 1
    %s34 = scalar_select %p31, %s32, %s33
    %p37 = pneg %p31
    %p38 = scmp.eq.s32.totalorder %s10, 1
    %p39 = por %p37, %p38
    %p40 = scmp.ne.s32.totalorder %s32, %s35
    %p41 = scmp.eq.s32.totalorder %s10, 0
    %p42 = por %p40, %p41
    %p43 = scmp.ne.s32.totalorder %s32, %s35
    %p44 = scmp.eq.s32.totalorder %s15, 1
    %p45 = por %p43, %p44
    %p46 = scmp.ne.s32.totalorder %s35, %s36
    %p47 = scmp.eq.s32.totalorder %s15, 0
    %p48 = por %p46, %p47
    %p49 = scmp.ne.s32.totalorder %s35, %s36
    %p50 = scmp.eq.s32.totalorder %s16, 1
    %p51 = por %p49, %p50
    %p53 = scmp.ne.s32.totalorder %s36, %s52
    %p54 = scmp.eq.s32.totalorder %s16, 0
    %p55 = por %p53, %p54
    %s56 = ssub.s32 %s17, %s29
    %s57 = ssub.s32 %s18, %s25
    %s58 = sor.u32 %s56, %s57
    %p59 = scmp.eq.s32.totalorder %s58, 0
    %s61 = sadd.s32 %s60, 1
    %s62 = scalar_select %p59, %s60, %s61
    %p65 = pneg %p59
    %p66 = scmp.eq.s32.totalorder %s10, 1
    %p67 = por %p65, %p66
    %p68 = scmp.ne.s32.totalorder %s60, %s63
    %p69 = scmp.eq.s32.totalorder %s10, 0
    %p70 = por %p68, %p69
    %p71 = scmp.ne.s32.totalorder %s60, %s63
    %p72 = scmp.eq.s32.totalorder %s15, 1
    %p73 = por %p71, %p72
    %p74 = scmp.ne.s32.totalorder %s63, %s64
    %p75 = scmp.eq.s32.totalorder %s15, 0
    %p76 = por %p74, %p75
    %p77 = scmp.ne.s32.totalorder %s63, %s64
    %p78 = scmp.eq.s32.totalorder %s16, 1
    %p79 = por %p77, %p78
    %p81 = scmp.ne.s32.totalorder %s64, %s80
    %p82 = scmp.eq.s32.totalorder %s16, 0
    %p83 = por %p81, %p82
    %s84 = ssub.s32 %s18, %s25
    %p85 = scmp.eq.s32.totalorder %s84, 0
    %s87 = sadd.s32 %s86, 1
    %s88 = scalar_select %p85, %s86, %s87
    %p91 = pneg %p85
    %p92 = scmp.eq.s32.totalorder %s10, 1
    %p93 = por %p91, %p92
    %p94 = scmp.ne.s32.totalorder %s86, %s89
    %p95 = scmp.eq.s32.totalorder %s10, 0
    %p96 = por %p94, %p95
    %p97 = scmp.ne.s32.totalorder %s86, %s89
    %p98 = scmp.eq.s32.totalorder %s15, 1
    %p99 = por %p97, %p98
    %p100 = scmp.ne.s32.totalorder %s89, %s90
    %p101 = scmp.eq.s32.totalorder %s15, 0
    %p102 = por %p100, %p101
    %p103 = scmp.ne.s32.totalorder %s89, %s90
    %p104 = scmp.eq.s32.totalorder %s16, 1
    %p105 = por %p103, %p104
    %p107 = scmp.ne.s32.totalorder %s90, %s106
    %p108 = scmp.eq.s32.totalorder %s16, 0
    %p109 = por %p107, %p108
    %s111 = sadd.s32 %s110, 1
    %p114 = scmp.eq.s32.totalorder %s10, 1
    %p115 = scmp.ne.s32.totalorder %s110, %s112
    %p116 = scmp.eq.s32.totalorder %s10, 0
    %p117 = por %p115, %p116
    %p118 = scmp.ne.s32.totalorder %s110, %s112
    %p119 = scmp.eq.s32.totalorder %s15, 1
    %p120 = por %p118, %p119
    %p121 = scmp.ne.s32.totalorder %s112, %s113
    %p122 = scmp.eq.s32.totalorder %s15, 0
    %p123 = por %p121, %p122
    %p124 = scmp.ne.s32.totalorder %s112, %s113
    %p125 = scmp.eq.s32.totalorder %s16, 1
    %p126 = por %p124, %p125
    %p128 = scmp.ne.s32.totalorder %s113, %s127
    %p129 = scmp.eq.s32.totalorder %s16, 0
    %p130 = por %p128, %p129
    %s131 = ssub.s32 %s17, %s29
    %p132 = scmp.eq.s32.totalorder %s131, 0
    %s134 = sadd.s32 %s133, 1
    %s135 = scalar_select %p132, %s133, %s134
    %p138 = pneg %p132
    %p139 = scmp.eq.s32.totalorder %s10, 1
    %p140 = por %p138, %p139
    %p141 = scmp.ne.s32.totalorder %s133, %s136
    %p142 = scmp.eq.s32.totalorder %s10, 0
    %p143 = por %p141, %p142
    %p144 = scmp.ne.s32.totalorder %s133, %s136
    %p145 = scmp.eq.s32.totalorder %s15, 1
    %p146 = por %p144, %p145
    %p147 = scmp.ne.s32.totalorder %s136, %s137
    %p148 = scmp.eq.s32.totalorder %s15, 0
    %p149 = por %p147, %p148
    %p150 = scmp.ne.s32.totalorder %s136, %s137
    %p151 = scmp.eq.s32.totalorder %s16, 1
    %p152 = por %p150, %p151
    %p154 = scmp.ne.s32.totalorder %s137, %s153
    %p155 = scmp.eq.s32.totalorder %s16, 0
    %p156 = por %p154, %p155
    %p157 = scmp.le.s32.totalorder 1, %s10
    %p158 = scmp.lt.s32.totalorder %s10, 3
    %p159 = pnand %p157, %p158
    %p160 = pneg %p159
    // Predicated region
    $region9: #{gcn_node_classifier.3} parent=5 // pred_check
      _
    $region10: #{gcn_node_classifier.3} parent=5 // pred_check_branch
      %162 = sbr.rel (%p159) target = $region12
    $region11: #{gcn_node_classifier.3} parent=5 // pred_region
      %s163 = ssub.s32 %s10, 1
      // Predicated region
      $region13: #{gcn_node_classifier.3} parent=11 // pred_check
        %p164 = pneg %p102
      $region14: #{gcn_node_classifier.3} parent=11 // pred_check_branch
        %166 = sbr.rel (%p164) target = $region16
      $region15: #{gcn_node_classifier.3} parent=11 // pred_region
        %s167 = smul.u32 64, %s20
        %p168 = scmp.lt.s32.totalorder %s167, 63
        %s169 = scalar_select %p168, %s167, 63
        %s170 = smul.addr %s169, 4
        %s171 = scalar_lea.vmem %s2, %s170
        %s172 = smul.u32 64, %s20
      $region16: #{gcn_node_classifier.3} parent=11 // pred_fallthru
        _
      // Predicated region
      $region17: #{gcn_node_classifier.3} parent=11 // pred_check
        %p173 = pneg %p123
      $region18: #{gcn_node_classifier.3} parent=11 // pred_check_branch
        %175 = sbr.rel (%p173) target = $region20
      $region19: #{gcn_node_classifier.3} parent=11 // pred_region
        _
      $region20: #{gcn_node_classifier.3} parent=11 // pred_fallthru
        _
    $region12: #{gcn_node_classifier.3} parent=5 // pred_fallthru
      _
    %p176 = scmp.lt.s32.totalorder %s10, 2
    // Predicated region
    $region21: #{gcn_node_classifier.3} parent=5 // pred_check
      %p177 = pneg %p176
    $region22: #{gcn_node_classifier.3} parent=5 // pred_check_branch
      %179 = sbr.rel (%p177) target = $region24
    $region23: #{gcn_node_classifier.3} parent=5 // pred_region
      // Predicated region
      $region25: #{gcn_node_classifier.3} parent=23 // pred_check
        %p180 = pneg %p42
      $region26: #{gcn_node_classifier.3} parent=23 // pred_check_branch
        %182 = sbr.rel (%p180) target = $region28
      $region27: #{gcn_node_classifier.3} parent=23 // pred_region
        %s183 = smul.u32 32, %s17
        %p184 = scmp.lt.s32.totalorder %s183, 63
        %s185 = scalar_select %p184, %s183, 63
        %s186 = smul.addr %s185, 8
        %s187 = scalar_lea.vmem %s0, %s186
        %s188 = smul.u32 32, %s17
      $region28: #{gcn_node_classifier.3} parent=23 // pred_fallthru
        _
      // Predicated region
      $region29: #{gcn_node_classifier.3} parent=23 // pred_check
        %p189 = pneg %p70
      $region30: #{gcn_node_classifier.3} parent=23 // pred_check_branch
        %191 = sbr.rel (%p189) target = $region32
      $region31: #{gcn_node_classifier.3} parent=23 // pred_region
        %s192 = smul.u32 8, %s17
        %s193 = smul.u32 4, %s18
        %p194 = scmp.lt.s32.totalorder %s192, 15
        %s195 = scalar_select %p194, %s192, 15
        %p196 = scmp.lt.s32.totalorder %s193, 3
        %s197 = scalar_select %p196, %s193, 3
        %s198 = smul.addr %s195, 4
        %s199 = sadd.s32 %s197, %s198
        %s200 = smul.addr %s199, 8
        %s201 = scalar_lea.vmem %s1, %s200
        %s202 = smul.u32 8, %s17
        %s203 = smul.u32 4, %s18
      $region32: #{gcn_node_classifier.3} parent=23 // pred_fallthru
        _
    $region24: #{gcn_node_classifier.3} parent=5 // pred_fallthru
      _
    %p204 = scmp.le.s32.totalorder 1, %s10
    %p205 = scmp.lt.s32.totalorder %s10, 3
    %p206 = pnand %p204, %p205
    %p207 = pneg %p206
    // Predicated region
    $region33: #{gcn_node_classifier.3} parent=5 // pred_check
      _
    $region34: #{gcn_node_classifier.3} parent=5 // pred_check_branch
      %209 = sbr.rel (%p206) target = $region36
    $region35: #{gcn_node_classifier.3} parent=5 // pred_region
      %s210 = ssub.s32 %s10, 1
      %s211 = smul.u32 32, %s19
      %p212 = scmp.lt.s32.totalorder %s211, 63
      %s213 = scalar_select %p212, %s211, 63
      %s214 = smul.addr %s213, 8
      %s215 = scalar_lea.vmem %s0, %s214
      %p216 = pneg %p48
      %p217 = pneg %p45
      %s218 = smul.u32 8, %s19
      %s219 = smul.u32 4, %s20
      %p220 = scmp.lt.s32.totalorder %s218, 15
      %s221 = scalar_select %p220, %s218, 15
      %p222 = scmp.lt.s32.totalorder %s219, 3
      %s223 = scalar_select %p222, %s219, 3
      %s224 = smul.addr %s221, 4
      %s225 = sadd.s32 %s223, %s224
      %s226 = smul.addr %s225, 8
      %s227 = scalar_lea.vmem %s1, %s226
      %p228 = pneg %p76
      %p229 = pneg %p73
      %s230 = smul.u32 64, %s20
      %p231 = scmp.lt.s32.totalorder %s230, 63
      %s232 = scalar_select %p231, %s230, 63
      %s233 = smul.addr %s232, 4
      %s234 = scalar_lea.vmem %s2, %s233
      %p235 = pneg %p102
      %p236 = pneg %p99
      %p237 = pneg %p123
      %p238 = pneg %p120
      %p239 = pneg %p149
      %p240 = pneg %p146
      %s241 = smul.u32 32, %s19
      %p242 = scmp.lt.s32.totalorder %s241, 63
      %s243 = scalar_select %p242, %s241, 63
      %s244 = smul.addr %s243, 8
      %s245 = scalar_lea.vmem %s4, %s244
      %s246 = smul.u32 32, %s19
      %p247 = scmp.lt.s32.totalorder %s246, 63
      %s248 = scalar_select %p247, %s246, 63
      %s249 = smul.addr %s248, 8
      %s250 = scalar_lea.vmem %s0, %s249
      %s251 = smul.u32 32, %s19
      %s252 = smul.u32 8, %s19
      %s253 = smul.u32 4, %s20
      %p254 = scmp.lt.s32.totalorder %s252, 15
      %s255 = scalar_select %p254, %s252, 15
      %p256 = scmp.lt.s32.totalorder %s253, 3
      %s257 = scalar_select %p256, %s253, 3
      %s258 = smul.addr %s255, 4
      %s259 = sadd.s32 %s257, %s258
      %s260 = smul.addr %s259, 8
      %s261 = scalar_lea.vmem %s1, %s260
      %s262 = smul.u32 8, %s19
      %s263 = smul.u32 4, %s20
      %s264 = smul.u32 64, %s20
      %p265 = scmp.lt.s32.totalorder %s264, 63
      %s266 = scalar_select %p265, %s264, 63
      %s267 = smul.addr %s266, 4
      %s268 = scalar_lea.vmem %s2, %s267
      %s269 = smul.u32 64, %s20
      %s270 = smul.u32 32, %s19
      %p271 = scmp.lt.s32.totalorder %s270, 63
      %s272 = scalar_select %p271, %s270, 63
      %s273 = smul.addr %s272, 8
      %s274 = scalar_lea.vmem %s4, %s273
      %s275 = smul.u32 32, %s19
      %p276 = scmp.eq.s32.totalorder %s20, 0
      // Predicated region
      $region37: #{gcn_node_classifier.3} parent=35 // pred_check
        %p277 = pneg %p276
      $region38: #{gcn_node_classifier.3} parent=35 // pred_check_branch
        %279 = sbr.rel (%p277) target = $region40
      $region39: #{gcn_node_classifier.3} parent=35 // pred_region
        %280 = vst [vmem:[#allocation2] sm:$0xff] 0.0
        %281 = vst [vmem:[#allocation2 + $0x8] sm:$0xff] 0.0
        %282 = vst [vmem:[#allocation2 + $0x10] sm:$0xff] 0.0
        %283 = vst [vmem:[#allocation2 + $0x18] sm:$0xff] 0.0
        %284 = vst [vmem:[#allocation2 + $0x20] sm:$0xff] 0.0
        %285 = vst [vmem:[#allocation2 + $0x28] sm:$0xff] 0.0
        %286 = vst [vmem:[#allocation2 + $0x30] sm:$0xff] 0.0
        %287 = vst [vmem:[#allocation2 + $0x38] sm:$0xff] 0.0
        %288 = vst [vmem:[#allocation2 + $0x40] sm:$0xff] 0.0
        %289 = vst [vmem:[#allocation2 + $0x48] sm:$0xff] 0.0
        %290 = vst [vmem:[#allocation2 + $0x50] sm:$0xff] 0.0
        %291 = vst [vmem:[#allocation2 + $0x58] sm:$0xff] 0.0
        %292 = vst [vmem:[#allocation2 + $0x60] sm:$0xff] 0.0
        %293 = vst [vmem:[#allocation2 + $0x68] sm:$0xff] 0.0
        %294 = vst [vmem:[#allocation2 + $0x70] sm:$0xff] 0.0
        %295 = vst [vmem:[#allocation2 + $0x78] sm:$0xff] 0.0
        %296 = vst [vmem:[#allocation2 + $0x80] sm:$0xff] 0.0
        %297 = vst [vmem:[#allocation2 + $0x88] sm:$0xff] 0.0
        %298 = vst [vmem:[#allocation2 + $0x90] sm:$0xff] 0.0
        %299 = vst [vmem:[#allocation2 + $0x98] sm:$0xff] 0.0
        %300 = vst [vmem:[#allocation2 + $0xa0] sm:$0xff] 0.0
        %301 = vst [vmem:[#allocation2 + $0xa8] sm:$0xff] 0.0
        %302 = vst [vmem:[#allocation2 + $0xb0] sm:$0xff] 0.0
        %303 = vst [vmem:[#allocation2 + $0xb8] sm:$0xff] 0.0
        %304 = vst [vmem:[#allocation2 + $0xc0] sm:$0xff] 0.0
        %305 = vst [vmem:[#allocation2 + $0xc8] sm:$0xff] 0.0
        %306 = vst [vmem:[#allocation2 + $0xd0] sm:$0xff] 0.0
        %307 = vst [vmem:[#allocation2 + $0xd8] sm:$0xff] 0.0
        %308 = vst [vmem:[#allocation2 + $0xe0] sm:$0xff] 0.0
        %309 = vst [vmem:[#allocation2 + $0xe8] sm:$0xff] 0.0
        %310 = vst [vmem:[#allocation2 + $0xf0] sm:$0xff] 0.0
        %311 = vst [vmem:[#allocation2 + $0xf8] sm:$0xff] 0.0
      $region40: #{gcn_node_classifier.3} parent=35 // pred_fallthru
        _
      %v312 = vld [vmem:[#allocation2] sm:$0xff]
      %v313 = vld [vmem:[#allocation2 + $0x8] sm:$0xff]
      %v314 = vld [vmem:[#allocation2 + $0x10] sm:$0xff]
      %v315 = vld [vmem:[#allocation2 + $0x18] sm:$0xff]
      %v316 = vld [vmem:[#allocation2 + $0x20] sm:$0xff]
      %v317 = vld [vmem:[#allocation2 + $0x28] sm:$0xff]
      %v318 = vld [vmem:[#allocation2 + $0x30] sm:$0xff]
      %v319 = vld [vmem:[#allocation2 + $0x38] sm:$0xff]
      %v320 = vld [vmem:[#allocation2 + $0x40] sm:$0xff]
      %v321 = vld [vmem:[#allocation2 + $0x48] sm:$0xff]
      %v322 = vld [vmem:[#allocation2 + $0x50] sm:$0xff]
      %v323 = vld [vmem:[#allocation2 + $0x58] sm:$0xff]
      %v324 = vld [vmem:[#allocation2 + $0x60] sm:$0xff]
      %v325 = vld [vmem:[#allocation2 + $0x68] sm:$0xff]
      %v326 = vld [vmem:[#allocation2 + $0x70] sm:$0xff]
      %v327 = vld [vmem:[#allocation2 + $0x78] sm:$0xff]
      %v328 = vld [vmem:[#allocation2 + $0x80] sm:$0xff]
      %v329 = vld [vmem:[#allocation2 + $0x88] sm:$0xff]
      %v330 = vld [vmem:[#allocation2 + $0x90] sm:$0xff]
      %v331 = vld [vmem:[#allocation2 + $0x98] sm:$0xff]
      %v332 = vld [vmem:[#allocation2 + $0xa0] sm:$0xff]
      %v333 = vld [vmem:[#allocation2 + $0xa8] sm:$0xff]
      %v334 = vld [vmem:[#allocation2 + $0xb0] sm:$0xff]
      %v335 = vld [vmem:[#allocation2 + $0xb8] sm:$0xff]
      %v336 = vld [vmem:[#allocation2 + $0xc0] sm:$0xff]
      %v337 = vld [vmem:[#allocation2 + $0xc8] sm:$0xff]
      %v338 = vld [vmem:[#allocation2 + $0xd0] sm:$0xff]
      %v339 = vld [vmem:[#allocation2 + $0xd8] sm:$0xff]
      %v340 = vld [vmem:[#allocation2 + $0xe0] sm:$0xff]
      %v341 = vld [vmem:[#allocation2 + $0xe8] sm:$0xff]
      %v342 = vld [vmem:[#allocation2 + $0xf0] sm:$0xff]
      %v343 = vld [vmem:[#allocation2 + $0xf8] sm:$0xff]
      %v344 = vld [vmem:[%s261] sm:$0xff]
      %v345 = vld [vmem:[%s261 + $0x8] sm:$0xff]
      %v346 = vld [vmem:[%s261 + $0x10] sm:$0xff]
      %v347 = vld [vmem:[%s261 + $0x18] sm:$0xff]
      %v348 = vld [vmem:[%s261 + $0x20] sm:$0xff]
      %v349 = vld [vmem:[%s261 + $0x28] sm:$0xff]
      %v350 = vld [vmem:[%s261 + $0x30] sm:$0xff]
      %v351 = vld [vmem:[%s261 + $0x38] sm:$0xff]
      %v352 = vld [vmem:[%s261 + $0x40] sm:$0xff]
      %v353 = vld [vmem:[%s261 + $0x48] sm:$0xff]
      %v354 = vld [vmem:[%s261 + $0x50] sm:$0xff]
      %v355 = vld [vmem:[%s261 + $0x58] sm:$0xff]
      %v356 = vld [vmem:[%s261 + $0x60] sm:$0xff]
      %v357 = vld [vmem:[%s261 + $0x68] sm:$0xff]
      %v358 = vld [vmem:[%s261 + $0x70] sm:$0xff]
      %v359 = vld [vmem:[%s261 + $0x78] sm:$0xff]
      %v360 = vld [vmem:[%s261 + $0x80] sm:$0xff]
      %v361 = vld [vmem:[%s261 + $0x88] sm:$0xff]
      %v362 = vld [vmem:[%s261 + $0x90] sm:$0xff]
      %v363 = vld [vmem:[%s261 + $0x98] sm:$0xff]
      %v364 = vld [vmem:[%s261 + $0xa0] sm:$0xff]
      %v365 = vld [vmem:[%s261 + $0xa8] sm:$0xff]
      %v366 = vld [vmem:[%s261 + $0xb0] sm:$0xff]
      %v367 = vld [vmem:[%s261 + $0xb8] sm:$0xff]
      %v368 = vld [vmem:[%s261 + $0xc0] sm:$0xff]
      %v369 = vld [vmem:[%s261 + $0xc8] sm:$0xff]
      %v370 = vld [vmem:[%s261 + $0xd0] sm:$0xff]
      %v371 = vld [vmem:[%s261 + $0xd8] sm:$0xff]
      %v372 = vld [vmem:[%s261 + $0xe0] sm:$0xff]
      %v373 = vld [vmem:[%s261 + $0xe8] sm:$0xff]
      %v374 = vld [vmem:[%s261 + $0xf0] sm:$0xff]
      %v375 = vld [vmem:[%s261 + $0xf8] sm:$0xff]
      %v376 = vunpack.c.0.s8 %v344
      %v377 = vunpack.c.0.s8 %v345
      %v378 = vunpack.c.0.s8 %v346
      %v379 = vunpack.c.0.s8 %v347
      %v380 = vunpack.c.1.s8 %v344
      %v381 = vunpack.c.1.s8 %v345
      %v382 = vunpack.c.1.s8 %v346
      %v383 = vunpack.c.1.s8 %v347
      %v384 = vunpack.c.2.s8 %v344
      %v385 = vunpack.c.2.s8 %v345
      %v386 = vunpack.c.2.s8 %v346
      %v387 = vunpack.c.2.s8 %v347
      %v388 = vunpack.c.3.s8 %v344
      %v389 = vunpack.c.3.s8 %v345
      %v390 = vunpack.c.3.s8 %v346
      %v391 = vunpack.c.3.s8 %v347
      %v392 = vunpack.c.0.s8 %v348
      %v393 = vunpack.c.0.s8 %v349
      %v394 = vunpack.c.0.s8 %v350
      %v395 = vunpack.c.0.s8 %v351
      %v396 = vunpack.c.1.s8 %v348
      %v397 = vunpack.c.1.s8 %v349
      %v398 = vunpack.c.1.s8 %v350
      %v399 = vunpack.c.1.s8 %v351
      %v400 = vunpack.c.2.s8 %v348
      %v401 = vunpack.c.2.s8 %v349
      %v402 = vunpack.c.2.s8 %v350
      %v403 = vunpack.c.2.s8 %v351
      %v404 = vunpack.c.3.s8 %v348
      %v405 = vunpack.c.3.s8 %v349
      %v406 = vunpack.c.3.s8 %v350
      %v407 = vunpack.c.3.s8 %v351
      %v408 = vunpack.c.0.s8 %v352
      %v409 = vunpack.c.0.s8 %v353
      %v410 = vunpack.c.0.s8 %v354
      %v411 = vunpack.c.0.s8 %v355
      %v412 = vunpack.c.1.s8 %v352
      %v413 = vunpack.c.1.s8 %v353
      %v414 = vunpack.c.1.s8 %v354
      %v415 = vunpack.c.1.s8 %v355
      %v416 = vunpack.c.2.s8 %v352
      %v417 = vunpack.c.2.s8 %v353
      %v418 = vunpack.c.2.s8 %v354
      %v419 = vunpack.c.2.s8 %v355
      %v420 = vunpack.c.3.s8 %v352
      %v421 = vunpack.c.3.s8 %v353
      %v422 = vunpack.c.3.s8 %v354
      %v423 = vunpack.c.3.s8 %v355
      %v424 = vunpack.c.0.s8 %v356
      %v425 = vunpack.c.0.s8 %v357
      %v426 = vunpack.c.0.s8 %v358
      %v427 = vunpack.c.0.s8 %v359
      %v428 = vunpack.c.1.s8 %v356
      %v429 = vunpack.c.1.s8 %v357
      %v430 = vunpack.c.1.s8 %v358
      %v431 = vunpack.c.1.s8 %v359
      %v432 = vunpack.c.2.s8 %v356
      %v433 = vunpack.c.2.s8 %v357
      %v434 = vunpack.c.2.s8 %v358
      %v435 = vunpack.c.2.s8 %v359
      %v436 = vunpack.c.3.s8 %v356
      %v437 = vunpack.c.3.s8 %v357
      %v438 = vunpack.c.3.s8 %v358
      %v439 = vunpack.c.3.s8 %v359
      %v440 = vunpack.c.0.s8 %v360
      %v441 = vunpack.c.0.s8 %v361
      %v442 = vunpack.c.0.s8 %v362
      %v443 = vunpack.c.0.s8 %v363
      %v444 = vunpack.c.1.s8 %v360
      %v445 = vunpack.c.1.s8 %v361
      %v446 = vunpack.c.1.s8 %v362
      %v447 = vunpack.c.1.s8 %v363
      %v448 = vunpack.c.2.s8 %v360
      %v449 = vunpack.c.2.s8 %v361
      %v450 = vunpack.c.2.s8 %v362
      %v451 = vunpack.c.2.s8 %v363
      %v452 = vunpack.c.3.s8 %v360
      %v453 = vunpack.c.3.s8 %v361
      %v454 = vunpack.c.3.s8 %v362
      %v455 = vunpack.c.3.s8 %v363
      %v456 = vunpack.c.0.s8 %v364
      %v457 = vunpack.c.0.s8 %v365
      %v458 = vunpack.c.0.s8 %v366
      %v459 = vunpack.c.0.s8 %v367
      %v460 = vunpack.c.1.s8 %v364
      %v461 = vunpack.c.1.s8 %v365
      %v462 = vunpack.c.1.s8 %v366
      %v463 = vunpack.c.1.s8 %v367
      %v464 = vunpack.c.2.s8 %v364
      %v465 = vunpack.c.2.s8 %v365
      %v466 = vunpack.c.2.s8 %v366
      %v467 = vunpack.c.2.s8 %v367
      %v468 = vunpack.c.3.s8 %v364
      %v469 = vunpack.c.3.s8 %v365
      %v470 = vunpack.c.3.s8 %v366
      %v471 = vunpack.c.3.s8 %v367
      %v472 = vunpack.c.0.s8 %v368
      %v473 = vunpack.c.0.s8 %v369
      %v474 = vunpack.c.0.s8 %v370
      %v475 = vunpack.c.0.s8 %v371
      %v476 = vunpack.c.1.s8 %v368
      %v477 = vunpack.c.1.s8 %v369
      %v478 = vunpack.c.1.s8 %v370
      %v479 = vunpack.c.1.s8 %v371
      %v480 = vunpack.c.2.s8 %v368
      %v481 = vunpack.c.2.s8 %v369
      %v482 = vunpack.c.2.s8 %v370
      %v483 = vunpack.c.2.s8 %v371
      %v484 = vunpack.c.3.s8 %v368
      %v485 = vunpack.c.3.s8 %v369
      %v486 = vunpack.c.3.s8 %v370
      %v487 = vunpack.c.3.s8 %v371
      %v488 = vunpack.c.0.s8 %v372
      %v489 = vunpack.c.0.s8 %v373
      %v490 = vunpack.c.0.s8 %v374
      %v491 = vunpack.c.0.s8 %v375
      %v492 = vunpack.c.1.s8 %v372
      %v493 = vunpack.c.1.s8 %v373
      %v494 = vunpack.c.1.s8 %v374
      %v495 = vunpack.c.1.s8 %v375
      %v496 = vunpack.c.2.s8 %v372
      %v497 = vunpack.c.2.s8 %v373
      %v498 = vunpack.c.2.s8 %v374
      %v499 = vunpack.c.2.s8 %v375
      %v500 = vunpack.c.3.s8 %v372
      %v501 = vunpack.c.3.s8 %v373
      %v502 = vunpack.c.3.s8 %v374
      %v503 = vunpack.c.3.s8 %v375
      %v504 = vcvt.s32.f32 %v376
      %v505 = vcvt.s32.f32 %v377
      %v506 = vcvt.s32.f32 %v378
      %v507 = vcvt.s32.f32 %v379
      %v508 = vcvt.s32.f32 %v380
      %v509 = vcvt.s32.f32 %v381
      %v510 = vcvt.s32.f32 %v382
      %v511 = vcvt.s32.f32 %v383
      %v512 = vcvt.s32.f32 %v384
      %v513 = vcvt.s32.f32 %v385
      %v514 = vcvt.s32.f32 %v386
      %v515 = vcvt.s32.f32 %v387
      %v516 = vcvt.s32.f32 %v388
      %v517 = vcvt.s32.f32 %v389
      %v518 = vcvt.s32.f32 %v390
      %v519 = vcvt.s32.f32 %v391
      %v520 = vcvt.s32.f32 %v392
      %v521 = vcvt.s32.f32 %v393
      %v522 = vcvt.s32.f32 %v394
      %v523 = vcvt.s32.f32 %v395
      %v524 = vcvt.s32.f32 %v396
      %v525 = vcvt.s32.f32 %v397
      %v526 = vcvt.s32.f32 %v398
      %v527 = vcvt.s32.f32 %v399
      %v528 = vcvt.s32.f32 %v400
      %v529 = vcvt.s32.f32 %v401
      %v530 = vcvt.s32.f32 %v402
      %v531 = vcvt.s32.f32 %v403
      %v532 = vcvt.s32.f32 %v404
      %v533 = vcvt.s32.f32 %v405
      %v534 = vcvt.s32.f32 %v406
      %v535 = vcvt.s32.f32 %v407
      %v536 = vcvt.s32.f32 %v408
      %v537 = vcvt.s32.f32 %v409
      %v538 = vcvt.s32.f32 %v410
      %v539 = vcvt.s32.f32 %v411
      %v540 = vcvt.s32.f32 %v412
      %v541 = vcvt.s32.f32 %v413
      %v542 = vcvt.s32.f32 %v414
      %v543 = vcvt.s32.f32 %v415
      %v544 = vcvt.s32.f32 %v416
      %v545 = vcvt.s32.f32 %v417
      %v546 = vcvt.s32.f32 %v418
      %v547 = vcvt.s32.f32 %v419
      %v548 = vcvt.s32.f32 %v420
      %v549 = vcvt.s32.f32 %v421
      %v550 = vcvt.s32.f32 %v422
      %v551 = vcvt.s32.f32 %v423
      %v552 = vcvt.s32.f32 %v424
      %v553 = vcvt.s32.f32 %v425
      %v554 = vcvt.s32.f32 %v426
      %v555 = vcvt.s32.f32 %v427
      %v556 = vcvt.s32.f32 %v428
      %v557 = vcvt.s32.f32 %v429
      %v558 = vcvt.s32.f32 %v430
      %v559 = vcvt.s32.f32 %v431
      %v560 = vcvt.s32.f32 %v432
      %v561 = vcvt.s32.f32 %v433
      %v562 = vcvt.s32.f32 %v434
      %v563 = vcvt.s32.f32 %v435
      %v564 = vcvt.s32.f32 %v436
      %v565 = vcvt.s32.f32 %v437
      %v566 = vcvt.s32.f32 %v438
      %v567 = vcvt.s32.f32 %v439
      %v568 = vcvt.s32.f32 %v440
      %v569 = vcvt.s32.f32 %v441
      %v570 = vcvt.s32.f32 %v442
      %v571 = vcvt.s32.f32 %v443
      %v572 = vcvt.s32.f32 %v444
      %v573 = vcvt.s32.f32 %v445
      %v574 = vcvt.s32.f32 %v446
      %v575 = vcvt.s32.f32 %v447
      %v576 = vcvt.s32.f32 %v448
      %v577 = vcvt.s32.f32 %v449
      %v578 = vcvt.s32.f32 %v450
      %v579 = vcvt.s32.f32 %v451
      %v580 = vcvt.s32.f32 %v452
      %v581 = vcvt.s32.f32 %v453
      %v582 = vcvt.s32.f32 %v454
      %v583 = vcvt.s32.f32 %v455
      %v584 = vcvt.s32.f32 %v456
      %v585 = vcvt.s32.f32 %v457
      %v586 = vcvt.s32.f32 %v458
      %v587 = vcvt.s32.f32 %v459
      %v588 = vcvt.s32.f32 %v460
      %v589 = vcvt.s32.f32 %v461
      %v590 = vcvt.s32.f32 %v462
      %v591 = vcvt.s32.f32 %v463
      %v592 = vcvt.s32.f32 %v464
      %v593 = vcvt.s32.f32 %v465
      %v594 = vcvt.s32.f32 %v466
      %v595 = vcvt.s32.f32 %v467
      %v596 = vcvt.s32.f32 %v468
      %v597 = vcvt.s32.f32 %v469
      %v598 = vcvt.s32.f32 %v470
      %v599 = vcvt.s32.f32 %v471
      %v600 = vcvt.s32.f32 %v472
      %v601 = vcvt.s32.f32 %v473
      %v602 = vcvt.s32.f32 %v474
      %v603 = vcvt.s32.f32 %v475
      %v604 = vcvt.s32.f32 %v476
      %v605 = vcvt.s32.f32 %v477
      %v606 = vcvt.s32.f32 %v478
      %v607 = vcvt.s32.f32 %v479
      %v608 = vcvt.s32.f32 %v480
      %v609 = vcvt.s32.f32 %v481
      %v610 = vcvt.s32.f32 %v482
      %v611 = vcvt.s32.f32 %v483
      %v612 = vcvt.s32.f32 %v484
      %v613 = vcvt.s32.f32 %v485
      %v614 = vcvt.s32.f32 %v486
      %v615 = vcvt.s32.f32 %v487
      %v616 = vcvt.s32.f32 %v488
      %v617 = vcvt.s32.f32 %v489
      %v618 = vcvt.s32.f32 %v490
      %v619 = vcvt.s32.f32 %v491
      %v620 = vcvt.s32.f32 %v492
      %v621 = vcvt.s32.f32 %v493
      %v622 = vcvt.s32.f32 %v494
      %v623 = vcvt.s32.f32 %v495
      %v624 = vcvt.s32.f32 %v496
      %v625 = vcvt.s32.f32 %v497
      %v626 = vcvt.s32.f32 %v498
      %v627 = vcvt.s32.f32 %v499
      %v628 = vcvt.s32.f32 %v500
      %v629 = vcvt.s32.f32 %v501
      %v630 = vcvt.s32.f32 %v502
      %v631 = vcvt.s32.f32 %v503
      %v632 = vpack.c.bf16 %v508, %v504
      %v633 = vpack.c.bf16 %v509, %v505
      %v634 = vpack.c.bf16 %v510, %v506
      %v635 = vpack.c.bf16 %v511, %v507
      %v636 = vpack.c.bf16 %v516, %v512
      %v637 = vpack.c.bf16 %v517, %v513
      %v638 = vpack.c.bf16 %v518, %v514
      %v639 = vpack.c.bf16 %v519, %v515
      %v640 = vpack.c.bf16 %v524, %v520
      %v641 = vpack.c.bf16 %v525, %v521
      %v642 = vpack.c.bf16 %v526, %v522
      %v643 = vpack.c.bf16 %v527, %v523
      %v644 = vpack.c.bf16 %v532, %v528
      %v645 = vpack.c.bf16 %v533, %v529
      %v646 = vpack.c.bf16 %v534, %v530
      %v647 = vpack.c.bf16 %v535, %v531
      %v648 = vpack.c.bf16 %v540, %v536
      %v649 = vpack.c.bf16 %v541, %v537
      %v650 = vpack.c.bf16 %v542, %v538
      %v651 = vpack.c.bf16 %v543, %v539
      %v652 = vpack.c.bf16 %v548, %v544
      %v653 = vpack.c.bf16 %v549, %v545
      %v654 = vpack.c.bf16 %v550, %v546
      %v655 = vpack.c.bf16 %v551, %v547
      %v656 = vpack.c.bf16 %v556, %v552
      %v657 = vpack.c.bf16 %v557, %v553
      %v658 = vpack.c.bf16 %v558, %v554
      %v659 = vpack.c.bf16 %v559, %v555
      %v660 = vpack.c.bf16 %v564, %v560
      %v661 = vpack.c.bf16 %v565, %v561
      %v662 = vpack.c.bf16 %v566, %v562
      %v663 = vpack.c.bf16 %v567, %v563
      %v664 = vpack.c.bf16 %v572, %v568
      %v665 = vpack.c.bf16 %v573, %v569
      %v666 = vpack.c.bf16 %v574, %v570
      %v667 = vpack.c.bf16 %v575, %v571
      %v668 = vpack.c.bf16 %v580, %v576
      %v669 = vpack.c.bf16 %v581, %v577
      %v670 = vpack.c.bf16 %v582, %v578
      %v671 = vpack.c.bf16 %v583, %v579
      %v672 = vpack.c.bf16 %v588, %v584
      %v673 = vpack.c.bf16 %v589, %v585
      %v674 = vpack.c.bf16 %v590, %v586
      %v675 = vpack.c.bf16 %v591, %v587
      %v676 = vpack.c.bf16 %v596, %v592
      %v677 = vpack.c.bf16 %v597, %v593
      %v678 = vpack.c.bf16 %v598, %v594
      %v679 = vpack.c.bf16 %v599, %v595
      %v680 = vpack.c.bf16 %v604, %v600
      %v681 = vpack.c.bf16 %v605, %v601
      %v682 = vpack.c.bf16 %v606, %v602
      %v683 = vpack.c.bf16 %v607, %v603
      %v684 = vpack.c.bf16 %v612, %v608
      %v685 = vpack.c.bf16 %v613, %v609
      %v686 = vpack.c.bf16 %v614, %v610
      %v687 = vpack.c.bf16 %v615, %v611
      %v688 = vpack.c.bf16 %v620, %v616
      %v689 = vpack.c.bf16 %v621, %v617
      %v690 = vpack.c.bf16 %v622, %v618
      %v691 = vpack.c.bf16 %v623, %v619
      %v692 = vpack.c.bf16 %v628, %v624
      %v693 = vpack.c.bf16 %v629, %v625
      %v694 = vpack.c.bf16 %v630, %v626
      %v695 = vpack.c.bf16 %v631, %v627
      %v696 = vld [vmem:[%s268] sm:$0xf]
      %v697 = vld [vmem:[%s268 + $0x4] sm:$0xf]
      %v698 = vld [vmem:[%s268 + $0x8] sm:$0xf]
      %v699 = vld [vmem:[%s268 + $0xc] sm:$0xf]
      %v700 = vld [vmem:[%s268 + $0x10] sm:$0xf]
      %v701 = vld [vmem:[%s268 + $0x14] sm:$0xf]
      %v702 = vld [vmem:[%s268 + $0x18] sm:$0xf]
      %v703 = vld [vmem:[%s268 + $0x1c] sm:$0xf]
      %v704 = vld [vmem:[%s268 + $0x20] sm:$0xf]
      %v705 = vld [vmem:[%s268 + $0x24] sm:$0xf]
      %v706 = vld [vmem:[%s268 + $0x28] sm:$0xf]
      %v707 = vld [vmem:[%s268 + $0x2c] sm:$0xf]
      %v708 = vld [vmem:[%s268 + $0x30] sm:$0xf]
      %v709 = vld [vmem:[%s268 + $0x34] sm:$0xf]
      %v710 = vld [vmem:[%s268 + $0x38] sm:$0xf]
      %v711 = vld [vmem:[%s268 + $0x3c] sm:$0xf]
      %v712 = vld [vmem:[%s268 + $0x40] sm:$0xf]
      %v713 = vld [vmem:[%s268 + $0x44] sm:$0xf]
      %v714 = vld [vmem:[%s268 + $0x48] sm:$0xf]
      %v715 = vld [vmem:[%s268 + $0x4c] sm:$0xf]
      %v716 = vld [vmem:[%s268 + $0x50] sm:$0xf]
      %v717 = vld [vmem:[%s268 + $0x54] sm:$0xf]
      %v718 = vld [vmem:[%s268 + $0x58] sm:$0xf]
      %v719 = vld [vmem:[%s268 + $0x5c] sm:$0xf]
      %v720 = vld [vmem:[%s268 + $0x60] sm:$0xf]
      %v721 = vld [vmem:[%s268 + $0x64] sm:$0xf]
      %v722 = vld [vmem:[%s268 + $0x68] sm:$0xf]
      %v723 = vld [vmem:[%s268 + $0x6c] sm:$0xf]
      %v724 = vld [vmem:[%s268 + $0x70] sm:$0xf]
      %v725 = vld [vmem:[%s268 + $0x74] sm:$0xf]
      %v726 = vld [vmem:[%s268 + $0x78] sm:$0xf]
      %v727 = vld [vmem:[%s268 + $0x7c] sm:$0xf]
      %v728 = vld [vmem:[%s268 + $0x80] sm:$0xf]
      %v729 = vld [vmem:[%s268 + $0x84] sm:$0xf]
      %v730 = vld [vmem:[%s268 + $0x88] sm:$0xf]
      %v731 = vld [vmem:[%s268 + $0x8c] sm:$0xf]
      %v732 = vld [vmem:[%s268 + $0x90] sm:$0xf]
      %v733 = vld [vmem:[%s268 + $0x94] sm:$0xf]
      %v734 = vld [vmem:[%s268 + $0x98] sm:$0xf]
      %v735 = vld [vmem:[%s268 + $0x9c] sm:$0xf]
      %v736 = vld [vmem:[%s268 + $0xa0] sm:$0xf]
      %v737 = vld [vmem:[%s268 + $0xa4] sm:$0xf]
      %v738 = vld [vmem:[%s268 + $0xa8] sm:$0xf]
      %v739 = vld [vmem:[%s268 + $0xac] sm:$0xf]
      %v740 = vld [vmem:[%s268 + $0xb0] sm:$0xf]
      %v741 = vld [vmem:[%s268 + $0xb4] sm:$0xf]
      %v742 = vld [vmem:[%s268 + $0xb8] sm:$0xf]
      %v743 = vld [vmem:[%s268 + $0xbc] sm:$0xf]
      %v744 = vld [vmem:[%s268 + $0xc0] sm:$0xf]
      %v745 = vld [vmem:[%s268 + $0xc4] sm:$0xf]
      %v746 = vld [vmem:[%s268 + $0xc8] sm:$0xf]
      %v747 = vld [vmem:[%s268 + $0xcc] sm:$0xf]
      %v748 = vld [vmem:[%s268 + $0xd0] sm:$0xf]
      %v749 = vld [vmem:[%s268 + $0xd4] sm:$0xf]
      %v750 = vld [vmem:[%s268 + $0xd8] sm:$0xf]
      %v751 = vld [vmem:[%s268 + $0xdc] sm:$0xf]
      %v752 = vld [vmem:[%s268 + $0xe0] sm:$0xf]
      %v753 = vld [vmem:[%s268 + $0xe4] sm:$0xf]
      %v754 = vld [vmem:[%s268 + $0xe8] sm:$0xf]
      %v755 = vld [vmem:[%s268 + $0xec] sm:$0xf]
      %v756 = vld [vmem:[%s268 + $0xf0] sm:$0xf]
      %v757 = vld [vmem:[%s268 + $0xf4] sm:$0xf]
      %v758 = vld [vmem:[%s268 + $0xf8] sm:$0xf]
      %v759 = vld [vmem:[%s268 + $0xfc] sm:$0xf]
      %v824 = vunpack.c.l.b16 %v696
      %v825 = vunpack.c.l.b16 %v697
      %v826 = vunpack.c.l.b16 %v698
      %v827 = vunpack.c.l.b16 %v699
      %v828 = vunpack.c.l.b16 %v700
      %v829 = vunpack.c.l.b16 %v701
      %v830 = vunpack.c.l.b16 %v702
      %v831 = vunpack.c.l.b16 %v703
      %v832 = vunpack.c.l.b16 %v704
      %v833 = vunpack.c.l.b16 %v705
      %v834 = vunpack.c.l.b16 %v706
      %v835 = vunpack.c.l.b16 %v707
      %v836 = vunpack.c.l.b16 %v708
      %v837 = vunpack.c.l.b16 %v709
      %v838 = vunpack.c.l.b16 %v710
      %v839 = vunpack.c.l.b16 %v711
      %v840 = vunpack.c.l.b16 %v712
      %v841 = vunpack.c.l.b16 %v713
      %v842 = vunpack.c.l.b16 %v714
      %v843 = vunpack.c.l.b16 %v715
      %v844 = vunpack.c.l.b16 %v716
      %v845 = vunpack.c.l.b16 %v717
      %v846 = vunpack.c.l.b16 %v718
      %v847 = vunpack.c.l.b16 %v719
      %v848 = vunpack.c.l.b16 %v720
      %v849 = vunpack.c.l.b16 %v721
      %v850 = vunpack.c.l.b16 %v722
      %v851 = vunpack.c.l.b16 %v723
      %v852 = vunpack.c.l.b16 %v724
      %v853 = vunpack.c.l.b16 %v725
      %v854 = vunpack.c.l.b16 %v726
      %v855 = vunpack.c.l.b16 %v727
      %v856 = vunpack.c.l.b16 %v728
      %v857 = vunpack.c.l.b16 %v729
      %v858 = vunpack.c.l.b16 %v730
      %v859 = vunpack.c.l.b16 %v731
      %v860 = vunpack.c.l.b16 %v732
      %v861 = vunpack.c.l.b16 %v733
      %v862 = vunpack.c.l.b16 %v734
      %v863 = vunpack.c.l.b16 %v735
      %v864 = vunpack.c.l.b16 %v736
      %v865 = vunpack.c.l.b16 %v737
      %v866 = vunpack.c.l.b16 %v738
      %v867 = vunpack.c.l.b16 %v739
      %v868 = vunpack.c.l.b16 %v740
      %v869 = vunpack.c.l.b16 %v741
      %v870 = vunpack.c.l.b16 %v742
      %v871 = vunpack.c.l.b16 %v743
      %v872 = vunpack.c.l.b16 %v744
      %v873 = vunpack.c.l.b16 %v745
      %v874 = vunpack.c.l.b16 %v746
      %v875 = vunpack.c.l.b16 %v747
      %v876 = vunpack.c.l.b16 %v748
      %v877 = vunpack.c.l.b16 %v749
      %v878 = vunpack.c.l.b16 %v750
      %v879 = vunpack.c.l.b16 %v751
      %v880 = vunpack.c.l.b16 %v752
      %v881 = vunpack.c.l.b16 %v753
      %v882 = vunpack.c.l.b16 %v754
      %v883 = vunpack.c.l.b16 %v755
      %v884 = vunpack.c.l.b16 %v756
      %v885 = vunpack.c.l.b16 %v757
      %v886 = vunpack.c.l.b16 %v758
      %v887 = vunpack.c.l.b16 %v759
      %v888 = vpack.c.b16 %v825, %v824
      %v889 = vpack.c.b16 %v827, %v826
      %v890 = vpack.c.b16 %v829, %v828
      %v891 = vpack.c.b16 %v831, %v830
      %v892 = vpack.c.b16 %v833, %v832
      %v893 = vpack.c.b16 %v835, %v834
      %v894 = vpack.c.b16 %v837, %v836
      %v895 = vpack.c.b16 %v839, %v838
      %v896 = vpack.c.b16 %v841, %v840
      %v897 = vpack.c.b16 %v843, %v842
      %v898 = vpack.c.b16 %v845, %v844
      %v899 = vpack.c.b16 %v847, %v846
      %v900 = vpack.c.b16 %v849, %v848
      %v901 = vpack.c.b16 %v851, %v850
      %v902 = vpack.c.b16 %v853, %v852
      %v903 = vpack.c.b16 %v855, %v854
      %v904 = vpack.c.b16 %v857, %v856
      %v905 = vpack.c.b16 %v859, %v858
      %v906 = vpack.c.b16 %v861, %v860
      %v907 = vpack.c.b16 %v863, %v862
      %v908 = vpack.c.b16 %v865, %v864
      %v909 = vpack.c.b16 %v867, %v866
      %v910 = vpack.c.b16 %v869, %v868
      %v911 = vpack.c.b16 %v871, %v870
      %v912 = vpack.c.b16 %v873, %v872
      %v913 = vpack.c.b16 %v875, %v874
      %v914 = vpack.c.b16 %v877, %v876
      %v915 = vpack.c.b16 %v879, %v878
      %v916 = vpack.c.b16 %v881, %v880
      %v917 = vpack.c.b16 %v883, %v882
      %v918 = vpack.c.b16 %v885, %v884
      %v919 = vpack.c.b16 %v887, %v886
      %952 = vmatpush.bf16.msra.mxu0 %v895
      %953 = vmatpush.bf16.msra.mxu0 %v894
      %954 = vmatpush.bf16.msra.mxu0 %v893
      %955 = vmatpush.bf16.msra.mxu0 %v892
      %956 = vmatpush.bf16.msra.mxu0 %v891
      %957 = vmatpush.bf16.msra.mxu0 %v890
      %958 = vmatpush.bf16.msra.mxu0 %v889
      %959 = vmatpush.bf16.msra.mxu0 %v888
      %960 = vmatmul.bf16.gmra.mxu0 %v632
      %v961 = vpop.f32.mrf.mxu0
      %v962 = vadd.f32 0.0, %v961
      %v963 = vpop.f32.mrf.mxu0
      %v964 = vadd.f32 0.0, %v963
      %965 = vmatmul.bf16.gmra.mxu0 %v636
      %v966 = vpop.f32.mrf.mxu0
      %v967 = vadd.f32 0.0, %v966
      %v968 = vpop.f32.mrf.mxu0
      %v969 = vadd.f32 0.0, %v968
      %970 = vmatmul.bf16.gmra.mxu0 %v640
      %v971 = vpop.f32.mrf.mxu0
      %v972 = vadd.f32 0.0, %v971
      %v973 = vpop.f32.mrf.mxu0
      %v974 = vadd.f32 0.0, %v973
      %975 = vmatmul.bf16.gmra.mxu0 %v644
      %v976 = vpop.f32.mrf.mxu0
      %v977 = vadd.f32 0.0, %v976
      %v978 = vpop.f32.mrf.mxu0
      %v979 = vadd.f32 0.0, %v978
      %980 = vmatmul.bf16.gmra.mxu0 %v648
      %v981 = vpop.f32.mrf.mxu0
      %v982 = vadd.f32 0.0, %v981
      %v983 = vpop.f32.mrf.mxu0
      %v984 = vadd.f32 0.0, %v983
      %985 = vmatmul.bf16.gmra.mxu0 %v652
      %v986 = vpop.f32.mrf.mxu0
      %v987 = vadd.f32 0.0, %v986
      %v988 = vpop.f32.mrf.mxu0
      %v989 = vadd.f32 0.0, %v988
      %990 = vmatmul.bf16.gmra.mxu0 %v656
      %v991 = vpop.f32.mrf.mxu0
      %v992 = vadd.f32 0.0, %v991
      %v993 = vpop.f32.mrf.mxu0
      %v994 = vadd.f32 0.0, %v993
      %995 = vmatmul.bf16.gmra.mxu0 %v660
      %v996 = vpop.f32.mrf.mxu0
      %v997 = vadd.f32 0.0, %v996
      %v998 = vpop.f32.mrf.mxu0
      %v999 = vadd.f32 0.0, %v998
      %1000 = vmatmul.bf16.gmra.mxu0 %v664
      %v1001 = vpop.f32.mrf.mxu0
      %v1002 = vadd.f32 0.0, %v1001
      %v1003 = vpop.f32.mrf.mxu0
      %v1004 = vadd.f32 0.0, %v1003
      %1005 = vmatmul.bf16.gmra.mxu0 %v668
      %v1006 = vpop.f32.mrf.mxu0
      %v1007 = vadd.f32 0.0, %v1006
      %v1008 = vpop.f32.mrf.mxu0
      %v1009 = vadd.f32 0.0, %v1008
      %1010 = vmatmul.bf16.gmra.mxu0 %v672
      %v1011 = vpop.f32.mrf.mxu0
      %v1012 = vadd.f32 0.0, %v1011
      %v1013 = vpop.f32.mrf.mxu0
      %v1014 = vadd.f32 0.0, %v1013
      %1015 = vmatmul.bf16.gmra.mxu0 %v676
      %v1016 = vpop.f32.mrf.mxu0
      %v1017 = vadd.f32 0.0, %v1016
      %v1018 = vpop.f32.mrf.mxu0
      %v1019 = vadd.f32 0.0, %v1018
      %1020 = vmatmul.bf16.gmra.mxu0 %v680
      %v1021 = vpop.f32.mrf.mxu0
      %v1022 = vadd.f32 0.0, %v1021
      %v1023 = vpop.f32.mrf.mxu0
      %v1024 = vadd.f32 0.0, %v1023
      %1025 = vmatmul.bf16.gmra.mxu0 %v684
      %v1026 = vpop.f32.mrf.mxu0
      %v1027 = vadd.f32 0.0, %v1026
      %v1028 = vpop.f32.mrf.mxu0
      %v1029 = vadd.f32 0.0, %v1028
      %1030 = vmatmul.bf16.gmra.mxu0 %v688
      %v1031 = vpop.f32.mrf.mxu0
      %v1032 = vadd.f32 0.0, %v1031
      %v1033 = vpop.f32.mrf.mxu0
      %v1034 = vadd.f32 0.0, %v1033
      %1035 = vmatmul.bf16.gmra.mxu0 %v692
      %v1036 = vpop.f32.mrf.mxu0
      %v1037 = vadd.f32 0.0, %v1036
      %v1038 = vpop.f32.mrf.mxu0
      %v1039 = vadd.f32 0.0, %v1038
      %1040 = vdwg.mxu0
      %1041 = vmatpush.bf16.msra.mxu0 %v903
      %1042 = vmatpush.bf16.msra.mxu0 %v902
      %1043 = vmatpush.bf16.msra.mxu0 %v901
      %1044 = vmatpush.bf16.msra.mxu0 %v900
      %1045 = vmatpush.bf16.msra.mxu0 %v899
      %1046 = vmatpush.bf16.msra.mxu0 %v898
      %1047 = vmatpush.bf16.msra.mxu0 %v897
      %1048 = vmatpush.bf16.msra.mxu0 %v896
      %1049 = vmatmul.bf16.gmra.mxu0 %v633
      %v1050 = vpop.f32.mrf.mxu0
      %v1051 = vadd.f32 %v962, %v1050
      %v1052 = vpop.f32.mrf.mxu0
      %v1053 = vadd.f32 %v964, %v1052
      %1054 = vmatmul.bf16.gmra.mxu0 %v637
      %v1055 = vpop.f32.mrf.mxu0
      %v1056 = vadd.f32 %v967, %v1055
      %v1057 = vpop.f32.mrf.mxu0
      %v1058 = vadd.f32 %v969, %v1057
      %1059 = vmatmul.bf16.gmra.mxu0 %v641
      %v1060 = vpop.f32.mrf.mxu0
      %v1061 = vadd.f32 %v972, %v1060
      %v1062 = vpop.f32.mrf.mxu0
      %v1063 = vadd.f32 %v974, %v1062
      %1064 = vmatmul.bf16.gmra.mxu0 %v645
      %v1065 = vpop.f32.mrf.mxu0
      %v1066 = vadd.f32 %v977, %v1065
      %v1067 = vpop.f32.mrf.mxu0
      %v1068 = vadd.f32 %v979, %v1067
      %1069 = vmatmul.bf16.gmra.mxu0 %v649
      %v1070 = vpop.f32.mrf.mxu0
      %v1071 = vadd.f32 %v982, %v1070
      %v1072 = vpop.f32.mrf.mxu0
      %v1073 = vadd.f32 %v984, %v1072
      %1074 = vmatmul.bf16.gmra.mxu0 %v653
      %v1075 = vpop.f32.mrf.mxu0
      %v1076 = vadd.f32 %v987, %v1075
      %v1077 = vpop.f32.mrf.mxu0
      %v1078 = vadd.f32 %v989, %v1077
      %1079 = vmatmul.bf16.gmra.mxu0 %v657
      %v1080 = vpop.f32.mrf.mxu0
      %v1081 = vadd.f32 %v992, %v1080
      %v1082 = vpop.f32.mrf.mxu0
      %v1083 = vadd.f32 %v994, %v1082
      %1084 = vmatmul.bf16.gmra.mxu0 %v661
      %v1085 = vpop.f32.mrf.mxu0
      %v1086 = vadd.f32 %v997, %v1085
      %v1087 = vpop.f32.mrf.mxu0
      %v1088 = vadd.f32 %v999, %v1087
      %1089 = vmatmul.bf16.gmra.mxu0 %v665
      %v1090 = vpop.f32.mrf.mxu0
      %v1091 = vadd.f32 %v1002, %v1090
      %v1092 = vpop.f32.mrf.mxu0
      %v1093 = vadd.f32 %v1004, %v1092
      %1094 = vmatmul.bf16.gmra.mxu0 %v669
      %v1095 = vpop.f32.mrf.mxu0
      %v1096 = vadd.f32 %v1007, %v1095
      %v1097 = vpop.f32.mrf.mxu0
      %v1098 = vadd.f32 %v1009, %v1097
      %1099 = vmatmul.bf16.gmra.mxu0 %v673
      %v1100 = vpop.f32.mrf.mxu0
      %v1101 = vadd.f32 %v1012, %v1100
      %v1102 = vpop.f32.mrf.mxu0
      %v1103 = vadd.f32 %v1014, %v1102
      %1104 = vmatmul.bf16.gmra.mxu0 %v677
      %v1105 = vpop.f32.mrf.mxu0
      %v1106 = vadd.f32 %v1017, %v1105
      %v1107 = vpop.f32.mrf.mxu0
      %v1108 = vadd.f32 %v1019, %v1107
      %1109 = vmatmul.bf16.gmra.mxu0 %v681
      %v1110 = vpop.f32.mrf.mxu0
      %v1111 = vadd.f32 %v1022, %v1110
      %v1112 = vpop.f32.mrf.mxu0
      %v1113 = vadd.f32 %v1024, %v1112
      %1114 = vmatmul.bf16.gmra.mxu0 %v685
      %v1115 = vpop.f32.mrf.mxu0
      %v1116 = vadd.f32 %v1027, %v1115
      %v1117 = vpop.f32.mrf.mxu0
      %v1118 = vadd.f32 %v1029, %v1117
      %1119 = vmatmul.bf16.gmra.mxu0 %v689
      %v1120 = vpop.f32.mrf.mxu0
      %v1121 = vadd.f32 %v1032, %v1120
      %v1122 = vpop.f32.mrf.mxu0
      %v1123 = vadd.f32 %v1034, %v1122
      %1124 = vmatmul.bf16.gmra.mxu0 %v693
      %v1125 = vpop.f32.mrf.mxu0
      %v1126 = vadd.f32 %v1037, %v1125
      %v1127 = vpop.f32.mrf.mxu0
      %v1128 = vadd.f32 %v1039, %v1127
      %1129 = vdwg.mxu0
      %1130 = vmatpush.bf16.msra.mxu0 %v911
      %1131 = vmatpush.bf16.msra.mxu0 %v910
      %1132 = vmatpush.bf16.msra.mxu0 %v909
      %1133 = vmatpush.bf16.msra.mxu0 %v908
      %1134 = vmatpush.bf16.msra.mxu0 %v907
      %1135 = vmatpush.bf16.msra.mxu0 %v906
      %1136 = vmatpush.bf16.msra.mxu0 %v905
      %1137 = vmatpush.bf16.msra.mxu0 %v904
      %1138 = vmatmul.bf16.gmra.mxu0 %v634
      %v1139 = vpop.f32.mrf.mxu0
      %v1140 = vadd.f32 %v1051, %v1139
      %v1141 = vpop.f32.mrf.mxu0
      %v1142 = vadd.f32 %v1053, %v1141
      %1143 = vmatmul.bf16.gmra.mxu0 %v638
      %v1144 = vpop.f32.mrf.mxu0
      %v1145 = vadd.f32 %v1056, %v1144
      %v1146 = vpop.f32.mrf.mxu0
      %v1147 = vadd.f32 %v1058, %v1146
      %1148 = vmatmul.bf16.gmra.mxu0 %v642
      %v1149 = vpop.f32.mrf.mxu0
      %v1150 = vadd.f32 %v1061, %v1149
      %v1151 = vpop.f32.mrf.mxu0
      %v1152 = vadd.f32 %v1063, %v1151
      %1153 = vmatmul.bf16.gmra.mxu0 %v646
      %v1154 = vpop.f32.mrf.mxu0
      %v1155 = vadd.f32 %v1066, %v1154
      %v1156 = vpop.f32.mrf.mxu0
      %v1157 = vadd.f32 %v1068, %v1156
      %1158 = vmatmul.bf16.gmra.mxu0 %v650
      %v1159 = vpop.f32.mrf.mxu0
      %v1160 = vadd.f32 %v1071, %v1159
      %v1161 = vpop.f32.mrf.mxu0
      %v1162 = vadd.f32 %v1073, %v1161
      %1163 = vmatmul.bf16.gmra.mxu0 %v654
      %v1164 = vpop.f32.mrf.mxu0
      %v1165 = vadd.f32 %v1076, %v1164
      %v1166 = vpop.f32.mrf.mxu0
      %v1167 = vadd.f32 %v1078, %v1166
      %1168 = vmatmul.bf16.gmra.mxu0 %v658
      %v1169 = vpop.f32.mrf.mxu0
      %v1170 = vadd.f32 %v1081, %v1169
      %v1171 = vpop.f32.mrf.mxu0
      %v1172 = vadd.f32 %v1083, %v1171
      %1173 = vmatmul.bf16.gmra.mxu0 %v662
      %v1174 = vpop.f32.mrf.mxu0
      %v1175 = vadd.f32 %v1086, %v1174
      %v1176 = vpop.f32.mrf.mxu0
      %v1177 = vadd.f32 %v1088, %v1176
      %1178 = vmatmul.bf16.gmra.mxu0 %v666
      %v1179 = vpop.f32.mrf.mxu0
      %v1180 = vadd.f32 %v1091, %v1179
      %v1181 = vpop.f32.mrf.mxu0
      %v1182 = vadd.f32 %v1093, %v1181
      %1183 = vmatmul.bf16.gmra.mxu0 %v670
      %v1184 = vpop.f32.mrf.mxu0
      %v1185 = vadd.f32 %v1096, %v1184
      %v1186 = vpop.f32.mrf.mxu0
      %v1187 = vadd.f32 %v1098, %v1186
      %1188 = vmatmul.bf16.gmra.mxu0 %v674
      %v1189 = vpop.f32.mrf.mxu0
      %v1190 = vadd.f32 %v1101, %v1189
      %v1191 = vpop.f32.mrf.mxu0
      %v1192 = vadd.f32 %v1103, %v1191
      %1193 = vmatmul.bf16.gmra.mxu0 %v678
      %v1194 = vpop.f32.mrf.mxu0
      %v1195 = vadd.f32 %v1106, %v1194
      %v1196 = vpop.f32.mrf.mxu0
      %v1197 = vadd.f32 %v1108, %v1196
      %1198 = vmatmul.bf16.gmra.mxu0 %v682
      %v1199 = vpop.f32.mrf.mxu0
      %v1200 = vadd.f32 %v1111, %v1199
      %v1201 = vpop.f32.mrf.mxu0
      %v1202 = vadd.f32 %v1113, %v1201
      %1203 = vmatmul.bf16.gmra.mxu0 %v686
      %v1204 = vpop.f32.mrf.mxu0
      %v1205 = vadd.f32 %v1116, %v1204
      %v1206 = vpop.f32.mrf.mxu0
      %v1207 = vadd.f32 %v1118, %v1206
      %1208 = vmatmul.bf16.gmra.mxu0 %v690
      %v1209 = vpop.f32.mrf.mxu0
      %v1210 = vadd.f32 %v1121, %v1209
      %v1211 = vpop.f32.mrf.mxu0
      %v1212 = vadd.f32 %v1123, %v1211
      %1213 = vmatmul.bf16.gmra.mxu0 %v694
      %v1214 = vpop.f32.mrf.mxu0
      %v1215 = vadd.f32 %v1126, %v1214
      %v1216 = vpop.f32.mrf.mxu0
      %v1217 = vadd.f32 %v1128, %v1216
      %1218 = vdwg.mxu0
      %1219 = vmatpush.bf16.msra.mxu0 %v919
      %1220 = vmatpush.bf16.msra.mxu0 %v918
      %1221 = vmatpush.bf16.msra.mxu0 %v917
      %1222 = vmatpush.bf16.msra.mxu0 %v916
      %1223 = vmatpush.bf16.msra.mxu0 %v915
      %1224 = vmatpush.bf16.msra.mxu0 %v914
      %1225 = vmatpush.bf16.msra.mxu0 %v913
      %1226 = vmatpush.bf16.msra.mxu0 %v912
      %1227 = vmatmul.bf16.gmra.mxu0 %v635
      %v1228 = vpop.f32.mrf.mxu0
      %v1229 = vadd.f32 %v1140, %v1228
      %v1230 = vpop.f32.mrf.mxu0
      %v1231 = vadd.f32 %v1142, %v1230
      %1232 = vmatmul.bf16.gmra.mxu0 %v639
      %v1233 = vpop.f32.mrf.mxu0
      %v1234 = vadd.f32 %v1145, %v1233
      %v1235 = vpop.f32.mrf.mxu0
      %v1236 = vadd.f32 %v1147, %v1235
      %1237 = vmatmul.bf16.gmra.mxu0 %v643
      %v1238 = vpop.f32.mrf.mxu0
      %v1239 = vadd.f32 %v1150, %v1238
      %v1240 = vpop.f32.mrf.mxu0
      %v1241 = vadd.f32 %v1152, %v1240
      %1242 = vmatmul.bf16.gmra.mxu0 %v647
      %v1243 = vpop.f32.mrf.mxu0
      %v1244 = vadd.f32 %v1155, %v1243
      %v1245 = vpop.f32.mrf.mxu0
      %v1246 = vadd.f32 %v1157, %v1245
      %1247 = vmatmul.bf16.gmra.mxu0 %v651
      %v1248 = vpop.f32.mrf.mxu0
      %v1249 = vadd.f32 %v1160, %v1248
      %v1250 = vpop.f32.mrf.mxu0
      %v1251 = vadd.f32 %v1162, %v1250
      %1252 = vmatmul.bf16.gmra.mxu0 %v655
      %v1253 = vpop.f32.mrf.mxu0
      %v1254 = vadd.f32 %v1165, %v1253
      %v1255 = vpop.f32.mrf.mxu0
      %v1256 = vadd.f32 %v1167, %v1255
      %1257 = vmatmul.bf16.gmra.mxu0 %v659
      %v1258 = vpop.f32.mrf.mxu0
      %v1259 = vadd.f32 %v1170, %v1258
      %v1260 = vpop.f32.mrf.mxu0
      %v1261 = vadd.f32 %v1172, %v1260
      %1262 = vmatmul.bf16.gmra.mxu0 %v663
      %v1263 = vpop.f32.mrf.mxu0
      %v1264 = vadd.f32 %v1175, %v1263
      %v1265 = vpop.f32.mrf.mxu0
      %v1266 = vadd.f32 %v1177, %v1265
      %1267 = vmatmul.bf16.gmra.mxu0 %v667
      %v1268 = vpop.f32.mrf.mxu0
      %v1269 = vadd.f32 %v1180, %v1268
      %v1270 = vpop.f32.mrf.mxu0
      %v1271 = vadd.f32 %v1182, %v1270
      %1272 = vmatmul.bf16.gmra.mxu0 %v671
      %v1273 = vpop.f32.mrf.mxu0
      %v1274 = vadd.f32 %v1185, %v1273
      %v1275 = vpop.f32.mrf.mxu0
      %v1276 = vadd.f32 %v1187, %v1275
      %1277 = vmatmul.bf16.gmra.mxu0 %v675
      %v1278 = vpop.f32.mrf.mxu0
      %v1279 = vadd.f32 %v1190, %v1278
      %v1280 = vpop.f32.mrf.mxu0
      %v1281 = vadd.f32 %v1192, %v1280
      %1282 = vmatmul.bf16.gmra.mxu0 %v679
      %v1283 = vpop.f32.mrf.mxu0
      %v1284 = vadd.f32 %v1195, %v1283
      %v1285 = vpop.f32.mrf.mxu0
      %v1286 = vadd.f32 %v1197, %v1285
      %1287 = vmatmul.bf16.gmra.mxu0 %v683
      %v1288 = vpop.f32.mrf.mxu0
      %v1289 = vadd.f32 %v1200, %v1288
      %v1290 = vpop.f32.mrf.mxu0
      %v1291 = vadd.f32 %v1202, %v1290
      %1292 = vmatmul.bf16.gmra.mxu0 %v687
      %v1293 = vpop.f32.mrf.mxu0
      %v1294 = vadd.f32 %v1205, %v1293
      %v1295 = vpop.f32.mrf.mxu0
      %v1296 = vadd.f32 %v1207, %v1295
      %1297 = vmatmul.bf16.gmra.mxu0 %v691
      %v1298 = vpop.f32.mrf.mxu0
      %v1299 = vadd.f32 %v1210, %v1298
      %v1300 = vpop.f32.mrf.mxu0
      %v1301 = vadd.f32 %v1212, %v1300
      %1302 = vmatmul.bf16.gmra.mxu0 %v695
      %v1303 = vpop.f32.mrf.mxu0
      %v1304 = vadd.f32 %v1215, %v1303
      %v1305 = vpop.f32.mrf.mxu0
      %v1306 = vadd.f32 %v1217, %v1305
      %1307 = vdwg.mxu0
      %v1308 = vadd.f32 %v312, %v1229
      %v1309 = vadd.f32 %v313, %v1231
      %v1310 = vadd.f32 %v314, %v1234
      %v1311 = vadd.f32 %v315, %v1236
      %v1312 = vadd.f32 %v316, %v1239
      %v1313 = vadd.f32 %v317, %v1241
      %v1314 = vadd.f32 %v318, %v1244
      %v1315 = vadd.f32 %v319, %v1246
      %v1316 = vadd.f32 %v320, %v1249
      %v1317 = vadd.f32 %v321, %v1251
      %v1318 = vadd.f32 %v322, %v1254
      %v1319 = vadd.f32 %v323, %v1256
      %v1320 = vadd.f32 %v324, %v1259
      %v1321 = vadd.f32 %v325, %v1261
      %v1322 = vadd.f32 %v326, %v1264
      %v1323 = vadd.f32 %v327, %v1266
      %v1324 = vadd.f32 %v328, %v1269
      %v1325 = vadd.f32 %v329, %v1271
      %v1326 = vadd.f32 %v330, %v1274
      %v1327 = vadd.f32 %v331, %v1276
      %v1328 = vadd.f32 %v332, %v1279
      %v1329 = vadd.f32 %v333, %v1281
      %v1330 = vadd.f32 %v334, %v1284
      %v1331 = vadd.f32 %v335, %v1286
      %v1332 = vadd.f32 %v336, %v1289
      %v1333 = vadd.f32 %v337, %v1291
      %v1334 = vadd.f32 %v338, %v1294
      %v1335 = vadd.f32 %v339, %v1296
      %v1336 = vadd.f32 %v340, %v1299
      %v1337 = vadd.f32 %v341, %v1301
      %v1338 = vadd.f32 %v342, %v1304
      %v1339 = vadd.f32 %v343, %v1306
      %1340 = vst [vmem:[#allocation2] sm:$0xff] %v1308
      %1341 = vst [vmem:[#allocation2 + $0x8] sm:$0xff] %v1309
      %1342 = vst [vmem:[#allocation2 + $0x10] sm:$0xff] %v1310
      %1343 = vst [vmem:[#allocation2 + $0x18] sm:$0xff] %v1311
      %1344 = vst [vmem:[#allocation2 + $0x20] sm:$0xff] %v1312
      %1345 = vst [vmem:[#allocation2 + $0x28] sm:$0xff] %v1313
      %1346 = vst [vmem:[#allocation2 + $0x30] sm:$0xff] %v1314
      %1347 = vst [vmem:[#allocation2 + $0x38] sm:$0xff] %v1315
      %1348 = vst [vmem:[#allocation2 + $0x40] sm:$0xff] %v1316
      %1349 = vst [vmem:[#allocation2 + $0x48] sm:$0xff] %v1317
      %1350 = vst [vmem:[#allocation2 + $0x50] sm:$0xff] %v1318
      %1351 = vst [vmem:[#allocation2 + $0x58] sm:$0xff] %v1319
      %1352 = vst [vmem:[#allocation2 + $0x60] sm:$0xff] %v1320
      %1353 = vst [vmem:[#allocation2 + $0x68] sm:$0xff] %v1321
      %1354 = vst [vmem:[#allocation2 + $0x70] sm:$0xff] %v1322
      %1355 = vst [vmem:[#allocation2 + $0x78] sm:$0xff] %v1323
      %1356 = vst [vmem:[#allocation2 + $0x80] sm:$0xff] %v1324
      %1357 = vst [vmem:[#allocation2 + $0x88] sm:$0xff] %v1325
      %1358 = vst [vmem:[#allocation2 + $0x90] sm:$0xff] %v1326
      %1359 = vst [vmem:[#allocation2 + $0x98] sm:$0xff] %v1327
      %1360 = vst [vmem:[#allocation2 + $0xa0] sm:$0xff] %v1328
      %1361 = vst [vmem:[#allocation2 + $0xa8] sm:$0xff] %v1329
      %1362 = vst [vmem:[#allocation2 + $0xb0] sm:$0xff] %v1330
      %1363 = vst [vmem:[#allocation2 + $0xb8] sm:$0xff] %v1331
      %1364 = vst [vmem:[#allocation2 + $0xc0] sm:$0xff] %v1332
      %1365 = vst [vmem:[#allocation2 + $0xc8] sm:$0xff] %v1333
      %1366 = vst [vmem:[#allocation2 + $0xd0] sm:$0xff] %v1334
      %1367 = vst [vmem:[#allocation2 + $0xd8] sm:$0xff] %v1335
      %1368 = vst [vmem:[#allocation2 + $0xe0] sm:$0xff] %v1336
      %1369 = vst [vmem:[#allocation2 + $0xe8] sm:$0xff] %v1337
      %1370 = vst [vmem:[#allocation2 + $0xf0] sm:$0xff] %v1338
      %1371 = vst [vmem:[#allocation2 + $0xf8] sm:$0xff] %v1339
      // Predicated region
      $region41: #{gcn_node_classifier.3} parent=35 // pred_check
        %p1372 = pneg %p276
      $region42: #{gcn_node_classifier.3} parent=35 // pred_check_branch
        %1374 = sbr.rel (%p1372) target = $region44
      $region43: #{gcn_node_classifier.3} parent=35 // pred_region
        %v1375 = vld [vmem:[%s250] sm:$0xff]
        %v1376 = vld [vmem:[%s250 + $0x8] sm:$0xff]
        %v1377 = vld [vmem:[%s250 + $0x10] sm:$0xff]
        %v1378 = vld [vmem:[%s250 + $0x18] sm:$0xff]
        %v1379 = vld [vmem:[%s250 + $0x20] sm:$0xff]
        %v1380 = vld [vmem:[%s250 + $0x28] sm:$0xff]
        %v1381 = vld [vmem:[%s250 + $0x30] sm:$0xff]
        %v1382 = vld [vmem:[%s250 + $0x38] sm:$0xff]
        %v1383 = vld [vmem:[%s250 + $0x40] sm:$0xff]
        %v1384 = vld [vmem:[%s250 + $0x48] sm:$0xff]
        %v1385 = vld [vmem:[%s250 + $0x50] sm:$0xff]
        %v1386 = vld [vmem:[%s250 + $0x58] sm:$0xff]
        %v1387 = vld [vmem:[%s250 + $0x60] sm:$0xff]
        %v1388 = vld [vmem:[%s250 + $0x68] sm:$0xff]
        %v1389 = vld [vmem:[%s250 + $0x70] sm:$0xff]
        %v1390 = vld [vmem:[%s250 + $0x78] sm:$0xff]
        %v1391 = vld [vmem:[%s250 + $0x80] sm:$0xff]
        %v1392 = vld [vmem:[%s250 + $0x88] sm:$0xff]
        %v1393 = vld [vmem:[%s250 + $0x90] sm:$0xff]
        %v1394 = vld [vmem:[%s250 + $0x98] sm:$0xff]
        %v1395 = vld [vmem:[%s250 + $0xa0] sm:$0xff]
        %v1396 = vld [vmem:[%s250 + $0xa8] sm:$0xff]
        %v1397 = vld [vmem:[%s250 + $0xb0] sm:$0xff]
        %v1398 = vld [vmem:[%s250 + $0xb8] sm:$0xff]
        %v1399 = vld [vmem:[%s250 + $0xc0] sm:$0xff]
        %v1400 = vld [vmem:[%s250 + $0xc8] sm:$0xff]
        %v1401 = vld [vmem:[%s250 + $0xd0] sm:$0xff]
        %v1402 = vld [vmem:[%s250 + $0xd8] sm:$0xff]
        %v1403 = vld [vmem:[%s250 + $0xe0] sm:$0xff]
        %v1404 = vld [vmem:[%s250 + $0xe8] sm:$0xff]
        %v1405 = vld [vmem:[%s250 + $0xf0] sm:$0xff]
        %v1406 = vld [vmem:[%s250 + $0xf8] sm:$0xff]
        %v1407 = vld [vmem:[#allocation2] sm:$0xff]
        %v1408 = vld [vmem:[#allocation2 + $0x8] sm:$0xff]
        %v1409 = vld [vmem:[#allocation2 + $0x10] sm:$0xff]
        %v1410 = vld [vmem:[#allocation2 + $0x18] sm:$0xff]
        %v1411 = vld [vmem:[#allocation2 + $0x20] sm:$0xff]
        %v1412 = vld [vmem:[#allocation2 + $0x28] sm:$0xff]
        %v1413 = vld [vmem:[#allocation2 + $0x30] sm:$0xff]
        %v1414 = vld [vmem:[#allocation2 + $0x38] sm:$0xff]
        %v1415 = vld [vmem:[#allocation2 + $0x40] sm:$0xff]
        %v1416 = vld [vmem:[#allocation2 + $0x48] sm:$0xff]
        %v1417 = vld [vmem:[#allocation2 + $0x50] sm:$0xff]
        %v1418 = vld [vmem:[#allocation2 + $0x58] sm:$0xff]
        %v1419 = vld [vmem:[#allocation2 + $0x60] sm:$0xff]
        %v1420 = vld [vmem:[#allocation2 + $0x68] sm:$0xff]
        %v1421 = vld [vmem:[#allocation2 + $0x70] sm:$0xff]
        %v1422 = vld [vmem:[#allocation2 + $0x78] sm:$0xff]
        %v1423 = vld [vmem:[#allocation2 + $0x80] sm:$0xff]
        %v1424 = vld [vmem:[#allocation2 + $0x88] sm:$0xff]
        %v1425 = vld [vmem:[#allocation2 + $0x90] sm:$0xff]
        %v1426 = vld [vmem:[#allocation2 + $0x98] sm:$0xff]
        %v1427 = vld [vmem:[#allocation2 + $0xa0] sm:$0xff]
        %v1428 = vld [vmem:[#allocation2 + $0xa8] sm:$0xff]
        %v1429 = vld [vmem:[#allocation2 + $0xb0] sm:$0xff]
        %v1430 = vld [vmem:[#allocation2 + $0xb8] sm:$0xff]
        %v1431 = vld [vmem:[#allocation2 + $0xc0] sm:$0xff]
        %v1432 = vld [vmem:[#allocation2 + $0xc8] sm:$0xff]
        %v1433 = vld [vmem:[#allocation2 + $0xd0] sm:$0xff]
        %v1434 = vld [vmem:[#allocation2 + $0xd8] sm:$0xff]
        %v1435 = vld [vmem:[#allocation2 + $0xe0] sm:$0xff]
        %v1436 = vld [vmem:[#allocation2 + $0xe8] sm:$0xff]
        %v1437 = vld [vmem:[#allocation2 + $0xf0] sm:$0xff]
        %v1438 = vld [vmem:[#allocation2 + $0xf8] sm:$0xff]
        %1440 = vset.pattern.permute.xlu0 0
        %1441 = vperm.xlu0 %1440, %v1375
        %v1442 = vpop.permute.xlu0 %1441
        %1445 = vset.pattern.permute.xlu0 0
        %1446 = vperm.xlu0 %1445, %v1376
        %v1447 = vpop.permute.xlu0 %1446
        %1450 = vset.pattern.permute.xlu0 0
        %1451 = vperm.xlu0 %1450, %v1377
        %v1452 = vpop.permute.xlu0 %1451
        %1455 = vset.pattern.permute.xlu0 0
        %1456 = vperm.xlu0 %1455, %v1378
        %v1457 = vpop.permute.xlu0 %1456
        %1460 = vset.pattern.permute.xlu0 0
        %1461 = vperm.xlu0 %1460, %v1379
        %v1462 = vpop.permute.xlu0 %1461
        %1465 = vset.pattern.permute.xlu0 0
        %1466 = vperm.xlu0 %1465, %v1380
        %v1467 = vpop.permute.xlu0 %1466
        %1470 = vset.pattern.permute.xlu0 0
        %1471 = vperm.xlu0 %1470, %v1381
        %v1472 = vpop.permute.xlu0 %1471
        %1475 = vset.pattern.permute.xlu0 0
        %1476 = vperm.xlu0 %1475, %v1382
        %v1477 = vpop.permute.xlu0 %1476
        %1480 = vset.pattern.permute.xlu0 0
        %1481 = vperm.xlu0 %1480, %v1383
        %v1482 = vpop.permute.xlu0 %1481
        %1485 = vset.pattern.permute.xlu0 0
        %1486 = vperm.xlu0 %1485, %v1384
        %v1487 = vpop.permute.xlu0 %1486
        %1490 = vset.pattern.permute.xlu0 0
        %1491 = vperm.xlu0 %1490, %v1385
        %v1492 = vpop.permute.xlu0 %1491
        %1495 = vset.pattern.permute.xlu0 0
        %1496 = vperm.xlu0 %1495, %v1386
        %v1497 = vpop.permute.xlu0 %1496
        %1500 = vset.pattern.permute.xlu0 0
        %1501 = vperm.xlu0 %1500, %v1387
        %v1502 = vpop.permute.xlu0 %1501
        %1505 = vset.pattern.permute.xlu0 0
        %1506 = vperm.xlu0 %1505, %v1388
        %v1507 = vpop.permute.xlu0 %1506
        %1510 = vset.pattern.permute.xlu0 0
        %1511 = vperm.xlu0 %1510, %v1389
        %v1512 = vpop.permute.xlu0 %1511
        %1515 = vset.pattern.permute.xlu0 0
        %1516 = vperm.xlu0 %1515, %v1390
        %v1517 = vpop.permute.xlu0 %1516
        %1520 = vset.pattern.permute.xlu0 0
        %1521 = vperm.xlu0 %1520, %v1391
        %v1522 = vpop.permute.xlu0 %1521
        %1525 = vset.pattern.permute.xlu0 0
        %1526 = vperm.xlu0 %1525, %v1392
        %v1527 = vpop.permute.xlu0 %1526
        %1530 = vset.pattern.permute.xlu0 0
        %1531 = vperm.xlu0 %1530, %v1393
        %v1532 = vpop.permute.xlu0 %1531
        %1535 = vset.pattern.permute.xlu0 0
        %1536 = vperm.xlu0 %1535, %v1394
        %v1537 = vpop.permute.xlu0 %1536
        %1540 = vset.pattern.permute.xlu0 0
        %1541 = vperm.xlu0 %1540, %v1395
        %v1542 = vpop.permute.xlu0 %1541
        %1545 = vset.pattern.permute.xlu0 0
        %1546 = vperm.xlu0 %1545, %v1396
        %v1547 = vpop.permute.xlu0 %1546
        %1550 = vset.pattern.permute.xlu0 0
        %1551 = vperm.xlu0 %1550, %v1397
        %v1552 = vpop.permute.xlu0 %1551
        %1555 = vset.pattern.permute.xlu0 0
        %1556 = vperm.xlu0 %1555, %v1398
        %v1557 = vpop.permute.xlu0 %1556
        %1560 = vset.pattern.permute.xlu0 0
        %1561 = vperm.xlu0 %1560, %v1399
        %v1562 = vpop.permute.xlu0 %1561
        %1565 = vset.pattern.permute.xlu0 0
        %1566 = vperm.xlu0 %1565, %v1400
        %v1567 = vpop.permute.xlu0 %1566
        %1570 = vset.pattern.permute.xlu0 0
        %1571 = vperm.xlu0 %1570, %v1401
        %v1572 = vpop.permute.xlu0 %1571
        %1575 = vset.pattern.permute.xlu0 0
        %1576 = vperm.xlu0 %1575, %v1402
        %v1577 = vpop.permute.xlu0 %1576
        %1580 = vset.pattern.permute.xlu0 0
        %1581 = vperm.xlu0 %1580, %v1403
        %v1582 = vpop.permute.xlu0 %1581
        %1585 = vset.pattern.permute.xlu0 0
        %1586 = vperm.xlu0 %1585, %v1404
        %v1587 = vpop.permute.xlu0 %1586
        %1590 = vset.pattern.permute.xlu0 0
        %1591 = vperm.xlu0 %1590, %v1405
        %v1592 = vpop.permute.xlu0 %1591
        %1595 = vset.pattern.permute.xlu0 0
        %1596 = vperm.xlu0 %1595, %v1406
        %v1597 = vpop.permute.xlu0 %1596
        %v1599 = vmul.f32 %v1442, %v1407
        %v1600 = vmul.f32 %v1447, %v1408
        %v1601 = vmul.f32 %v1452, %v1409
        %v1602 = vmul.f32 %v1457, %v1410
        %v1603 = vmul.f32 %v1462, %v1411
        %v1604 = vmul.f32 %v1467, %v1412
        %v1605 = vmul.f32 %v1472, %v1413
        %v1606 = vmul.f32 %v1477, %v1414
        %v1607 = vmul.f32 %v1482, %v1415
        %v1608 = vmul.f32 %v1487, %v1416
        %v1609 = vmul.f32 %v1492, %v1417
        %v1610 = vmul.f32 %v1497, %v1418
        %v1611 = vmul.f32 %v1502, %v1419
        %v1612 = vmul.f32 %v1507, %v1420
        %v1613 = vmul.f32 %v1512, %v1421
        %v1614 = vmul.f32 %v1517, %v1422
        %v1615 = vmul.f32 %v1522, %v1423
        %v1616 = vmul.f32 %v1527, %v1424
        %v1617 = vmul.f32 %v1532, %v1425
        %v1618 = vmul.f32 %v1537, %v1426
        %v1619 = vmul.f32 %v1542, %v1427
        %v1620 = vmul.f32 %v1547, %v1428
        %v1621 = vmul.f32 %v1552, %v1429
        %v1622 = vmul.f32 %v1557, %v1430
        %v1623 = vmul.f32 %v1562, %v1431
        %v1624 = vmul.f32 %v1567, %v1432
        %v1625 = vmul.f32 %v1572, %v1433
        %v1626 = vmul.f32 %v1577, %v1434
        %v1627 = vmul.f32 %v1582, %v1435
        %v1628 = vmul.f32 %v1587, %v1436
        %v1629 = vmul.f32 %v1592, %v1437
        %v1630 = vmul.f32 %v1597, %v1438
        %v1631 = vld [vmem:[%s3] sm:$0x1]
        %v1633 = vperm.slane %v1631, 0
        %v1635 = vadd.f32 %v1599, %v1633
        %v1636 = vadd.f32 %v1600, %v1633
        %v1637 = vadd.f32 %v1601, %v1633
        %v1638 = vadd.f32 %v1602, %v1633
        %v1639 = vadd.f32 %v1603, %v1633
        %v1640 = vadd.f32 %v1604, %v1633
        %v1641 = vadd.f32 %v1605, %v1633
        %v1642 = vadd.f32 %v1606, %v1633
        %v1643 = vadd.f32 %v1607, %v1633
        %v1644 = vadd.f32 %v1608, %v1633
        %v1645 = vadd.f32 %v1609, %v1633
        %v1646 = vadd.f32 %v1610, %v1633
        %v1647 = vadd.f32 %v1611, %v1633
        %v1648 = vadd.f32 %v1612, %v1633
        %v1649 = vadd.f32 %v1613, %v1633
        %v1650 = vadd.f32 %v1614, %v1633
        %v1651 = vadd.f32 %v1615, %v1633
        %v1652 = vadd.f32 %v1616, %v1633
        %v1653 = vadd.f32 %v1617, %v1633
        %v1654 = vadd.f32 %v1618, %v1633
        %v1655 = vadd.f32 %v1619, %v1633
        %v1656 = vadd.f32 %v1620, %v1633
        %v1657 = vadd.f32 %v1621, %v1633
        %v1658 = vadd.f32 %v1622, %v1633
        %v1659 = vadd.f32 %v1623, %v1633
        %v1660 = vadd.f32 %v1624, %v1633
        %v1661 = vadd.f32 %v1625, %v1633
        %v1662 = vadd.f32 %v1626, %v1633
        %v1663 = vadd.f32 %v1627, %v1633
        %v1664 = vadd.f32 %v1628, %v1633
        %v1665 = vadd.f32 %v1629, %v1633
        %v1666 = vadd.f32 %v1630, %v1633
        %1667 = vst [vmem:[%s274] sm:$0xff] %v1635
        %1668 = vst [vmem:[%s274 + $0x8] sm:$0xff] %v1636
        %1669 = vst [vmem:[%s274 + $0x10] sm:$0xff] %v1637
        %1670 = vst [vmem:[%s274 + $0x18] sm:$0xff] %v1638
        %1671 = vst [vmem:[%s274 + $0x20] sm:$0xff] %v1639
        %1672 = vst [vmem:[%s274 + $0x28] sm:$0xff] %v1640
        %1673 = vst [vmem:[%s274 + $0x30] sm:$0xff] %v1641
        %1674 = vst [vmem:[%s274 + $0x38] sm:$0xff] %v1642
        %1675 = vst [vmem:[%s274 + $0x40] sm:$0xff] %v1643
        %1676 = vst [vmem:[%s274 + $0x48] sm:$0xff] %v1644
        %1677 = vst [vmem:[%s274 + $0x50] sm:$0xff] %v1645
        %1678 = vst [vmem:[%s274 + $0x58] sm:$0xff] %v1646
        %1679 = vst [vmem:[%s274 + $0x60] sm:$0xff] %v1647
        %1680 = vst [vmem:[%s274 + $0x68] sm:$0xff] %v1648
        %1681 = vst [vmem:[%s274 + $0x70] sm:$0xff] %v1649
        %1682 = vst [vmem:[%s274 + $0x78] sm:$0xff] %v1650
        %1683 = vst [vmem:[%s274 + $0x80] sm:$0xff] %v1651
        %1684 = vst [vmem:[%s274 + $0x88] sm:$0xff] %v1652
        %1685 = vst [vmem:[%s274 + $0x90] sm:$0xff] %v1653
        %1686 = vst [vmem:[%s274 + $0x98] sm:$0xff] %v1654
        %1687 = vst [vmem:[%s274 + $0xa0] sm:$0xff] %v1655
        %1688 = vst [vmem:[%s274 + $0xa8] sm:$0xff] %v1656
        %1689 = vst [vmem:[%s274 + $0xb0] sm:$0xff] %v1657
        %1690 = vst [vmem:[%s274 + $0xb8] sm:$0xff] %v1658
        %1691 = vst [vmem:[%s274 + $0xc0] sm:$0xff] %v1659
        %1692 = vst [vmem:[%s274 + $0xc8] sm:$0xff] %v1660
        %1693 = vst [vmem:[%s274 + $0xd0] sm:$0xff] %v1661
        %1694 = vst [vmem:[%s274 + $0xd8] sm:$0xff] %v1662
        %1695 = vst [vmem:[%s274 + $0xe0] sm:$0xff] %v1663
        %1696 = vst [vmem:[%s274 + $0xe8] sm:$0xff] %v1664
        %1697 = vst [vmem:[%s274 + $0xf0] sm:$0xff] %v1665
        %1698 = vst [vmem:[%s274 + $0xf8] sm:$0xff] %v1666
      $region44: #{gcn_node_classifier.3} parent=35 // pred_fallthru
        _
      %s1699 = smul.u32 32, %s19
      %p1700 = scmp.lt.s32.totalorder %s1699, 63
      %s1701 = scalar_select %p1700, %s1699, 63
      %s1702 = smul.addr %s1701, 8
      %s1703 = scalar_lea.vmem %s4, %s1702
      // Predicated region
      $region45: #{gcn_node_classifier.3} parent=35 // pred_check
        %p1704 = pneg %p146
      $region46: #{gcn_node_classifier.3} parent=35 // pred_check_branch
        %1706 = sbr.rel (%p1704) target = $region48
      $region47: #{gcn_node_classifier.3} parent=35 // pred_region
        %s1707 = smul.u32 32, %s19
      $region48: #{gcn_node_classifier.3} parent=35 // pred_fallthru
        _
    $region36: #{gcn_node_classifier.3} parent=5 // pred_fallthru
      _
    %p1708 = scmp.le.s32.totalorder 2, %s10
    // Predicated region
    $region49: #{gcn_node_classifier.3} parent=5 // pred_check
      %p1709 = pneg %p1708
    $region50: #{gcn_node_classifier.3} parent=5 // pred_check_branch
      %1711 = sbr.rel (%p1709) target = $region52
    $region51: #{gcn_node_classifier.3} parent=5 // pred_region
      %s1712 = ssub.s32 %s10, 2
      // Predicated region
      $region53: #{gcn_node_classifier.3} parent=51 // pred_check
        %p1713 = pneg %p152
      $region54: #{gcn_node_classifier.3} parent=51 // pred_check_branch
        %1715 = sbr.rel (%p1713) target = $region56
      $region55: #{gcn_node_classifier.3} parent=51 // pred_region
        %s1716 = smul.u32 32, %s21
        %p1717 = scmp.lt.s32.totalorder %s1716, 63
        %s1718 = scalar_select %p1717, %s1716, 63
        %s1719 = smul.addr %s1718, 8
        %s1720 = scalar_lea.vmem %s4, %s1719
      $region56: #{gcn_node_classifier.3} parent=51 // pred_fallthru
        _
    $region52: #{gcn_node_classifier.3} parent=5 // pred_fallthru
      _
  $region6: #{gcn_node_classifier.3} parent=0 // loop_footer
    %s14 = sadd.s32 1, %s10
  $region7: #{gcn_node_classifier.3} parent=0 // loop_footer_branch
    %9 = sbr.rel target = $region3
  $region8: #{gcn_node_classifier.3} parent=0 // loop_exit
    _

// kernel: gcn_node_classifier.2
$region0: #{gcn_node_classifier.2}
  #allocation0 [shape = 'u32[]', space=smem, size = 0x4, offset = 0x4, fixed_abs, tag = 'smem constant byte address 0x4 - core index']
  #allocation1 [shape = 'u32[72,128]{1,0:T(1,128)}', space=vmem, size = 0x9000, scoped, tag = 'internal scratch']
  #allocation2 [shape = 'f32[256,128]{1,0:T(8,128)}', space=vmem, size = 0x20000, scoped, tag = 'scratch operand']
  %s0 = inlined_call_operand.vmem [shape: f32[512,1], index: 0, kind: input, shape index: {}]
  %s1 = inlined_call_operand.vmem [shape: f32[512,1], index: 1, kind: input, shape index: {}]
  %s2 = inlined_call_operand.vmem [shape: s8[512,512], index: 2, kind: input, shape index: {}]
  %s3 = inlined_call_operand.vmem [shape: bf16[512,128], index: 3, kind: input, shape index: {}]
  %s4 = inlined_call_operand.vmem [shape: f32[1,128], index: 4, kind: input, shape index: {}]
  %s5 = inlined_call_operand.vmem [shape: bf16[128,128], index: 5, kind: input, shape index: {}]
  %s6 = inlined_call_operand.vmem [shape: bf16[512,128], index: 6, kind: output, shape index: {}]
  %s7 = sld [smem:[#allocation0]]
  $region65: #{gcn_node_classifier.2} parent=0
    _
  %s9 = ssub.s32 1, %s7
  %s10 = scalar_select 0, %s9, %s7
  loop: start=0, step=1, limit=4
  $region2: #{gcn_node_classifier.2} parent=0 // loop_pre_header
    _
  $region3: #{gcn_node_classifier.2} parent=0 // loop_header
    %s12 = sphi 0, %s16
    %p13 = scmp.ge.s32.totalorder %s12, 4
    %s19 = sphi 0, %s31
    %s20 = sphi 0, %s27
    %s21 = sphi 0, %s19
    %s22 = sphi 0, %s20
    %s23 = sphi 0, %s21
    %s24 = sphi 0, %s22
    %s34 = sphi 0, %s36
    %s37 = sphi 0, %s34
    %s38 = sphi 0, %s37
    %s54 = sphi 0, %s38
    %s60 = sphi 0, %s62
    %s63 = sphi 0, %s60
    %s64 = sphi 0, %s63
    %s80 = sphi 0, %s64
    %s88 = sphi 0, %s90
    %s91 = sphi 0, %s88
    %s92 = sphi 0, %s91
    %s108 = sphi 0, %s92
    %s114 = sphi 0, %s116
    %s117 = sphi 0, %s114
    %s118 = sphi 0, %s117
    %s134 = sphi 0, %s118
    %s138 = sphi 0, %s138
    %s140 = sphi 0, %s138
    %s141 = sphi 0, %s140
    %s155 = sphi 0, %s141
    %s159 = sphi 0, %s159
    %s161 = sphi 0, %s159
    %s162 = sphi 0, %s161
    %s176 = sphi 0, %s162
    %s182 = sphi 0, %s184
    %s185 = sphi 0, %s182
    %s186 = sphi 0, %s185
    %s202 = sphi 0, %s186
  $region4: #{gcn_node_classifier.2} parent=0 // loop_header_branch
    %15 = sbr.rel (%p13) target = $region8
  $region5: #{gcn_node_classifier.2} parent=0 // loop_body
    %s17 = ssub.s32 %s12, 1
    %s18 = ssub.s32 %s12, 2
    %s25 = sadd.s32 1, %s20
    %p26 = scmp.ge.s32.totalorder %s25, 1
    %s27 = scalar_select %p26, 0, %s25
    %s28 = sadd.s32 1, %s19
    %s29 = scalar_select %p26, %s28, %s19
    %p30 = scmp.ge.s32.totalorder %s29, 2
    %s31 = scalar_select %p30, 0, %s29
    %s32 = ssub.s32 %s19, %s31
    %p33 = scmp.eq.s32.totalorder %s32, 0
    %s35 = sadd.s32 %s34, 1
    %s36 = scalar_select %p33, %s34, %s35
    %p39 = pneg %p33
    %p40 = scmp.eq.s32.totalorder %s12, 1
    %p41 = por %p39, %p40
    %p42 = scmp.ne.s32.totalorder %s34, %s37
    %p43 = scmp.eq.s32.totalorder %s12, 0
    %p44 = por %p42, %p43
    %p45 = scmp.ne.s32.totalorder %s34, %s37
    %p46 = scmp.eq.s32.totalorder %s17, 1
    %p47 = por %p45, %p46
    %p48 = scmp.ne.s32.totalorder %s37, %s38
    %p49 = scmp.eq.s32.totalorder %s17, 0
    %p50 = por %p48, %p49
    %p51 = scmp.ne.s32.totalorder %s37, %s38
    %p52 = scmp.eq.s32.totalorder %s18, 1
    %p53 = por %p51, %p52
    %p55 = scmp.ne.s32.totalorder %s38, %s54
    %p56 = scmp.eq.s32.totalorder %s18, 0
    %p57 = por %p55, %p56
    %s58 = ssub.s32 %s19, %s31
    %p59 = scmp.eq.s32.totalorder %s58, 0
    %s61 = sadd.s32 %s60, 1
    %s62 = scalar_select %p59, %s60, %s61
    %p65 = pneg %p59
    %p66 = scmp.eq.s32.totalorder %s12, 1
    %p67 = por %p65, %p66
    %p68 = scmp.ne.s32.totalorder %s60, %s63
    %p69 = scmp.eq.s32.totalorder %s12, 0
    %p70 = por %p68, %p69
    %p71 = scmp.ne.s32.totalorder %s60, %s63
    %p72 = scmp.eq.s32.totalorder %s17, 1
    %p73 = por %p71, %p72
    %p74 = scmp.ne.s32.totalorder %s63, %s64
    %p75 = scmp.eq.s32.totalorder %s17, 0
    %p76 = por %p74, %p75
    %p77 = scmp.ne.s32.totalorder %s63, %s64
    %p78 = scmp.eq.s32.totalorder %s18, 1
    %p79 = por %p77, %p78
    %p81 = scmp.ne.s32.totalorder %s64, %s80
    %p82 = scmp.eq.s32.totalorder %s18, 0
    %p83 = por %p81, %p82
    %s84 = ssub.s32 %s19, %s31
    %s85 = ssub.s32 %s20, %s27
    %s86 = sor.u32 %s84, %s85
    %p87 = scmp.eq.s32.totalorder %s86, 0
    %s89 = sadd.s32 %s88, 1
    %s90 = scalar_select %p87, %s88, %s89
    %p93 = pneg %p87
    %p94 = scmp.eq.s32.totalorder %s12, 1
    %p95 = por %p93, %p94
    %p96 = scmp.ne.s32.totalorder %s88, %s91
    %p97 = scmp.eq.s32.totalorder %s12, 0
    %p98 = por %p96, %p97
    %p99 = scmp.ne.s32.totalorder %s88, %s91
    %p100 = scmp.eq.s32.totalorder %s17, 1
    %p101 = por %p99, %p100
    %p102 = scmp.ne.s32.totalorder %s91, %s92
    %p103 = scmp.eq.s32.totalorder %s17, 0
    %p104 = por %p102, %p103
    %p105 = scmp.ne.s32.totalorder %s91, %s92
    %p106 = scmp.eq.s32.totalorder %s18, 1
    %p107 = por %p105, %p106
    %p109 = scmp.ne.s32.totalorder %s92, %s108
    %p110 = scmp.eq.s32.totalorder %s18, 0
    %p111 = por %p109, %p110
    %s112 = ssub.s32 %s20, %s27
    %p113 = scmp.eq.s32.totalorder %s112, 0
    %s115 = sadd.s32 %s114, 1
    %s116 = scalar_select %p113, %s114, %s115
    %p119 = pneg %p113
    %p120 = scmp.eq.s32.totalorder %s12, 1
    %p121 = por %p119, %p120
    %p122 = scmp.ne.s32.totalorder %s114, %s117
    %p123 = scmp.eq.s32.totalorder %s12, 0
    %p124 = por %p122, %p123
    %p125 = scmp.ne.s32.totalorder %s114, %s117
    %p126 = scmp.eq.s32.totalorder %s17, 1
    %p127 = por %p125, %p126
    %p128 = scmp.ne.s32.totalorder %s117, %s118
    %p129 = scmp.eq.s32.totalorder %s17, 0
    %p130 = por %p128, %p129
    %p131 = scmp.ne.s32.totalorder %s117, %s118
    %p132 = scmp.eq.s32.totalorder %s18, 1
    %p133 = por %p131, %p132
    %p135 = scmp.ne.s32.totalorder %s118, %s134
    %p136 = scmp.eq.s32.totalorder %s18, 0
    %p137 = por %p135, %p136
    %s139 = sadd.s32 %s138, 1
    %p142 = scmp.eq.s32.totalorder %s12, 1
    %p143 = scmp.ne.s32.totalorder %s138, %s140
    %p144 = scmp.eq.s32.totalorder %s12, 0
    %p145 = por %p143, %p144
    %p146 = scmp.ne.s32.totalorder %s138, %s140
    %p147 = scmp.eq.s32.totalorder %s17, 1
    %p148 = por %p146, %p147
    %p149 = scmp.ne.s32.totalorder %s140, %s141
    %p150 = scmp.eq.s32.totalorder %s17, 0
    %p151 = por %p149, %p150
    %p152 = scmp.ne.s32.totalorder %s140, %s141
    %p153 = scmp.eq.s32.totalorder %s18, 1
    %p154 = por %p152, %p153
    %p156 = scmp.ne.s32.totalorder %s141, %s155
    %p157 = scmp.eq.s32.totalorder %s18, 0
    %p158 = por %p156, %p157
    %s160 = sadd.s32 %s159, 1
    %p163 = scmp.eq.s32.totalorder %s12, 1
    %p164 = scmp.ne.s32.totalorder %s159, %s161
    %p165 = scmp.eq.s32.totalorder %s12, 0
    %p166 = por %p164, %p165
    %p167 = scmp.ne.s32.totalorder %s159, %s161
    %p168 = scmp.eq.s32.totalorder %s17, 1
    %p169 = por %p167, %p168
    %p170 = scmp.ne.s32.totalorder %s161, %s162
    %p171 = scmp.eq.s32.totalorder %s17, 0
    %p172 = por %p170, %p171
    %p173 = scmp.ne.s32.totalorder %s161, %s162
    %p174 = scmp.eq.s32.totalorder %s18, 1
    %p175 = por %p173, %p174
    %p177 = scmp.ne.s32.totalorder %s162, %s176
    %p178 = scmp.eq.s32.totalorder %s18, 0
    %p179 = por %p177, %p178
    %s180 = ssub.s32 %s19, %s31
    %p181 = scmp.eq.s32.totalorder %s180, 0
    %s183 = sadd.s32 %s182, 1
    %s184 = scalar_select %p181, %s182, %s183
    %p187 = pneg %p181
    %p188 = scmp.eq.s32.totalorder %s12, 1
    %p189 = por %p187, %p188
    %p190 = scmp.ne.s32.totalorder %s182, %s185
    %p191 = scmp.eq.s32.totalorder %s12, 0
    %p192 = por %p190, %p191
    %p193 = scmp.ne.s32.totalorder %s182, %s185
    %p194 = scmp.eq.s32.totalorder %s17, 1
    %p195 = por %p193, %p194
    %p196 = scmp.ne.s32.totalorder %s185, %s186
    %p197 = scmp.eq.s32.totalorder %s17, 0
    %p198 = por %p196, %p197
    %p199 = scmp.ne.s32.totalorder %s185, %s186
    %p200 = scmp.eq.s32.totalorder %s18, 1
    %p201 = por %p199, %p200
    %p203 = scmp.ne.s32.totalorder %s186, %s202
    %p204 = scmp.eq.s32.totalorder %s18, 0
    %p205 = por %p203, %p204
    %p206 = scmp.le.s32.totalorder 1, %s12
    %p207 = scmp.lt.s32.totalorder %s12, 3
    %p208 = pnand %p206, %p207
    %p209 = pneg %p208
    // Predicated region
    $region9: #{gcn_node_classifier.2} parent=5 // pred_check
      _
    $region10: #{gcn_node_classifier.2} parent=5 // pred_check_branch
      %211 = sbr.rel (%p208) target = $region12
    $region11: #{gcn_node_classifier.2} parent=5 // pred_region
      %s212 = ssub.s32 %s12, 1
      // Predicated region
      $region13: #{gcn_node_classifier.2} parent=11 // pred_check
        %p213 = pneg %p130
      $region14: #{gcn_node_classifier.2} parent=11 // pred_check_branch
        %215 = sbr.rel (%p213) target = $region16
      $region15: #{gcn_node_classifier.2} parent=11 // pred_region
        %s216 = smul.u32 64, %s22
        %p217 = scmp.lt.s32.totalorder %s216, 63
        %s218 = scalar_select %p217, %s216, 63
        %s219 = smul.addr %s218, 4
        %s220 = scalar_lea.vmem %s3, %s219
        %s221 = smul.u32 64, %s22
      $region16: #{gcn_node_classifier.2} parent=11 // pred_fallthru
        _
      // Predicated region
      $region17: #{gcn_node_classifier.2} parent=11 // pred_check
        %p222 = pneg %p151
      $region18: #{gcn_node_classifier.2} parent=11 // pred_check_branch
        %224 = sbr.rel (%p222) target = $region20
      $region19: #{gcn_node_classifier.2} parent=11 // pred_region
        _
      $region20: #{gcn_node_classifier.2} parent=11 // pred_fallthru
        _
      // Predicated region
      $region21: #{gcn_node_classifier.2} parent=11 // pred_check
        %p225 = pneg %p172
      $region22: #{gcn_node_classifier.2} parent=11 // pred_check_branch
        %227 = sbr.rel (%p225) target = $region24
      $region23: #{gcn_node_classifier.2} parent=11 // pred_region
        _
      $region24: #{gcn_node_classifier.2} parent=11 // pred_fallthru
        _
    $region12: #{gcn_node_classifier.2} parent=5 // pred_fallthru
      _
    %p228 = scmp.lt.s32.totalorder %s12, 2
    // Predicated region
    $region25: #{gcn_node_classifier.2} parent=5 // pred_check
      %p229 = pneg %p228
    $region26: #{gcn_node_classifier.2} parent=5 // pred_check_branch
      %231 = sbr.rel (%p229) target = $region28
    $region27: #{gcn_node_classifier.2} parent=5 // pred_region
      // Predicated region
      $region29: #{gcn_node_classifier.2} parent=27 // pred_check
        %p232 = pneg %p44
      $region30: #{gcn_node_classifier.2} parent=27 // pred_check_branch
        %234 = sbr.rel (%p232) target = $region32
      $region31: #{gcn_node_classifier.2} parent=27 // pred_region
        %s235 = smul.u32 32, %s19
        %p236 = scmp.lt.s32.totalorder %s235, 63
        %s237 = scalar_select %p236, %s235, 63
        %s238 = smul.addr %s237, 8
        %s239 = scalar_lea.vmem %s0, %s238
        %s240 = smul.u32 32, %s19
      $region32: #{gcn_node_classifier.2} parent=27 // pred_fallthru
        _
      // Predicated region
      $region33: #{gcn_node_classifier.2} parent=27 // pred_check
        %p241 = pneg %p70
      $region34: #{gcn_node_classifier.2} parent=27 // pred_check_branch
        %243 = sbr.rel (%p241) target = $region36
      $region35: #{gcn_node_classifier.2} parent=27 // pred_region
        %s244 = smul.u32 32, %s19
        %p245 = scmp.lt.s32.totalorder %s244, 63
        %s246 = scalar_select %p245, %s244, 63
        %s247 = smul.addr %s246, 8
        %s248 = scalar_lea.vmem %s1, %s247
        %s249 = smul.u32 32, %s19
      $region36: #{gcn_node_classifier.2} parent=27 // pred_fallthru
        _
      // Predicated region
      $region37: #{gcn_node_classifier.2} parent=27 // pred_check
        %p250 = pneg %p98
      $region38: #{gcn_node_classifier.2} parent=27 // pred_check_branch
        %252 = sbr.rel (%p250) target = $region40
      $region39: #{gcn_node_classifier.2} parent=27 // pred_region
        %s253 = smul.u32 8, %s19
        %s254 = smul.u32 4, %s20
        %p255 = scmp.lt.s32.totalorder %s253, 15
        %s256 = scalar_select %p255, %s253, 15
        %p257 = scmp.lt.s32.totalorder %s254, 3
        %s258 = scalar_select %p257, %s254, 3
        %s259 = smul.addr %s256, 4
        %s260 = sadd.s32 %s258, %s259
        %s261 = smul.addr %s260, 8
        %s262 = scalar_lea.vmem %s2, %s261
        %s263 = smul.u32 8, %s19
        %s264 = smul.u32 4, %s20
      $region40: #{gcn_node_classifier.2} parent=27 // pred_fallthru
        _
    $region28: #{gcn_node_classifier.2} parent=5 // pred_fallthru
      _
    %p265 = scmp.le.s32.totalorder 1, %s12
    %p266 = scmp.lt.s32.totalorder %s12, 3
    %p267 = pnand %p265, %p266
    %p268 = pneg %p267
    // Predicated region
    $region41: #{gcn_node_classifier.2} parent=5 // pred_check
      _
    $region42: #{gcn_node_classifier.2} parent=5 // pred_check_branch
      %270 = sbr.rel (%p267) target = $region44
    $region43: #{gcn_node_classifier.2} parent=5 // pred_region
      %s271 = ssub.s32 %s12, 1
      %s272 = smul.u32 32, %s21
      %p273 = scmp.lt.s32.totalorder %s272, 63
      %s274 = scalar_select %p273, %s272, 63
      %s275 = smul.addr %s274, 8
      %s276 = scalar_lea.vmem %s0, %s275
      %p277 = pneg %p50
      %p278 = pneg %p47
      %s279 = smul.u32 32, %s21
      %p280 = scmp.lt.s32.totalorder %s279, 63
      %s281 = scalar_select %p280, %s279, 63
      %s282 = smul.addr %s281, 8
      %s283 = scalar_lea.vmem %s1, %s282
      %p284 = pneg %p76
      %p285 = pneg %p73
      %s286 = smul.u32 8, %s21
      %s287 = smul.u32 4, %s22
      %p288 = scmp.lt.s32.totalorder %s286, 15
      %s289 = scalar_select %p288, %s286, 15
      %p290 = scmp.lt.s32.totalorder %s287, 3
      %s291 = scalar_select %p290, %s287, 3
      %s292 = smul.addr %s289, 4
      %s293 = sadd.s32 %s291, %s292
      %s294 = smul.addr %s293, 8
      %s295 = scalar_lea.vmem %s2, %s294
      %p296 = pneg %p104
      %p297 = pneg %p101
      %s298 = smul.u32 64, %s22
      %p299 = scmp.lt.s32.totalorder %s298, 63
      %s300 = scalar_select %p299, %s298, 63
      %s301 = smul.addr %s300, 4
      %s302 = scalar_lea.vmem %s3, %s301
      %p303 = pneg %p130
      %p304 = pneg %p127
      %p305 = pneg %p151
      %p306 = pneg %p148
      %p307 = pneg %p172
      %p308 = pneg %p169
      %p309 = pneg %p198
      %p310 = pneg %p195
      %s311 = smul.u32 32, %s21
      %p312 = scmp.lt.s32.totalorder %s311, 63
      %s313 = scalar_select %p312, %s311, 63
      %s314 = smul.addr %s313, 4
      %s315 = scalar_lea.vmem %s6, %s314
      %s316 = smul.u32 32, %s21
      %p317 = scmp.lt.s32.totalorder %s316, 63
      %s318 = scalar_select %p317, %s316, 63
      %s319 = smul.addr %s318, 8
      %s320 = scalar_lea.vmem %s0, %s319
      %s321 = smul.u32 32, %s21
      %s322 = smul.u32 32, %s21
      %p323 = scmp.lt.s32.totalorder %s322, 63
      %s324 = scalar_select %p323, %s322, 63
      %s325 = smul.addr %s324, 8
      %s326 = scalar_lea.vmem %s1, %s325
      %s327 = smul.u32 32, %s21
      %s328 = smul.u32 8, %s21
      %s329 = smul.u32 4, %s22
      %p330 = scmp.lt.s32.totalorder %s328, 15
      %s331 = scalar_select %p330, %s328, 15
      %p332 = scmp.lt.s32.totalorder %s329, 3
      %s333 = scalar_select %p332, %s329, 3
      %s334 = smul.addr %s331, 4
      %s335 = sadd.s32 %s333, %s334
      %s336 = smul.addr %s335, 8
      %s337 = scalar_lea.vmem %s2, %s336
      %s338 = smul.u32 8, %s21
      %s339 = smul.u32 4, %s22
      %s340 = smul.u32 64, %s22
      %p341 = scmp.lt.s32.totalorder %s340, 63
      %s342 = scalar_select %p341, %s340, 63
      %s343 = smul.addr %s342, 4
      %s344 = scalar_lea.vmem %s3, %s343
      %s345 = smul.u32 64, %s22
      %s346 = smul.u32 32, %s21
      %p347 = scmp.lt.s32.totalorder %s346, 63
      %s348 = scalar_select %p347, %s346, 63
      %s349 = smul.addr %s348, 4
      %s350 = scalar_lea.vmem %s6, %s349
      %s351 = smul.u32 32, %s21
      %p352 = scmp.eq.s32.totalorder %s22, 0
      // Predicated region
      $region45: #{gcn_node_classifier.2} parent=43 // pred_check
        %p353 = pneg %p352
      $region46: #{gcn_node_classifier.2} parent=43 // pred_check_branch
        %355 = sbr.rel (%p353) target = $region48
      $region47: #{gcn_node_classifier.2} parent=43 // pred_region
        %356 = vst [vmem:[#allocation2] sm:$0xff] 0.0
        %357 = vst [vmem:[#allocation2 + $0x8] sm:$0xff] 0.0
        %358 = vst [vmem:[#allocation2 + $0x10] sm:$0xff] 0.0
        %359 = vst [vmem:[#allocation2 + $0x18] sm:$0xff] 0.0
        %360 = vst [vmem:[#allocation2 + $0x20] sm:$0xff] 0.0
        %361 = vst [vmem:[#allocation2 + $0x28] sm:$0xff] 0.0
        %362 = vst [vmem:[#allocation2 + $0x30] sm:$0xff] 0.0
        %363 = vst [vmem:[#allocation2 + $0x38] sm:$0xff] 0.0
        %364 = vst [vmem:[#allocation2 + $0x40] sm:$0xff] 0.0
        %365 = vst [vmem:[#allocation2 + $0x48] sm:$0xff] 0.0
        %366 = vst [vmem:[#allocation2 + $0x50] sm:$0xff] 0.0
        %367 = vst [vmem:[#allocation2 + $0x58] sm:$0xff] 0.0
        %368 = vst [vmem:[#allocation2 + $0x60] sm:$0xff] 0.0
        %369 = vst [vmem:[#allocation2 + $0x68] sm:$0xff] 0.0
        %370 = vst [vmem:[#allocation2 + $0x70] sm:$0xff] 0.0
        %371 = vst [vmem:[#allocation2 + $0x78] sm:$0xff] 0.0
        %372 = vst [vmem:[#allocation2 + $0x80] sm:$0xff] 0.0
        %373 = vst [vmem:[#allocation2 + $0x88] sm:$0xff] 0.0
        %374 = vst [vmem:[#allocation2 + $0x90] sm:$0xff] 0.0
        %375 = vst [vmem:[#allocation2 + $0x98] sm:$0xff] 0.0
        %376 = vst [vmem:[#allocation2 + $0xa0] sm:$0xff] 0.0
        %377 = vst [vmem:[#allocation2 + $0xa8] sm:$0xff] 0.0
        %378 = vst [vmem:[#allocation2 + $0xb0] sm:$0xff] 0.0
        %379 = vst [vmem:[#allocation2 + $0xb8] sm:$0xff] 0.0
        %380 = vst [vmem:[#allocation2 + $0xc0] sm:$0xff] 0.0
        %381 = vst [vmem:[#allocation2 + $0xc8] sm:$0xff] 0.0
        %382 = vst [vmem:[#allocation2 + $0xd0] sm:$0xff] 0.0
        %383 = vst [vmem:[#allocation2 + $0xd8] sm:$0xff] 0.0
        %384 = vst [vmem:[#allocation2 + $0xe0] sm:$0xff] 0.0
        %385 = vst [vmem:[#allocation2 + $0xe8] sm:$0xff] 0.0
        %386 = vst [vmem:[#allocation2 + $0xf0] sm:$0xff] 0.0
        %387 = vst [vmem:[#allocation2 + $0xf8] sm:$0xff] 0.0
      $region48: #{gcn_node_classifier.2} parent=43 // pred_fallthru
        _
      %v388 = vld [vmem:[#allocation2] sm:$0xff]
      %v389 = vld [vmem:[#allocation2 + $0x8] sm:$0xff]
      %v390 = vld [vmem:[#allocation2 + $0x10] sm:$0xff]
      %v391 = vld [vmem:[#allocation2 + $0x18] sm:$0xff]
      %v392 = vld [vmem:[#allocation2 + $0x20] sm:$0xff]
      %v393 = vld [vmem:[#allocation2 + $0x28] sm:$0xff]
      %v394 = vld [vmem:[#allocation2 + $0x30] sm:$0xff]
      %v395 = vld [vmem:[#allocation2 + $0x38] sm:$0xff]
      %v396 = vld [vmem:[#allocation2 + $0x40] sm:$0xff]
      %v397 = vld [vmem:[#allocation2 + $0x48] sm:$0xff]
      %v398 = vld [vmem:[#allocation2 + $0x50] sm:$0xff]
      %v399 = vld [vmem:[#allocation2 + $0x58] sm:$0xff]
      %v400 = vld [vmem:[#allocation2 + $0x60] sm:$0xff]
      %v401 = vld [vmem:[#allocation2 + $0x68] sm:$0xff]
      %v402 = vld [vmem:[#allocation2 + $0x70] sm:$0xff]
      %v403 = vld [vmem:[#allocation2 + $0x78] sm:$0xff]
      %v404 = vld [vmem:[#allocation2 + $0x80] sm:$0xff]
      %v405 = vld [vmem:[#allocation2 + $0x88] sm:$0xff]
      %v406 = vld [vmem:[#allocation2 + $0x90] sm:$0xff]
      %v407 = vld [vmem:[#allocation2 + $0x98] sm:$0xff]
      %v408 = vld [vmem:[#allocation2 + $0xa0] sm:$0xff]
      %v409 = vld [vmem:[#allocation2 + $0xa8] sm:$0xff]
      %v410 = vld [vmem:[#allocation2 + $0xb0] sm:$0xff]
      %v411 = vld [vmem:[#allocation2 + $0xb8] sm:$0xff]
      %v412 = vld [vmem:[#allocation2 + $0xc0] sm:$0xff]
      %v413 = vld [vmem:[#allocation2 + $0xc8] sm:$0xff]
      %v414 = vld [vmem:[#allocation2 + $0xd0] sm:$0xff]
      %v415 = vld [vmem:[#allocation2 + $0xd8] sm:$0xff]
      %v416 = vld [vmem:[#allocation2 + $0xe0] sm:$0xff]
      %v417 = vld [vmem:[#allocation2 + $0xe8] sm:$0xff]
      %v418 = vld [vmem:[#allocation2 + $0xf0] sm:$0xff]
      %v419 = vld [vmem:[#allocation2 + $0xf8] sm:$0xff]
      %v420 = vld [vmem:[%s337] sm:$0xff]
      %v421 = vld [vmem:[%s337 + $0x8] sm:$0xff]
      %v422 = vld [vmem:[%s337 + $0x10] sm:$0xff]
      %v423 = vld [vmem:[%s337 + $0x18] sm:$0xff]
      %v424 = vld [vmem:[%s337 + $0x20] sm:$0xff]
      %v425 = vld [vmem:[%s337 + $0x28] sm:$0xff]
      %v426 = vld [vmem:[%s337 + $0x30] sm:$0xff]
      %v427 = vld [vmem:[%s337 + $0x38] sm:$0xff]
      %v428 = vld [vmem:[%s337 + $0x40] sm:$0xff]
      %v429 = vld [vmem:[%s337 + $0x48] sm:$0xff]
      %v430 = vld [vmem:[%s337 + $0x50] sm:$0xff]
      %v431 = vld [vmem:[%s337 + $0x58] sm:$0xff]
      %v432 = vld [vmem:[%s337 + $0x60] sm:$0xff]
      %v433 = vld [vmem:[%s337 + $0x68] sm:$0xff]
      %v434 = vld [vmem:[%s337 + $0x70] sm:$0xff]
      %v435 = vld [vmem:[%s337 + $0x78] sm:$0xff]
      %v436 = vld [vmem:[%s337 + $0x80] sm:$0xff]
      %v437 = vld [vmem:[%s337 + $0x88] sm:$0xff]
      %v438 = vld [vmem:[%s337 + $0x90] sm:$0xff]
      %v439 = vld [vmem:[%s337 + $0x98] sm:$0xff]
      %v440 = vld [vmem:[%s337 + $0xa0] sm:$0xff]
      %v441 = vld [vmem:[%s337 + $0xa8] sm:$0xff]
      %v442 = vld [vmem:[%s337 + $0xb0] sm:$0xff]
      %v443 = vld [vmem:[%s337 + $0xb8] sm:$0xff]
      %v444 = vld [vmem:[%s337 + $0xc0] sm:$0xff]
      %v445 = vld [vmem:[%s337 + $0xc8] sm:$0xff]
      %v446 = vld [vmem:[%s337 + $0xd0] sm:$0xff]
      %v447 = vld [vmem:[%s337 + $0xd8] sm:$0xff]
      %v448 = vld [vmem:[%s337 + $0xe0] sm:$0xff]
      %v449 = vld [vmem:[%s337 + $0xe8] sm:$0xff]
      %v450 = vld [vmem:[%s337 + $0xf0] sm:$0xff]
      %v451 = vld [vmem:[%s337 + $0xf8] sm:$0xff]
      %v452 = vunpack.c.0.s8 %v420
      %v453 = vunpack.c.0.s8 %v421
      %v454 = vunpack.c.0.s8 %v422
      %v455 = vunpack.c.0.s8 %v423
      %v456 = vunpack.c.1.s8 %v420
      %v457 = vunpack.c.1.s8 %v421
      %v458 = vunpack.c.1.s8 %v422
      %v459 = vunpack.c.1.s8 %v423
      %v460 = vunpack.c.2.s8 %v420
      %v461 = vunpack.c.2.s8 %v421
      %v462 = vunpack.c.2.s8 %v422
      %v463 = vunpack.c.2.s8 %v423
      %v464 = vunpack.c.3.s8 %v420
      %v465 = vunpack.c.3.s8 %v421
      %v466 = vunpack.c.3.s8 %v422
      %v467 = vunpack.c.3.s8 %v423
      %v468 = vunpack.c.0.s8 %v424
      %v469 = vunpack.c.0.s8 %v425
      %v470 = vunpack.c.0.s8 %v426
      %v471 = vunpack.c.0.s8 %v427
      %v472 = vunpack.c.1.s8 %v424
      %v473 = vunpack.c.1.s8 %v425
      %v474 = vunpack.c.1.s8 %v426
      %v475 = vunpack.c.1.s8 %v427
      %v476 = vunpack.c.2.s8 %v424
      %v477 = vunpack.c.2.s8 %v425
      %v478 = vunpack.c.2.s8 %v426
      %v479 = vunpack.c.2.s8 %v427
      %v480 = vunpack.c.3.s8 %v424
      %v481 = vunpack.c.3.s8 %v425
      %v482 = vunpack.c.3.s8 %v426
      %v483 = vunpack.c.3.s8 %v427
      %v484 = vunpack.c.0.s8 %v428
      %v485 = vunpack.c.0.s8 %v429
      %v486 = vunpack.c.0.s8 %v430
      %v487 = vunpack.c.0.s8 %v431
      %v488 = vunpack.c.1.s8 %v428
      %v489 = vunpack.c.1.s8 %v429
      %v490 = vunpack.c.1.s8 %v430
      %v491 = vunpack.c.1.s8 %v431
      %v492 = vunpack.c.2.s8 %v428
      %v493 = vunpack.c.2.s8 %v429
      %v494 = vunpack.c.2.s8 %v430
      %v495 = vunpack.c.2.s8 %v431
      %v496 = vunpack.c.3.s8 %v428
      %v497 = vunpack.c.3.s8 %v429
      %v498 = vunpack.c.3.s8 %v430
      %v499 = vunpack.c.3.s8 %v431
      %v500 = vunpack.c.0.s8 %v432
      %v501 = vunpack.c.0.s8 %v433
      %v502 = vunpack.c.0.s8 %v434
      %v503 = vunpack.c.0.s8 %v435
      %v504 = vunpack.c.1.s8 %v432
      %v505 = vunpack.c.1.s8 %v433
      %v506 = vunpack.c.1.s8 %v434
      %v507 = vunpack.c.1.s8 %v435
      %v508 = vunpack.c.2.s8 %v432
      %v509 = vunpack.c.2.s8 %v433
      %v510 = vunpack.c.2.s8 %v434
      %v511 = vunpack.c.2.s8 %v435
      %v512 = vunpack.c.3.s8 %v432
      %v513 = vunpack.c.3.s8 %v433
      %v514 = vunpack.c.3.s8 %v434
      %v515 = vunpack.c.3.s8 %v435
      %v516 = vunpack.c.0.s8 %v436
      %v517 = vunpack.c.0.s8 %v437
      %v518 = vunpack.c.0.s8 %v438
      %v519 = vunpack.c.0.s8 %v439
      %v520 = vunpack.c.1.s8 %v436
      %v521 = vunpack.c.1.s8 %v437
      %v522 = vunpack.c.1.s8 %v438
      %v523 = vunpack.c.1.s8 %v439
      %v524 = vunpack.c.2.s8 %v436
      %v525 = vunpack.c.2.s8 %v437
      %v526 = vunpack.c.2.s8 %v438
      %v527 = vunpack.c.2.s8 %v439
      %v528 = vunpack.c.3.s8 %v436
      %v529 = vunpack.c.3.s8 %v437
      %v530 = vunpack.c.3.s8 %v438
      %v531 = vunpack.c.3.s8 %v439
      %v532 = vunpack.c.0.s8 %v440
      %v533 = vunpack.c.0.s8 %v441
      %v534 = vunpack.c.0.s8 %v442
      %v535 = vunpack.c.0.s8 %v443
      %v536 = vunpack.c.1.s8 %v440
      %v537 = vunpack.c.1.s8 %v441
      %v538 = vunpack.c.1.s8 %v442
      %v539 = vunpack.c.1.s8 %v443
      %v540 = vunpack.c.2.s8 %v440
      %v541 = vunpack.c.2.s8 %v441
      %v542 = vunpack.c.2.s8 %v442
      %v543 = vunpack.c.2.s8 %v443
      %v544 = vunpack.c.3.s8 %v440
      %v545 = vunpack.c.3.s8 %v441
      %v546 = vunpack.c.3.s8 %v442
      %v547 = vunpack.c.3.s8 %v443
      %v548 = vunpack.c.0.s8 %v444
      %v549 = vunpack.c.0.s8 %v445
      %v550 = vunpack.c.0.s8 %v446
      %v551 = vunpack.c.0.s8 %v447
      %v552 = vunpack.c.1.s8 %v444
      %v553 = vunpack.c.1.s8 %v445
      %v554 = vunpack.c.1.s8 %v446
      %v555 = vunpack.c.1.s8 %v447
      %v556 = vunpack.c.2.s8 %v444
      %v557 = vunpack.c.2.s8 %v445
      %v558 = vunpack.c.2.s8 %v446
      %v559 = vunpack.c.2.s8 %v447
      %v560 = vunpack.c.3.s8 %v444
      %v561 = vunpack.c.3.s8 %v445
      %v562 = vunpack.c.3.s8 %v446
      %v563 = vunpack.c.3.s8 %v447
      %v564 = vunpack.c.0.s8 %v448
      %v565 = vunpack.c.0.s8 %v449
      %v566 = vunpack.c.0.s8 %v450
      %v567 = vunpack.c.0.s8 %v451
      %v568 = vunpack.c.1.s8 %v448
      %v569 = vunpack.c.1.s8 %v449
      %v570 = vunpack.c.1.s8 %v450
      %v571 = vunpack.c.1.s8 %v451
      %v572 = vunpack.c.2.s8 %v448
      %v573 = vunpack.c.2.s8 %v449
      %v574 = vunpack.c.2.s8 %v450
      %v575 = vunpack.c.2.s8 %v451
      %v576 = vunpack.c.3.s8 %v448
      %v577 = vunpack.c.3.s8 %v449
      %v578 = vunpack.c.3.s8 %v450
      %v579 = vunpack.c.3.s8 %v451
      %v580 = vcvt.s32.f32 %v452
      %v581 = vcvt.s32.f32 %v453
      %v582 = vcvt.s32.f32 %v454
      %v583 = vcvt.s32.f32 %v455
      %v584 = vcvt.s32.f32 %v456
      %v585 = vcvt.s32.f32 %v457
      %v586 = vcvt.s32.f32 %v458
      %v587 = vcvt.s32.f32 %v459
      %v588 = vcvt.s32.f32 %v460
      %v589 = vcvt.s32.f32 %v461
      %v590 = vcvt.s32.f32 %v462
      %v591 = vcvt.s32.f32 %v463
      %v592 = vcvt.s32.f32 %v464
      %v593 = vcvt.s32.f32 %v465
      %v594 = vcvt.s32.f32 %v466
      %v595 = vcvt.s32.f32 %v467
      %v596 = vcvt.s32.f32 %v468
      %v597 = vcvt.s32.f32 %v469
      %v598 = vcvt.s32.f32 %v470
      %v599 = vcvt.s32.f32 %v471
      %v600 = vcvt.s32.f32 %v472
      %v601 = vcvt.s32.f32 %v473
      %v602 = vcvt.s32.f32 %v474
      %v603 = vcvt.s32.f32 %v475
      %v604 = vcvt.s32.f32 %v476
      %v605 = vcvt.s32.f32 %v477
      %v606 = vcvt.s32.f32 %v478
      %v607 = vcvt.s32.f32 %v479
      %v608 = vcvt.s32.f32 %v480
      %v609 = vcvt.s32.f32 %v481
      %v610 = vcvt.s32.f32 %v482
      %v611 = vcvt.s32.f32 %v483
      %v612 = vcvt.s32.f32 %v484
      %v613 = vcvt.s32.f32 %v485
      %v614 = vcvt.s32.f32 %v486
      %v615 = vcvt.s32.f32 %v487
      %v616 = vcvt.s32.f32 %v488
      %v617 = vcvt.s32.f32 %v489
      %v618 = vcvt.s32.f32 %v490
      %v619 = vcvt.s32.f32 %v491
      %v620 = vcvt.s32.f32 %v492
      %v621 = vcvt.s32.f32 %v493
      %v622 = vcvt.s32.f32 %v494
      %v623 = vcvt.s32.f32 %v495
      %v624 = vcvt.s32.f32 %v496
      %v625 = vcvt.s32.f32 %v497
      %v626 = vcvt.s32.f32 %v498
      %v627 = vcvt.s32.f32 %v499
      %v628 = vcvt.s32.f32 %v500
      %v629 = vcvt.s32.f32 %v501
      %v630 = vcvt.s32.f32 %v502
      %v631 = vcvt.s32.f32 %v503
      %v632 = vcvt.s32.f32 %v504
      %v633 = vcvt.s32.f32 %v505
      %v634 = vcvt.s32.f32 %v506
      %v635 = vcvt.s32.f32 %v507
      %v636 = vcvt.s32.f32 %v508
      %v637 = vcvt.s32.f32 %v509
      %v638 = vcvt.s32.f32 %v510
      %v639 = vcvt.s32.f32 %v511
      %v640 = vcvt.s32.f32 %v512
      %v641 = vcvt.s32.f32 %v513
      %v642 = vcvt.s32.f32 %v514
      %v643 = vcvt.s32.f32 %v515
      %v644 = vcvt.s32.f32 %v516
      %v645 = vcvt.s32.f32 %v517
      %v646 = vcvt.s32.f32 %v518
      %v647 = vcvt.s32.f32 %v519
      %v648 = vcvt.s32.f32 %v520
      %v649 = vcvt.s32.f32 %v521
      %v650 = vcvt.s32.f32 %v522
      %v651 = vcvt.s32.f32 %v523
      %v652 = vcvt.s32.f32 %v524
      %v653 = vcvt.s32.f32 %v525
      %v654 = vcvt.s32.f32 %v526
      %v655 = vcvt.s32.f32 %v527
      %v656 = vcvt.s32.f32 %v528
      %v657 = vcvt.s32.f32 %v529
      %v658 = vcvt.s32.f32 %v530
      %v659 = vcvt.s32.f32 %v531
      %v660 = vcvt.s32.f32 %v532
      %v661 = vcvt.s32.f32 %v533
      %v662 = vcvt.s32.f32 %v534
      %v663 = vcvt.s32.f32 %v535
      %v664 = vcvt.s32.f32 %v536
      %v665 = vcvt.s32.f32 %v537
      %v666 = vcvt.s32.f32 %v538
      %v667 = vcvt.s32.f32 %v539
      %v668 = vcvt.s32.f32 %v540
      %v669 = vcvt.s32.f32 %v541
      %v670 = vcvt.s32.f32 %v542
      %v671 = vcvt.s32.f32 %v543
      %v672 = vcvt.s32.f32 %v544
      %v673 = vcvt.s32.f32 %v545
      %v674 = vcvt.s32.f32 %v546
      %v675 = vcvt.s32.f32 %v547
      %v676 = vcvt.s32.f32 %v548
      %v677 = vcvt.s32.f32 %v549
      %v678 = vcvt.s32.f32 %v550
      %v679 = vcvt.s32.f32 %v551
      %v680 = vcvt.s32.f32 %v552
      %v681 = vcvt.s32.f32 %v553
      %v682 = vcvt.s32.f32 %v554
      %v683 = vcvt.s32.f32 %v555
      %v684 = vcvt.s32.f32 %v556
      %v685 = vcvt.s32.f32 %v557
      %v686 = vcvt.s32.f32 %v558
      %v687 = vcvt.s32.f32 %v559
      %v688 = vcvt.s32.f32 %v560
      %v689 = vcvt.s32.f32 %v561
      %v690 = vcvt.s32.f32 %v562
      %v691 = vcvt.s32.f32 %v563
      %v692 = vcvt.s32.f32 %v564
      %v693 = vcvt.s32.f32 %v565
      %v694 = vcvt.s32.f32 %v566
      %v695 = vcvt.s32.f32 %v567
      %v696 = vcvt.s32.f32 %v568
      %v697 = vcvt.s32.f32 %v569
      %v698 = vcvt.s32.f32 %v570
      %v699 = vcvt.s32.f32 %v571
      %v700 = vcvt.s32.f32 %v572
      %v701 = vcvt.s32.f32 %v573
      %v702 = vcvt.s32.f32 %v574
      %v703 = vcvt.s32.f32 %v575
      %v704 = vcvt.s32.f32 %v576
      %v705 = vcvt.s32.f32 %v577
      %v706 = vcvt.s32.f32 %v578
      %v707 = vcvt.s32.f32 %v579
      %v708 = vpack.c.bf16 %v584, %v580
      %v709 = vpack.c.bf16 %v585, %v581
      %v710 = vpack.c.bf16 %v586, %v582
      %v711 = vpack.c.bf16 %v587, %v583
      %v712 = vpack.c.bf16 %v592, %v588
      %v713 = vpack.c.bf16 %v593, %v589
      %v714 = vpack.c.bf16 %v594, %v590
      %v715 = vpack.c.bf16 %v595, %v591
      %v716 = vpack.c.bf16 %v600, %v596
      %v717 = vpack.c.bf16 %v601, %v597
      %v718 = vpack.c.bf16 %v602, %v598
      %v719 = vpack.c.bf16 %v603, %v599
      %v720 = vpack.c.bf16 %v608, %v604
      %v721 = vpack.c.bf16 %v609, %v605
      %v722 = vpack.c.bf16 %v610, %v606
      %v723 = vpack.c.bf16 %v611, %v607
      %v724 = vpack.c.bf16 %v616, %v612
      %v725 = vpack.c.bf16 %v617, %v613
      %v726 = vpack.c.bf16 %v618, %v614
      %v727 = vpack.c.bf16 %v619, %v615
      %v728 = vpack.c.bf16 %v624, %v620
      %v729 = vpack.c.bf16 %v625, %v621
      %v730 = vpack.c.bf16 %v626, %v622
      %v731 = vpack.c.bf16 %v627, %v623
      %v732 = vpack.c.bf16 %v632, %v628
      %v733 = vpack.c.bf16 %v633, %v629
      %v734 = vpack.c.bf16 %v634, %v630
      %v735 = vpack.c.bf16 %v635, %v631
      %v736 = vpack.c.bf16 %v640, %v636
      %v737 = vpack.c.bf16 %v641, %v637
      %v738 = vpack.c.bf16 %v642, %v638
      %v739 = vpack.c.bf16 %v643, %v639
      %v740 = vpack.c.bf16 %v648, %v644
      %v741 = vpack.c.bf16 %v649, %v645
      %v742 = vpack.c.bf16 %v650, %v646
      %v743 = vpack.c.bf16 %v651, %v647
      %v744 = vpack.c.bf16 %v656, %v652
      %v745 = vpack.c.bf16 %v657, %v653
      %v746 = vpack.c.bf16 %v658, %v654
      %v747 = vpack.c.bf16 %v659, %v655
      %v748 = vpack.c.bf16 %v664, %v660
      %v749 = vpack.c.bf16 %v665, %v661
      %v750 = vpack.c.bf16 %v666, %v662
      %v751 = vpack.c.bf16 %v667, %v663
      %v752 = vpack.c.bf16 %v672, %v668
      %v753 = vpack.c.bf16 %v673, %v669
      %v754 = vpack.c.bf16 %v674, %v670
      %v755 = vpack.c.bf16 %v675, %v671
      %v756 = vpack.c.bf16 %v680, %v676
      %v757 = vpack.c.bf16 %v681, %v677
      %v758 = vpack.c.bf16 %v682, %v678
      %v759 = vpack.c.bf16 %v683, %v679
      %v760 = vpack.c.bf16 %v688, %v684
      %v761 = vpack.c.bf16 %v689, %v685
      %v762 = vpack.c.bf16 %v690, %v686
      %v763 = vpack.c.bf16 %v691, %v687
      %v764 = vpack.c.bf16 %v696, %v692
      %v765 = vpack.c.bf16 %v697, %v693
      %v766 = vpack.c.bf16 %v698, %v694
      %v767 = vpack.c.bf16 %v699, %v695
      %v768 = vpack.c.bf16 %v704, %v700
      %v769 = vpack.c.bf16 %v705, %v701
      %v770 = vpack.c.bf16 %v706, %v702
      %v771 = vpack.c.bf16 %v707, %v703
      %v772 = vld [vmem:[%s344] sm:$0xf]
      %v773 = vld [vmem:[%s344 + $0x4] sm:$0xf]
      %v774 = vld [vmem:[%s344 + $0x8] sm:$0xf]
      %v775 = vld [vmem:[%s344 + $0xc] sm:$0xf]
      %v776 = vld [vmem:[%s344 + $0x10] sm:$0xf]
      %v777 = vld [vmem:[%s344 + $0x14] sm:$0xf]
      %v778 = vld [vmem:[%s344 + $0x18] sm:$0xf]
      %v779 = vld [vmem:[%s344 + $0x1c] sm:$0xf]
      %v780 = vld [vmem:[%s344 + $0x20] sm:$0xf]
      %v781 = vld [vmem:[%s344 + $0x24] sm:$0xf]
      %v782 = vld [vmem:[%s344 + $0x28] sm:$0xf]
      %v783 = vld [vmem:[%s344 + $0x2c] sm:$0xf]
      %v784 = vld [vmem:[%s344 + $0x30] sm:$0xf]
      %v785 = vld [vmem:[%s344 + $0x34] sm:$0xf]
      %v786 = vld [vmem:[%s344 + $0x38] sm:$0xf]
      %v787 = vld [vmem:[%s344 + $0x3c] sm:$0xf]
      %v788 = vld [vmem:[%s344 + $0x40] sm:$0xf]
      %v789 = vld [vmem:[%s344 + $0x44] sm:$0xf]
      %v790 = vld [vmem:[%s344 + $0x48] sm:$0xf]
      %v791 = vld [vmem:[%s344 + $0x4c] sm:$0xf]
      %v792 = vld [vmem:[%s344 + $0x50] sm:$0xf]
      %v793 = vld [vmem:[%s344 + $0x54] sm:$0xf]
      %v794 = vld [vmem:[%s344 + $0x58] sm:$0xf]
      %v795 = vld [vmem:[%s344 + $0x5c] sm:$0xf]
      %v796 = vld [vmem:[%s344 + $0x60] sm:$0xf]
      %v797 = vld [vmem:[%s344 + $0x64] sm:$0xf]
      %v798 = vld [vmem:[%s344 + $0x68] sm:$0xf]
      %v799 = vld [vmem:[%s344 + $0x6c] sm:$0xf]
      %v800 = vld [vmem:[%s344 + $0x70] sm:$0xf]
      %v801 = vld [vmem:[%s344 + $0x74] sm:$0xf]
      %v802 = vld [vmem:[%s344 + $0x78] sm:$0xf]
      %v803 = vld [vmem:[%s344 + $0x7c] sm:$0xf]
      %v804 = vld [vmem:[%s344 + $0x80] sm:$0xf]
      %v805 = vld [vmem:[%s344 + $0x84] sm:$0xf]
      %v806 = vld [vmem:[%s344 + $0x88] sm:$0xf]
      %v807 = vld [vmem:[%s344 + $0x8c] sm:$0xf]
      %v808 = vld [vmem:[%s344 + $0x90] sm:$0xf]
      %v809 = vld [vmem:[%s344 + $0x94] sm:$0xf]
      %v810 = vld [vmem:[%s344 + $0x98] sm:$0xf]
      %v811 = vld [vmem:[%s344 + $0x9c] sm:$0xf]
      %v812 = vld [vmem:[%s344 + $0xa0] sm:$0xf]
      %v813 = vld [vmem:[%s344 + $0xa4] sm:$0xf]
      %v814 = vld [vmem:[%s344 + $0xa8] sm:$0xf]
      %v815 = vld [vmem:[%s344 + $0xac] sm:$0xf]
      %v816 = vld [vmem:[%s344 + $0xb0] sm:$0xf]
      %v817 = vld [vmem:[%s344 + $0xb4] sm:$0xf]
      %v818 = vld [vmem:[%s344 + $0xb8] sm:$0xf]
      %v819 = vld [vmem:[%s344 + $0xbc] sm:$0xf]
      %v820 = vld [vmem:[%s344 + $0xc0] sm:$0xf]
      %v821 = vld [vmem:[%s344 + $0xc4] sm:$0xf]
      %v822 = vld [vmem:[%s344 + $0xc8] sm:$0xf]
      %v823 = vld [vmem:[%s344 + $0xcc] sm:$0xf]
      %v824 = vld [vmem:[%s344 + $0xd0] sm:$0xf]
      %v825 = vld [vmem:[%s344 + $0xd4] sm:$0xf]
      %v826 = vld [vmem:[%s344 + $0xd8] sm:$0xf]
      %v827 = vld [vmem:[%s344 + $0xdc] sm:$0xf]
      %v828 = vld [vmem:[%s344 + $0xe0] sm:$0xf]
      %v829 = vld [vmem:[%s344 + $0xe4] sm:$0xf]
      %v830 = vld [vmem:[%s344 + $0xe8] sm:$0xf]
      %v831 = vld [vmem:[%s344 + $0xec] sm:$0xf]
      %v832 = vld [vmem:[%s344 + $0xf0] sm:$0xf]
      %v833 = vld [vmem:[%s344 + $0xf4] sm:$0xf]
      %v834 = vld [vmem:[%s344 + $0xf8] sm:$0xf]
      %v835 = vld [vmem:[%s344 + $0xfc] sm:$0xf]
      %v900 = vunpack.c.l.b16 %v772
      %v901 = vunpack.c.l.b16 %v773
      %v902 = vunpack.c.l.b16 %v774
      %v903 = vunpack.c.l.b16 %v775
      %v904 = vunpack.c.l.b16 %v776
      %v905 = vunpack.c.l.b16 %v777
      %v906 = vunpack.c.l.b16 %v778
      %v907 = vunpack.c.l.b16 %v779
      %v908 = vunpack.c.l.b16 %v780
      %v909 = vunpack.c.l.b16 %v781
      %v910 = vunpack.c.l.b16 %v782
      %v911 = vunpack.c.l.b16 %v783
      %v912 = vunpack.c.l.b16 %v784
      %v913 = vunpack.c.l.b16 %v785
      %v914 = vunpack.c.l.b16 %v786
      %v915 = vunpack.c.l.b16 %v787
      %v916 = vunpack.c.l.b16 %v788
      %v917 = vunpack.c.l.b16 %v789
      %v918 = vunpack.c.l.b16 %v790
      %v919 = vunpack.c.l.b16 %v791
      %v920 = vunpack.c.l.b16 %v792
      %v921 = vunpack.c.l.b16 %v793
      %v922 = vunpack.c.l.b16 %v794
      %v923 = vunpack.c.l.b16 %v795
      %v924 = vunpack.c.l.b16 %v796
      %v925 = vunpack.c.l.b16 %v797
      %v926 = vunpack.c.l.b16 %v798
      %v927 = vunpack.c.l.b16 %v799
      %v928 = vunpack.c.l.b16 %v800
      %v929 = vunpack.c.l.b16 %v801
      %v930 = vunpack.c.l.b16 %v802
      %v931 = vunpack.c.l.b16 %v803
      %v932 = vunpack.c.l.b16 %v804
      %v933 = vunpack.c.l.b16 %v805
      %v934 = vunpack.c.l.b16 %v806
      %v935 = vunpack.c.l.b16 %v807
      %v936 = vunpack.c.l.b16 %v808
      %v937 = vunpack.c.l.b16 %v809
      %v938 = vunpack.c.l.b16 %v810
      %v939 = vunpack.c.l.b16 %v811
      %v940 = vunpack.c.l.b16 %v812
      %v941 = vunpack.c.l.b16 %v813
      %v942 = vunpack.c.l.b16 %v814
      %v943 = vunpack.c.l.b16 %v815
      %v944 = vunpack.c.l.b16 %v816
      %v945 = vunpack.c.l.b16 %v817
      %v946 = vunpack.c.l.b16 %v818
      %v947 = vunpack.c.l.b16 %v819
      %v948 = vunpack.c.l.b16 %v820
      %v949 = vunpack.c.l.b16 %v821
      %v950 = vunpack.c.l.b16 %v822
      %v951 = vunpack.c.l.b16 %v823
      %v952 = vunpack.c.l.b16 %v824
      %v953 = vunpack.c.l.b16 %v825
      %v954 = vunpack.c.l.b16 %v826
      %v955 = vunpack.c.l.b16 %v827
      %v956 = vunpack.c.l.b16 %v828
      %v957 = vunpack.c.l.b16 %v829
      %v958 = vunpack.c.l.b16 %v830
      %v959 = vunpack.c.l.b16 %v831
      %v960 = vunpack.c.l.b16 %v832
      %v961 = vunpack.c.l.b16 %v833
      %v962 = vunpack.c.l.b16 %v834
      %v963 = vunpack.c.l.b16 %v835
      %v964 = vpack.c.b16 %v901, %v900
      %v965 = vpack.c.b16 %v903, %v902
      %v966 = vpack.c.b16 %v905, %v904
      %v967 = vpack.c.b16 %v907, %v906
      %v968 = vpack.c.b16 %v909, %v908
      %v969 = vpack.c.b16 %v911, %v910
      %v970 = vpack.c.b16 %v913, %v912
      %v971 = vpack.c.b16 %v915, %v914
      %v972 = vpack.c.b16 %v917, %v916
      %v973 = vpack.c.b16 %v919, %v918
      %v974 = vpack.c.b16 %v921, %v920
      %v975 = vpack.c.b16 %v923, %v922
      %v976 = vpack.c.b16 %v925, %v924
      %v977 = vpack.c.b16 %v927, %v926
      %v978 = vpack.c.b16 %v929, %v928
      %v979 = vpack.c.b16 %v931, %v930
      %v980 = vpack.c.b16 %v933, %v932
      %v981 = vpack.c.b16 %v935, %v934
      %v982 = vpack.c.b16 %v937, %v936
      %v983 = vpack.c.b16 %v939, %v938
      %v984 = vpack.c.b16 %v941, %v940
      %v985 = vpack.c.b16 %v943, %v942
      %v986 = vpack.c.b16 %v945, %v944
      %v987 = vpack.c.b16 %v947, %v946
      %v988 = vpack.c.b16 %v949, %v948
      %v989 = vpack.c.b16 %v951, %v950
      %v990 = vpack.c.b16 %v953, %v952
      %v991 = vpack.c.b16 %v955, %v954
      %v992 = vpack.c.b16 %v957, %v956
      %v993 = vpack.c.b16 %v959, %v958
      %v994 = vpack.c.b16 %v961, %v960
      %v995 = vpack.c.b16 %v963, %v962
      %1028 = vmatpush.bf16.msra.mxu0 %v971
      %1029 = vmatpush.bf16.msra.mxu0 %v970
      %1030 = vmatpush.bf16.msra.mxu0 %v969
      %1031 = vmatpush.bf16.msra.mxu0 %v968
      %1032 = vmatpush.bf16.msra.mxu0 %v967
      %1033 = vmatpush.bf16.msra.mxu0 %v966
      %1034 = vmatpush.bf16.msra.mxu0 %v965
      %1035 = vmatpush.bf16.msra.mxu0 %v964
      %1036 = vmatmul.bf16.gmra.mxu0 %v708
      %v1037 = vpop.f32.mrf.mxu0
      %v1038 = vadd.f32 0.0, %v1037
      %v1039 = vpop.f32.mrf.mxu0
      %v1040 = vadd.f32 0.0, %v1039
      %1041 = vmatmul.bf16.gmra.mxu0 %v712
      %v1042 = vpop.f32.mrf.mxu0
      %v1043 = vadd.f32 0.0, %v1042
      %v1044 = vpop.f32.mrf.mxu0
      %v1045 = vadd.f32 0.0, %v1044
      %1046 = vmatmul.bf16.gmra.mxu0 %v716
      %v1047 = vpop.f32.mrf.mxu0
      %v1048 = vadd.f32 0.0, %v1047
      %v1049 = vpop.f32.mrf.mxu0
      %v1050 = vadd.f32 0.0, %v1049
      %1051 = vmatmul.bf16.gmra.mxu0 %v720
      %v1052 = vpop.f32.mrf.mxu0
      %v1053 = vadd.f32 0.0, %v1052
      %v1054 = vpop.f32.mrf.mxu0
      %v1055 = vadd.f32 0.0, %v1054
      %1056 = vmatmul.bf16.gmra.mxu0 %v724
      %v1057 = vpop.f32.mrf.mxu0
      %v1058 = vadd.f32 0.0, %v1057
      %v1059 = vpop.f32.mrf.mxu0
      %v1060 = vadd.f32 0.0, %v1059
      %1061 = vmatmul.bf16.gmra.mxu0 %v728
      %v1062 = vpop.f32.mrf.mxu0
      %v1063 = vadd.f32 0.0, %v1062
      %v1064 = vpop.f32.mrf.mxu0
      %v1065 = vadd.f32 0.0, %v1064
      %1066 = vmatmul.bf16.gmra.mxu0 %v732
      %v1067 = vpop.f32.mrf.mxu0
      %v1068 = vadd.f32 0.0, %v1067
      %v1069 = vpop.f32.mrf.mxu0
      %v1070 = vadd.f32 0.0, %v1069
      %1071 = vmatmul.bf16.gmra.mxu0 %v736
      %v1072 = vpop.f32.mrf.mxu0
      %v1073 = vadd.f32 0.0, %v1072
      %v1074 = vpop.f32.mrf.mxu0
      %v1075 = vadd.f32 0.0, %v1074
      %1076 = vmatmul.bf16.gmra.mxu0 %v740
      %v1077 = vpop.f32.mrf.mxu0
      %v1078 = vadd.f32 0.0, %v1077
      %v1079 = vpop.f32.mrf.mxu0
      %v1080 = vadd.f32 0.0, %v1079
      %1081 = vmatmul.bf16.gmra.mxu0 %v744
      %v1082 = vpop.f32.mrf.mxu0
      %v1083 = vadd.f32 0.0, %v1082
      %v1084 = vpop.f32.mrf.mxu0
      %v1085 = vadd.f32 0.0, %v1084
      %1086 = vmatmul.bf16.gmra.mxu0 %v748
      %v1087 = vpop.f32.mrf.mxu0
      %v1088 = vadd.f32 0.0, %v1087
      %v1089 = vpop.f32.mrf.mxu0
      %v1090 = vadd.f32 0.0, %v1089
      %1091 = vmatmul.bf16.gmra.mxu0 %v752
      %v1092 = vpop.f32.mrf.mxu0
      %v1093 = vadd.f32 0.0, %v1092
      %v1094 = vpop.f32.mrf.mxu0
      %v1095 = vadd.f32 0.0, %v1094
      %1096 = vmatmul.bf16.gmra.mxu0 %v756
      %v1097 = vpop.f32.mrf.mxu0
      %v1098 = vadd.f32 0.0, %v1097
      %v1099 = vpop.f32.mrf.mxu0
      %v1100 = vadd.f32 0.0, %v1099
      %1101 = vmatmul.bf16.gmra.mxu0 %v760
      %v1102 = vpop.f32.mrf.mxu0
      %v1103 = vadd.f32 0.0, %v1102
      %v1104 = vpop.f32.mrf.mxu0
      %v1105 = vadd.f32 0.0, %v1104
      %1106 = vmatmul.bf16.gmra.mxu0 %v764
      %v1107 = vpop.f32.mrf.mxu0
      %v1108 = vadd.f32 0.0, %v1107
      %v1109 = vpop.f32.mrf.mxu0
      %v1110 = vadd.f32 0.0, %v1109
      %1111 = vmatmul.bf16.gmra.mxu0 %v768
      %v1112 = vpop.f32.mrf.mxu0
      %v1113 = vadd.f32 0.0, %v1112
      %v1114 = vpop.f32.mrf.mxu0
      %v1115 = vadd.f32 0.0, %v1114
      %1116 = vdwg.mxu0
      %1117 = vmatpush.bf16.msra.mxu0 %v979
      %1118 = vmatpush.bf16.msra.mxu0 %v978
      %1119 = vmatpush.bf16.msra.mxu0 %v977
      %1120 = vmatpush.bf16.msra.mxu0 %v976
      %1121 = vmatpush.bf16.msra.mxu0 %v975
      %1122 = vmatpush.bf16.msra.mxu0 %v974
      %1123 = vmatpush.bf16.msra.mxu0 %v973
      %1124 = vmatpush.bf16.msra.mxu0 %v972
      %1125 = vmatmul.bf16.gmra.mxu0 %v709
      %v1126 = vpop.f32.mrf.mxu0
      %v1127 = vadd.f32 %v1038, %v1126
      %v1128 = vpop.f32.mrf.mxu0
      %v1129 = vadd.f32 %v1040, %v1128
      %1130 = vmatmul.bf16.gmra.mxu0 %v713
      %v1131 = vpop.f32.mrf.mxu0
      %v1132 = vadd.f32 %v1043, %v1131
      %v1133 = vpop.f32.mrf.mxu0
      %v1134 = vadd.f32 %v1045, %v1133
      %1135 = vmatmul.bf16.gmra.mxu0 %v717
      %v1136 = vpop.f32.mrf.mxu0
      %v1137 = vadd.f32 %v1048, %v1136
      %v1138 = vpop.f32.mrf.mxu0
      %v1139 = vadd.f32 %v1050, %v1138
      %1140 = vmatmul.bf16.gmra.mxu0 %v721
      %v1141 = vpop.f32.mrf.mxu0
      %v1142 = vadd.f32 %v1053, %v1141
      %v1143 = vpop.f32.mrf.mxu0
      %v1144 = vadd.f32 %v1055, %v1143
      %1145 = vmatmul.bf16.gmra.mxu0 %v725
      %v1146 = vpop.f32.mrf.mxu0
      %v1147 = vadd.f32 %v1058, %v1146
      %v1148 = vpop.f32.mrf.mxu0
      %v1149 = vadd.f32 %v1060, %v1148
      %1150 = vmatmul.bf16.gmra.mxu0 %v729
      %v1151 = vpop.f32.mrf.mxu0
      %v1152 = vadd.f32 %v1063, %v1151
      %v1153 = vpop.f32.mrf.mxu0
      %v1154 = vadd.f32 %v1065, %v1153
      %1155 = vmatmul.bf16.gmra.mxu0 %v733
      %v1156 = vpop.f32.mrf.mxu0
      %v1157 = vadd.f32 %v1068, %v1156
      %v1158 = vpop.f32.mrf.mxu0
      %v1159 = vadd.f32 %v1070, %v1158
      %1160 = vmatmul.bf16.gmra.mxu0 %v737
      %v1161 = vpop.f32.mrf.mxu0
      %v1162 = vadd.f32 %v1073, %v1161
      %v1163 = vpop.f32.mrf.mxu0
      %v1164 = vadd.f32 %v1075, %v1163
      %1165 = vmatmul.bf16.gmra.mxu0 %v741
      %v1166 = vpop.f32.mrf.mxu0
      %v1167 = vadd.f32 %v1078, %v1166
      %v1168 = vpop.f32.mrf.mxu0
      %v1169 = vadd.f32 %v1080, %v1168
      %1170 = vmatmul.bf16.gmra.mxu0 %v745
      %v1171 = vpop.f32.mrf.mxu0
      %v1172 = vadd.f32 %v1083, %v1171
      %v1173 = vpop.f32.mrf.mxu0
      %v1174 = vadd.f32 %v1085, %v1173
      %1175 = vmatmul.bf16.gmra.mxu0 %v749
      %v1176 = vpop.f32.mrf.mxu0
      %v1177 = vadd.f32 %v1088, %v1176
      %v1178 = vpop.f32.mrf.mxu0
      %v1179 = vadd.f32 %v1090, %v1178
      %1180 = vmatmul.bf16.gmra.mxu0 %v753
      %v1181 = vpop.f32.mrf.mxu0
      %v1182 = vadd.f32 %v1093, %v1181
      %v1183 = vpop.f32.mrf.mxu0
      %v1184 = vadd.f32 %v1095, %v1183
      %1185 = vmatmul.bf16.gmra.mxu0 %v757
      %v1186 = vpop.f32.mrf.mxu0
      %v1187 = vadd.f32 %v1098, %v1186
      %v1188 = vpop.f32.mrf.mxu0
      %v1189 = vadd.f32 %v1100, %v1188
      %1190 = vmatmul.bf16.gmra.mxu0 %v761
      %v1191 = vpop.f32.mrf.mxu0
      %v1192 = vadd.f32 %v1103, %v1191
      %v1193 = vpop.f32.mrf.mxu0
      %v1194 = vadd.f32 %v1105, %v1193
      %1195 = vmatmul.bf16.gmra.mxu0 %v765
      %v1196 = vpop.f32.mrf.mxu0
      %v1197 = vadd.f32 %v1108, %v1196
      %v1198 = vpop.f32.mrf.mxu0
      %v1199 = vadd.f32 %v1110, %v1198
      %1200 = vmatmul.bf16.gmra.mxu0 %v769
      %v1201 = vpop.f32.mrf.mxu0
      %v1202 = vadd.f32 %v1113, %v1201
      %v1203 = vpop.f32.mrf.mxu0
      %v1204 = vadd.f32 %v1115, %v1203
      %1205 = vdwg.mxu0
      %1206 = vmatpush.bf16.msra.mxu0 %v987
      %1207 = vmatpush.bf16.msra.mxu0 %v986
      %1208 = vmatpush.bf16.msra.mxu0 %v985
      %1209 = vmatpush.bf16.msra.mxu0 %v984
      %1210 = vmatpush.bf16.msra.mxu0 %v983
      %1211 = vmatpush.bf16.msra.mxu0 %v982
      %1212 = vmatpush.bf16.msra.mxu0 %v981
      %1213 = vmatpush.bf16.msra.mxu0 %v980
      %1214 = vmatmul.bf16.gmra.mxu0 %v710
      %v1215 = vpop.f32.mrf.mxu0
      %v1216 = vadd.f32 %v1127, %v1215
      %v1217 = vpop.f32.mrf.mxu0
      %v1218 = vadd.f32 %v1129, %v1217
      %1219 = vmatmul.bf16.gmra.mxu0 %v714
      %v1220 = vpop.f32.mrf.mxu0
      %v1221 = vadd.f32 %v1132, %v1220
      %v1222 = vpop.f32.mrf.mxu0
      %v1223 = vadd.f32 %v1134, %v1222
      %1224 = vmatmul.bf16.gmra.mxu0 %v718
      %v1225 = vpop.f32.mrf.mxu0
      %v1226 = vadd.f32 %v1137, %v1225
      %v1227 = vpop.f32.mrf.mxu0
      %v1228 = vadd.f32 %v1139, %v1227
      %1229 = vmatmul.bf16.gmra.mxu0 %v722
      %v1230 = vpop.f32.mrf.mxu0
      %v1231 = vadd.f32 %v1142, %v1230
      %v1232 = vpop.f32.mrf.mxu0
      %v1233 = vadd.f32 %v1144, %v1232
      %1234 = vmatmul.bf16.gmra.mxu0 %v726
      %v1235 = vpop.f32.mrf.mxu0
      %v1236 = vadd.f32 %v1147, %v1235
      %v1237 = vpop.f32.mrf.mxu0
      %v1238 = vadd.f32 %v1149, %v1237
      %1239 = vmatmul.bf16.gmra.mxu0 %v730
      %v1240 = vpop.f32.mrf.mxu0
      %v1241 = vadd.f32 %v1152, %v1240
      %v1242 = vpop.f32.mrf.mxu0
      %v1243 = vadd.f32 %v1154, %v1242
      %1244 = vmatmul.bf16.gmra.mxu0 %v734
      %v1245 = vpop.f32.mrf.mxu0
      %v1246 = vadd.f32 %v1157, %v1245
      %v1247 = vpop.f32.mrf.mxu0
      %v1248 = vadd.f32 %v1159, %v1247
      %1249 = vmatmul.bf16.gmra.mxu0 %v738
      %v1250 = vpop.f32.mrf.mxu0
      %v1251 = vadd.f32 %v1162, %v1250
      %v1252 = vpop.f32.mrf.mxu0
      %v1253 = vadd.f32 %v1164, %v1252
      %1254 = vmatmul.bf16.gmra.mxu0 %v742
      %v1255 = vpop.f32.mrf.mxu0
      %v1256 = vadd.f32 %v1167, %v1255
      %v1257 = vpop.f32.mrf.mxu0
      %v1258 = vadd.f32 %v1169, %v1257
      %1259 = vmatmul.bf16.gmra.mxu0 %v746
      %v1260 = vpop.f32.mrf.mxu0
      %v1261 = vadd.f32 %v1172, %v1260
      %v1262 = vpop.f32.mrf.mxu0
      %v1263 = vadd.f32 %v1174, %v1262
      %1264 = vmatmul.bf16.gmra.mxu0 %v750
      %v1265 = vpop.f32.mrf.mxu0
      %v1266 = vadd.f32 %v1177, %v1265
      %v1267 = vpop.f32.mrf.mxu0
      %v1268 = vadd.f32 %v1179, %v1267
      %1269 = vmatmul.bf16.gmra.mxu0 %v754
      %v1270 = vpop.f32.mrf.mxu0
      %v1271 = vadd.f32 %v1182, %v1270
      %v1272 = vpop.f32.mrf.mxu0
      %v1273 = vadd.f32 %v1184, %v1272
      %1274 = vmatmul.bf16.gmra.mxu0 %v758
      %v1275 = vpop.f32.mrf.mxu0
      %v1276 = vadd.f32 %v1187, %v1275
      %v1277 = vpop.f32.mrf.mxu0
      %v1278 = vadd.f32 %v1189, %v1277
      %1279 = vmatmul.bf16.gmra.mxu0 %v762
      %v1280 = vpop.f32.mrf.mxu0
      %v1281 = vadd.f32 %v1192, %v1280
      %v1282 = vpop.f32.mrf.mxu0
      %v1283 = vadd.f32 %v1194, %v1282
      %1284 = vmatmul.bf16.gmra.mxu0 %v766
      %v1285 = vpop.f32.mrf.mxu0
      %v1286 = vadd.f32 %v1197, %v1285
      %v1287 = vpop.f32.mrf.mxu0
      %v1288 = vadd.f32 %v1199, %v1287
      %1289 = vmatmul.bf16.gmra.mxu0 %v770
      %v1290 = vpop.f32.mrf.mxu0
      %v1291 = vadd.f32 %v1202, %v1290
      %v1292 = vpop.f32.mrf.mxu0
      %v1293 = vadd.f32 %v1204, %v1292
      %1294 = vdwg.mxu0
      %1295 = vmatpush.bf16.msra.mxu0 %v995
      %1296 = vmatpush.bf16.msra.mxu0 %v994
      %1297 = vmatpush.bf16.msra.mxu0 %v993
      %1298 = vmatpush.bf16.msra.mxu0 %v992
      %1299 = vmatpush.bf16.msra.mxu0 %v991
      %1300 = vmatpush.bf16.msra.mxu0 %v990
      %1301 = vmatpush.bf16.msra.mxu0 %v989
      %1302 = vmatpush.bf16.msra.mxu0 %v988
      %1303 = vmatmul.bf16.gmra.mxu0 %v711
      %v1304 = vpop.f32.mrf.mxu0
      %v1305 = vadd.f32 %v1216, %v1304
      %v1306 = vpop.f32.mrf.mxu0
      %v1307 = vadd.f32 %v1218, %v1306
      %1308 = vmatmul.bf16.gmra.mxu0 %v715
      %v1309 = vpop.f32.mrf.mxu0
      %v1310 = vadd.f32 %v1221, %v1309
      %v1311 = vpop.f32.mrf.mxu0
      %v1312 = vadd.f32 %v1223, %v1311
      %1313 = vmatmul.bf16.gmra.mxu0 %v719
      %v1314 = vpop.f32.mrf.mxu0
      %v1315 = vadd.f32 %v1226, %v1314
      %v1316 = vpop.f32.mrf.mxu0
      %v1317 = vadd.f32 %v1228, %v1316
      %1318 = vmatmul.bf16.gmra.mxu0 %v723
      %v1319 = vpop.f32.mrf.mxu0
      %v1320 = vadd.f32 %v1231, %v1319
      %v1321 = vpop.f32.mrf.mxu0
      %v1322 = vadd.f32 %v1233, %v1321
      %1323 = vmatmul.bf16.gmra.mxu0 %v727
      %v1324 = vpop.f32.mrf.mxu0
      %v1325 = vadd.f32 %v1236, %v1324
      %v1326 = vpop.f32.mrf.mxu0
      %v1327 = vadd.f32 %v1238, %v1326
      %1328 = vmatmul.bf16.gmra.mxu0 %v731
      %v1329 = vpop.f32.mrf.mxu0
      %v1330 = vadd.f32 %v1241, %v1329
      %v1331 = vpop.f32.mrf.mxu0
      %v1332 = vadd.f32 %v1243, %v1331
      %1333 = vmatmul.bf16.gmra.mxu0 %v735
      %v1334 = vpop.f32.mrf.mxu0
      %v1335 = vadd.f32 %v1246, %v1334
      %v1336 = vpop.f32.mrf.mxu0
      %v1337 = vadd.f32 %v1248, %v1336
      %1338 = vmatmul.bf16.gmra.mxu0 %v739
      %v1339 = vpop.f32.mrf.mxu0
      %v1340 = vadd.f32 %v1251, %v1339
      %v1341 = vpop.f32.mrf.mxu0
      %v1342 = vadd.f32 %v1253, %v1341
      %1343 = vmatmul.bf16.gmra.mxu0 %v743
      %v1344 = vpop.f32.mrf.mxu0
      %v1345 = vadd.f32 %v1256, %v1344
      %v1346 = vpop.f32.mrf.mxu0
      %v1347 = vadd.f32 %v1258, %v1346
      %1348 = vmatmul.bf16.gmra.mxu0 %v747
      %v1349 = vpop.f32.mrf.mxu0
      %v1350 = vadd.f32 %v1261, %v1349
      %v1351 = vpop.f32.mrf.mxu0
      %v1352 = vadd.f32 %v1263, %v1351
      %1353 = vmatmul.bf16.gmra.mxu0 %v751
      %v1354 = vpop.f32.mrf.mxu0
      %v1355 = vadd.f32 %v1266, %v1354
      %v1356 = vpop.f32.mrf.mxu0
      %v1357 = vadd.f32 %v1268, %v1356
      %1358 = vmatmul.bf16.gmra.mxu0 %v755
      %v1359 = vpop.f32.mrf.mxu0
      %v1360 = vadd.f32 %v1271, %v1359
      %v1361 = vpop.f32.mrf.mxu0
      %v1362 = vadd.f32 %v1273, %v1361
      %1363 = vmatmul.bf16.gmra.mxu0 %v759
      %v1364 = vpop.f32.mrf.mxu0
      %v1365 = vadd.f32 %v1276, %v1364
      %v1366 = vpop.f32.mrf.mxu0
      %v1367 = vadd.f32 %v1278, %v1366
      %1368 = vmatmul.bf16.gmra.mxu0 %v763
      %v1369 = vpop.f32.mrf.mxu0
      %v1370 = vadd.f32 %v1281, %v1369
      %v1371 = vpop.f32.mrf.mxu0
      %v1372 = vadd.f32 %v1283, %v1371
      %1373 = vmatmul.bf16.gmra.mxu0 %v767
      %v1374 = vpop.f32.mrf.mxu0
      %v1375 = vadd.f32 %v1286, %v1374
      %v1376 = vpop.f32.mrf.mxu0
      %v1377 = vadd.f32 %v1288, %v1376
      %1378 = vmatmul.bf16.gmra.mxu0 %v771
      %v1379 = vpop.f32.mrf.mxu0
      %v1380 = vadd.f32 %v1291, %v1379
      %v1381 = vpop.f32.mrf.mxu0
      %v1382 = vadd.f32 %v1293, %v1381
      %1383 = vdwg.mxu0
      %v1384 = vadd.f32 %v388, %v1305
      %v1385 = vadd.f32 %v389, %v1307
      %v1386 = vadd.f32 %v390, %v1310
      %v1387 = vadd.f32 %v391, %v1312
      %v1388 = vadd.f32 %v392, %v1315
      %v1389 = vadd.f32 %v393, %v1317
      %v1390 = vadd.f32 %v394, %v1320
      %v1391 = vadd.f32 %v395, %v1322
      %v1392 = vadd.f32 %v396, %v1325
      %v1393 = vadd.f32 %v397, %v1327
      %v1394 = vadd.f32 %v398, %v1330
      %v1395 = vadd.f32 %v399, %v1332
      %v1396 = vadd.f32 %v400, %v1335
      %v1397 = vadd.f32 %v401, %v1337
      %v1398 = vadd.f32 %v402, %v1340
      %v1399 = vadd.f32 %v403, %v1342
      %v1400 = vadd.f32 %v404, %v1345
      %v1401 = vadd.f32 %v405, %v1347
      %v1402 = vadd.f32 %v406, %v1350
      %v1403 = vadd.f32 %v407, %v1352
      %v1404 = vadd.f32 %v408, %v1355
      %v1405 = vadd.f32 %v409, %v1357
      %v1406 = vadd.f32 %v410, %v1360
      %v1407 = vadd.f32 %v411, %v1362
      %v1408 = vadd.f32 %v412, %v1365
      %v1409 = vadd.f32 %v413, %v1367
      %v1410 = vadd.f32 %v414, %v1370
      %v1411 = vadd.f32 %v415, %v1372
      %v1412 = vadd.f32 %v416, %v1375
      %v1413 = vadd.f32 %v417, %v1377
      %v1414 = vadd.f32 %v418, %v1380
      %v1415 = vadd.f32 %v419, %v1382
      %1416 = vst [vmem:[#allocation2] sm:$0xff] %v1384
      %1417 = vst [vmem:[#allocation2 + $0x8] sm:$0xff] %v1385
      %1418 = vst [vmem:[#allocation2 + $0x10] sm:$0xff] %v1386
      %1419 = vst [vmem:[#allocation2 + $0x18] sm:$0xff] %v1387
      %1420 = vst [vmem:[#allocation2 + $0x20] sm:$0xff] %v1388
      %1421 = vst [vmem:[#allocation2 + $0x28] sm:$0xff] %v1389
      %1422 = vst [vmem:[#allocation2 + $0x30] sm:$0xff] %v1390
      %1423 = vst [vmem:[#allocation2 + $0x38] sm:$0xff] %v1391
      %1424 = vst [vmem:[#allocation2 + $0x40] sm:$0xff] %v1392
      %1425 = vst [vmem:[#allocation2 + $0x48] sm:$0xff] %v1393
      %1426 = vst [vmem:[#allocation2 + $0x50] sm:$0xff] %v1394
      %1427 = vst [vmem:[#allocation2 + $0x58] sm:$0xff] %v1395
      %1428 = vst [vmem:[#allocation2 + $0x60] sm:$0xff] %v1396
      %1429 = vst [vmem:[#allocation2 + $0x68] sm:$0xff] %v1397
      %1430 = vst [vmem:[#allocation2 + $0x70] sm:$0xff] %v1398
      %1431 = vst [vmem:[#allocation2 + $0x78] sm:$0xff] %v1399
      %1432 = vst [vmem:[#allocation2 + $0x80] sm:$0xff] %v1400
      %1433 = vst [vmem:[#allocation2 + $0x88] sm:$0xff] %v1401
      %1434 = vst [vmem:[#allocation2 + $0x90] sm:$0xff] %v1402
      %1435 = vst [vmem:[#allocation2 + $0x98] sm:$0xff] %v1403
      %1436 = vst [vmem:[#allocation2 + $0xa0] sm:$0xff] %v1404
      %1437 = vst [vmem:[#allocation2 + $0xa8] sm:$0xff] %v1405
      %1438 = vst [vmem:[#allocation2 + $0xb0] sm:$0xff] %v1406
      %1439 = vst [vmem:[#allocation2 + $0xb8] sm:$0xff] %v1407
      %1440 = vst [vmem:[#allocation2 + $0xc0] sm:$0xff] %v1408
      %1441 = vst [vmem:[#allocation2 + $0xc8] sm:$0xff] %v1409
      %1442 = vst [vmem:[#allocation2 + $0xd0] sm:$0xff] %v1410
      %1443 = vst [vmem:[#allocation2 + $0xd8] sm:$0xff] %v1411
      %1444 = vst [vmem:[#allocation2 + $0xe0] sm:$0xff] %v1412
      %1445 = vst [vmem:[#allocation2 + $0xe8] sm:$0xff] %v1413
      %1446 = vst [vmem:[#allocation2 + $0xf0] sm:$0xff] %v1414
      %1447 = vst [vmem:[#allocation2 + $0xf8] sm:$0xff] %v1415
      // Predicated region
      $region49: #{gcn_node_classifier.2} parent=43 // pred_check
        %p1448 = pneg %p352
      $region50: #{gcn_node_classifier.2} parent=43 // pred_check_branch
        %1450 = sbr.rel (%p1448) target = $region52
      $region51: #{gcn_node_classifier.2} parent=43 // pred_region
        %v1451 = vld [vmem:[%s320] sm:$0xff]
        %v1452 = vld [vmem:[%s320 + $0x8] sm:$0xff]
        %v1453 = vld [vmem:[%s320 + $0x10] sm:$0xff]
        %v1454 = vld [vmem:[%s320 + $0x18] sm:$0xff]
        %v1455 = vld [vmem:[%s320 + $0x20] sm:$0xff]
        %v1456 = vld [vmem:[%s320 + $0x28] sm:$0xff]
        %v1457 = vld [vmem:[%s320 + $0x30] sm:$0xff]
        %v1458 = vld [vmem:[%s320 + $0x38] sm:$0xff]
        %v1459 = vld [vmem:[%s320 + $0x40] sm:$0xff]
        %v1460 = vld [vmem:[%s320 + $0x48] sm:$0xff]
        %v1461 = vld [vmem:[%s320 + $0x50] sm:$0xff]
        %v1462 = vld [vmem:[%s320 + $0x58] sm:$0xff]
        %v1463 = vld [vmem:[%s320 + $0x60] sm:$0xff]
        %v1464 = vld [vmem:[%s320 + $0x68] sm:$0xff]
        %v1465 = vld [vmem:[%s320 + $0x70] sm:$0xff]
        %v1466 = vld [vmem:[%s320 + $0x78] sm:$0xff]
        %v1467 = vld [vmem:[%s320 + $0x80] sm:$0xff]
        %v1468 = vld [vmem:[%s320 + $0x88] sm:$0xff]
        %v1469 = vld [vmem:[%s320 + $0x90] sm:$0xff]
        %v1470 = vld [vmem:[%s320 + $0x98] sm:$0xff]
        %v1471 = vld [vmem:[%s320 + $0xa0] sm:$0xff]
        %v1472 = vld [vmem:[%s320 + $0xa8] sm:$0xff]
        %v1473 = vld [vmem:[%s320 + $0xb0] sm:$0xff]
        %v1474 = vld [vmem:[%s320 + $0xb8] sm:$0xff]
        %v1475 = vld [vmem:[%s320 + $0xc0] sm:$0xff]
        %v1476 = vld [vmem:[%s320 + $0xc8] sm:$0xff]
        %v1477 = vld [vmem:[%s320 + $0xd0] sm:$0xff]
        %v1478 = vld [vmem:[%s320 + $0xd8] sm:$0xff]
        %v1479 = vld [vmem:[%s320 + $0xe0] sm:$0xff]
        %v1480 = vld [vmem:[%s320 + $0xe8] sm:$0xff]
        %v1481 = vld [vmem:[%s320 + $0xf0] sm:$0xff]
        %v1482 = vld [vmem:[%s320 + $0xf8] sm:$0xff]
        %v1483 = vld [vmem:[#allocation2] sm:$0xff]
        %v1484 = vld [vmem:[#allocation2 + $0x8] sm:$0xff]
        %v1485 = vld [vmem:[#allocation2 + $0x10] sm:$0xff]
        %v1486 = vld [vmem:[#allocation2 + $0x18] sm:$0xff]
        %v1487 = vld [vmem:[#allocation2 + $0x20] sm:$0xff]
        %v1488 = vld [vmem:[#allocation2 + $0x28] sm:$0xff]
        %v1489 = vld [vmem:[#allocation2 + $0x30] sm:$0xff]
        %v1490 = vld [vmem:[#allocation2 + $0x38] sm:$0xff]
        %v1491 = vld [vmem:[#allocation2 + $0x40] sm:$0xff]
        %v1492 = vld [vmem:[#allocation2 + $0x48] sm:$0xff]
        %v1493 = vld [vmem:[#allocation2 + $0x50] sm:$0xff]
        %v1494 = vld [vmem:[#allocation2 + $0x58] sm:$0xff]
        %v1495 = vld [vmem:[#allocation2 + $0x60] sm:$0xff]
        %v1496 = vld [vmem:[#allocation2 + $0x68] sm:$0xff]
        %v1497 = vld [vmem:[#allocation2 + $0x70] sm:$0xff]
        %v1498 = vld [vmem:[#allocation2 + $0x78] sm:$0xff]
        %v1499 = vld [vmem:[#allocation2 + $0x80] sm:$0xff]
        %v1500 = vld [vmem:[#allocation2 + $0x88] sm:$0xff]
        %v1501 = vld [vmem:[#allocation2 + $0x90] sm:$0xff]
        %v1502 = vld [vmem:[#allocation2 + $0x98] sm:$0xff]
        %v1503 = vld [vmem:[#allocation2 + $0xa0] sm:$0xff]
        %v1504 = vld [vmem:[#allocation2 + $0xa8] sm:$0xff]
        %v1505 = vld [vmem:[#allocation2 + $0xb0] sm:$0xff]
        %v1506 = vld [vmem:[#allocation2 + $0xb8] sm:$0xff]
        %v1507 = vld [vmem:[#allocation2 + $0xc0] sm:$0xff]
        %v1508 = vld [vmem:[#allocation2 + $0xc8] sm:$0xff]
        %v1509 = vld [vmem:[#allocation2 + $0xd0] sm:$0xff]
        %v1510 = vld [vmem:[#allocation2 + $0xd8] sm:$0xff]
        %v1511 = vld [vmem:[#allocation2 + $0xe0] sm:$0xff]
        %v1512 = vld [vmem:[#allocation2 + $0xe8] sm:$0xff]
        %v1513 = vld [vmem:[#allocation2 + $0xf0] sm:$0xff]
        %v1514 = vld [vmem:[#allocation2 + $0xf8] sm:$0xff]
        %1516 = vset.pattern.permute.xlu0 0
        %1517 = vperm.xlu0 %1516, %v1451
        %v1518 = vpop.permute.xlu0 %1517
        %1521 = vset.pattern.permute.xlu0 0
        %1522 = vperm.xlu0 %1521, %v1452
        %v1523 = vpop.permute.xlu0 %1522
        %1526 = vset.pattern.permute.xlu0 0
        %1527 = vperm.xlu0 %1526, %v1453
        %v1528 = vpop.permute.xlu0 %1527
        %1531 = vset.pattern.permute.xlu0 0
        %1532 = vperm.xlu0 %1531, %v1454
        %v1533 = vpop.permute.xlu0 %1532
        %1536 = vset.pattern.permute.xlu0 0
        %1537 = vperm.xlu0 %1536, %v1455
        %v1538 = vpop.permute.xlu0 %1537
        %1541 = vset.pattern.permute.xlu0 0
        %1542 = vperm.xlu0 %1541, %v1456
        %v1543 = vpop.permute.xlu0 %1542
        %1546 = vset.pattern.permute.xlu0 0
        %1547 = vperm.xlu0 %1546, %v1457
        %v1548 = vpop.permute.xlu0 %1547
        %1551 = vset.pattern.permute.xlu0 0
        %1552 = vperm.xlu0 %1551, %v1458
        %v1553 = vpop.permute.xlu0 %1552
        %1556 = vset.pattern.permute.xlu0 0
        %1557 = vperm.xlu0 %1556, %v1459
        %v1558 = vpop.permute.xlu0 %1557
        %1561 = vset.pattern.permute.xlu0 0
        %1562 = vperm.xlu0 %1561, %v1460
        %v1563 = vpop.permute.xlu0 %1562
        %1566 = vset.pattern.permute.xlu0 0
        %1567 = vperm.xlu0 %1566, %v1461
        %v1568 = vpop.permute.xlu0 %1567
        %1571 = vset.pattern.permute.xlu0 0
        %1572 = vperm.xlu0 %1571, %v1462
        %v1573 = vpop.permute.xlu0 %1572
        %1576 = vset.pattern.permute.xlu0 0
        %1577 = vperm.xlu0 %1576, %v1463
        %v1578 = vpop.permute.xlu0 %1577
        %1581 = vset.pattern.permute.xlu0 0
        %1582 = vperm.xlu0 %1581, %v1464
        %v1583 = vpop.permute.xlu0 %1582
        %1586 = vset.pattern.permute.xlu0 0
        %1587 = vperm.xlu0 %1586, %v1465
        %v1588 = vpop.permute.xlu0 %1587
        %1591 = vset.pattern.permute.xlu0 0
        %1592 = vperm.xlu0 %1591, %v1466
        %v1593 = vpop.permute.xlu0 %1592
        %1596 = vset.pattern.permute.xlu0 0
        %1597 = vperm.xlu0 %1596, %v1467
        %v1598 = vpop.permute.xlu0 %1597
        %1601 = vset.pattern.permute.xlu0 0
        %1602 = vperm.xlu0 %1601, %v1468
        %v1603 = vpop.permute.xlu0 %1602
        %1606 = vset.pattern.permute.xlu0 0
        %1607 = vperm.xlu0 %1606, %v1469
        %v1608 = vpop.permute.xlu0 %1607
        %1611 = vset.pattern.permute.xlu0 0
        %1612 = vperm.xlu0 %1611, %v1470
        %v1613 = vpop.permute.xlu0 %1612
        %1616 = vset.pattern.permute.xlu0 0
        %1617 = vperm.xlu0 %1616, %v1471
        %v1618 = vpop.permute.xlu0 %1617
        %1621 = vset.pattern.permute.xlu0 0
        %1622 = vperm.xlu0 %1621, %v1472
        %v1623 = vpop.permute.xlu0 %1622
        %1626 = vset.pattern.permute.xlu0 0
        %1627 = vperm.xlu0 %1626, %v1473
        %v1628 = vpop.permute.xlu0 %1627
        %1631 = vset.pattern.permute.xlu0 0
        %1632 = vperm.xlu0 %1631, %v1474
        %v1633 = vpop.permute.xlu0 %1632
        %1636 = vset.pattern.permute.xlu0 0
        %1637 = vperm.xlu0 %1636, %v1475
        %v1638 = vpop.permute.xlu0 %1637
        %1641 = vset.pattern.permute.xlu0 0
        %1642 = vperm.xlu0 %1641, %v1476
        %v1643 = vpop.permute.xlu0 %1642
        %1646 = vset.pattern.permute.xlu0 0
        %1647 = vperm.xlu0 %1646, %v1477
        %v1648 = vpop.permute.xlu0 %1647
        %1651 = vset.pattern.permute.xlu0 0
        %1652 = vperm.xlu0 %1651, %v1478
        %v1653 = vpop.permute.xlu0 %1652
        %1656 = vset.pattern.permute.xlu0 0
        %1657 = vperm.xlu0 %1656, %v1479
        %v1658 = vpop.permute.xlu0 %1657
        %1661 = vset.pattern.permute.xlu0 0
        %1662 = vperm.xlu0 %1661, %v1480
        %v1663 = vpop.permute.xlu0 %1662
        %1666 = vset.pattern.permute.xlu0 0
        %1667 = vperm.xlu0 %1666, %v1481
        %v1668 = vpop.permute.xlu0 %1667
        %1671 = vset.pattern.permute.xlu0 0
        %1672 = vperm.xlu0 %1671, %v1482
        %v1673 = vpop.permute.xlu0 %1672
        %v1675 = vmul.f32 %v1518, %v1483
        %v1676 = vmul.f32 %v1523, %v1484
        %v1677 = vmul.f32 %v1528, %v1485
        %v1678 = vmul.f32 %v1533, %v1486
        %v1679 = vmul.f32 %v1538, %v1487
        %v1680 = vmul.f32 %v1543, %v1488
        %v1681 = vmul.f32 %v1548, %v1489
        %v1682 = vmul.f32 %v1553, %v1490
        %v1683 = vmul.f32 %v1558, %v1491
        %v1684 = vmul.f32 %v1563, %v1492
        %v1685 = vmul.f32 %v1568, %v1493
        %v1686 = vmul.f32 %v1573, %v1494
        %v1687 = vmul.f32 %v1578, %v1495
        %v1688 = vmul.f32 %v1583, %v1496
        %v1689 = vmul.f32 %v1588, %v1497
        %v1690 = vmul.f32 %v1593, %v1498
        %v1691 = vmul.f32 %v1598, %v1499
        %v1692 = vmul.f32 %v1603, %v1500
        %v1693 = vmul.f32 %v1608, %v1501
        %v1694 = vmul.f32 %v1613, %v1502
        %v1695 = vmul.f32 %v1618, %v1503
        %v1696 = vmul.f32 %v1623, %v1504
        %v1697 = vmul.f32 %v1628, %v1505
        %v1698 = vmul.f32 %v1633, %v1506
        %v1699 = vmul.f32 %v1638, %v1507
        %v1700 = vmul.f32 %v1643, %v1508
        %v1701 = vmul.f32 %v1648, %v1509
        %v1702 = vmul.f32 %v1653, %v1510
        %v1703 = vmul.f32 %v1658, %v1511
        %v1704 = vmul.f32 %v1663, %v1512
        %v1705 = vmul.f32 %v1668, %v1513
        %v1706 = vmul.f32 %v1673, %v1514
        %v1707 = vld [vmem:[%s4] sm:$0x1]
        %v1709 = vperm.slane %v1707, 0
        %v1711 = vadd.f32 %v1675, %v1709
        %v1712 = vadd.f32 %v1676, %v1709
        %v1713 = vadd.f32 %v1677, %v1709
        %v1714 = vadd.f32 %v1678, %v1709
        %v1715 = vadd.f32 %v1679, %v1709
        %v1716 = vadd.f32 %v1680, %v1709
        %v1717 = vadd.f32 %v1681, %v1709
        %v1718 = vadd.f32 %v1682, %v1709
        %v1719 = vadd.f32 %v1683, %v1709
        %v1720 = vadd.f32 %v1684, %v1709
        %v1721 = vadd.f32 %v1685, %v1709
        %v1722 = vadd.f32 %v1686, %v1709
        %v1723 = vadd.f32 %v1687, %v1709
        %v1724 = vadd.f32 %v1688, %v1709
        %v1725 = vadd.f32 %v1689, %v1709
        %v1726 = vadd.f32 %v1690, %v1709
        %v1727 = vadd.f32 %v1691, %v1709
        %v1728 = vadd.f32 %v1692, %v1709
        %v1729 = vadd.f32 %v1693, %v1709
        %v1730 = vadd.f32 %v1694, %v1709
        %v1731 = vadd.f32 %v1695, %v1709
        %v1732 = vadd.f32 %v1696, %v1709
        %v1733 = vadd.f32 %v1697, %v1709
        %v1734 = vadd.f32 %v1698, %v1709
        %v1735 = vadd.f32 %v1699, %v1709
        %v1736 = vadd.f32 %v1700, %v1709
        %v1737 = vadd.f32 %v1701, %v1709
        %v1738 = vadd.f32 %v1702, %v1709
        %v1739 = vadd.f32 %v1703, %v1709
        %v1740 = vadd.f32 %v1704, %v1709
        %v1741 = vadd.f32 %v1705, %v1709
        %v1742 = vadd.f32 %v1706, %v1709
        %v1743 = vmax.f32 %v1711, 0.0
        %v1744 = vmax.f32 %v1712, 0.0
        %v1745 = vmax.f32 %v1713, 0.0
        %v1746 = vmax.f32 %v1714, 0.0
        %v1747 = vmax.f32 %v1715, 0.0
        %v1748 = vmax.f32 %v1716, 0.0
        %v1749 = vmax.f32 %v1717, 0.0
        %v1750 = vmax.f32 %v1718, 0.0
        %v1751 = vmax.f32 %v1719, 0.0
        %v1752 = vmax.f32 %v1720, 0.0
        %v1753 = vmax.f32 %v1721, 0.0
        %v1754 = vmax.f32 %v1722, 0.0
        %v1755 = vmax.f32 %v1723, 0.0
        %v1756 = vmax.f32 %v1724, 0.0
        %v1757 = vmax.f32 %v1725, 0.0
        %v1758 = vmax.f32 %v1726, 0.0
        %v1759 = vmax.f32 %v1727, 0.0
        %v1760 = vmax.f32 %v1728, 0.0
        %v1761 = vmax.f32 %v1729, 0.0
        %v1762 = vmax.f32 %v1730, 0.0
        %v1763 = vmax.f32 %v1731, 0.0
        %v1764 = vmax.f32 %v1732, 0.0
        %v1765 = vmax.f32 %v1733, 0.0
        %v1766 = vmax.f32 %v1734, 0.0
        %v1767 = vmax.f32 %v1735, 0.0
        %v1768 = vmax.f32 %v1736, 0.0
        %v1769 = vmax.f32 %v1737, 0.0
        %v1770 = vmax.f32 %v1738, 0.0
        %v1771 = vmax.f32 %v1739, 0.0
        %v1772 = vmax.f32 %v1740, 0.0
        %v1773 = vmax.f32 %v1741, 0.0
        %v1774 = vmax.f32 %v1742, 0.0
        %v1775 = vld [vmem:[%s326] sm:$0xff]
        %v1776 = vld [vmem:[%s326 + $0x8] sm:$0xff]
        %v1777 = vld [vmem:[%s326 + $0x10] sm:$0xff]
        %v1778 = vld [vmem:[%s326 + $0x18] sm:$0xff]
        %v1779 = vld [vmem:[%s326 + $0x20] sm:$0xff]
        %v1780 = vld [vmem:[%s326 + $0x28] sm:$0xff]
        %v1781 = vld [vmem:[%s326 + $0x30] sm:$0xff]
        %v1782 = vld [vmem:[%s326 + $0x38] sm:$0xff]
        %v1783 = vld [vmem:[%s326 + $0x40] sm:$0xff]
        %v1784 = vld [vmem:[%s326 + $0x48] sm:$0xff]
        %v1785 = vld [vmem:[%s326 + $0x50] sm:$0xff]
        %v1786 = vld [vmem:[%s326 + $0x58] sm:$0xff]
        %v1787 = vld [vmem:[%s326 + $0x60] sm:$0xff]
        %v1788 = vld [vmem:[%s326 + $0x68] sm:$0xff]
        %v1789 = vld [vmem:[%s326 + $0x70] sm:$0xff]
        %v1790 = vld [vmem:[%s326 + $0x78] sm:$0xff]
        %v1791 = vld [vmem:[%s326 + $0x80] sm:$0xff]
        %v1792 = vld [vmem:[%s326 + $0x88] sm:$0xff]
        %v1793 = vld [vmem:[%s326 + $0x90] sm:$0xff]
        %v1794 = vld [vmem:[%s326 + $0x98] sm:$0xff]
        %v1795 = vld [vmem:[%s326 + $0xa0] sm:$0xff]
        %v1796 = vld [vmem:[%s326 + $0xa8] sm:$0xff]
        %v1797 = vld [vmem:[%s326 + $0xb0] sm:$0xff]
        %v1798 = vld [vmem:[%s326 + $0xb8] sm:$0xff]
        %v1799 = vld [vmem:[%s326 + $0xc0] sm:$0xff]
        %v1800 = vld [vmem:[%s326 + $0xc8] sm:$0xff]
        %v1801 = vld [vmem:[%s326 + $0xd0] sm:$0xff]
        %v1802 = vld [vmem:[%s326 + $0xd8] sm:$0xff]
        %v1803 = vld [vmem:[%s326 + $0xe0] sm:$0xff]
        %v1804 = vld [vmem:[%s326 + $0xe8] sm:$0xff]
        %v1805 = vld [vmem:[%s326 + $0xf0] sm:$0xff]
        %v1806 = vld [vmem:[%s326 + $0xf8] sm:$0xff]
        %1808 = vset.pattern.permute.xlu0 0
        %1809 = vperm.xlu0 %1808, %v1775
        %v1810 = vpop.permute.xlu0 %1809
        %1813 = vset.pattern.permute.xlu0 0
        %1814 = vperm.xlu0 %1813, %v1776
        %v1815 = vpop.permute.xlu0 %1814
        %1818 = vset.pattern.permute.xlu0 0
        %1819 = vperm.xlu0 %1818, %v1777
        %v1820 = vpop.permute.xlu0 %1819
        %1823 = vset.pattern.permute.xlu0 0
        %1824 = vperm.xlu0 %1823, %v1778
        %v1825 = vpop.permute.xlu0 %1824
        %1828 = vset.pattern.permute.xlu0 0
        %1829 = vperm.xlu0 %1828, %v1779
        %v1830 = vpop.permute.xlu0 %1829
        %1833 = vset.pattern.permute.xlu0 0
        %1834 = vperm.xlu0 %1833, %v1780
        %v1835 = vpop.permute.xlu0 %1834
        %1838 = vset.pattern.permute.xlu0 0
        %1839 = vperm.xlu0 %1838, %v1781
        %v1840 = vpop.permute.xlu0 %1839
        %1843 = vset.pattern.permute.xlu0 0
        %1844 = vperm.xlu0 %1843, %v1782
        %v1845 = vpop.permute.xlu0 %1844
        %1848 = vset.pattern.permute.xlu0 0
        %1849 = vperm.xlu0 %1848, %v1783
        %v1850 = vpop.permute.xlu0 %1849
        %1853 = vset.pattern.permute.xlu0 0
        %1854 = vperm.xlu0 %1853, %v1784
        %v1855 = vpop.permute.xlu0 %1854
        %1858 = vset.pattern.permute.xlu0 0
        %1859 = vperm.xlu0 %1858, %v1785
        %v1860 = vpop.permute.xlu0 %1859
        %1863 = vset.pattern.permute.xlu0 0
        %1864 = vperm.xlu0 %1863, %v1786
        %v1865 = vpop.permute.xlu0 %1864
        %1868 = vset.pattern.permute.xlu0 0
        %1869 = vperm.xlu0 %1868, %v1787
        %v1870 = vpop.permute.xlu0 %1869
        %1873 = vset.pattern.permute.xlu0 0
        %1874 = vperm.xlu0 %1873, %v1788
        %v1875 = vpop.permute.xlu0 %1874
        %1878 = vset.pattern.permute.xlu0 0
        %1879 = vperm.xlu0 %1878, %v1789
        %v1880 = vpop.permute.xlu0 %1879
        %1883 = vset.pattern.permute.xlu0 0
        %1884 = vperm.xlu0 %1883, %v1790
        %v1885 = vpop.permute.xlu0 %1884
        %1888 = vset.pattern.permute.xlu0 0
        %1889 = vperm.xlu0 %1888, %v1791
        %v1890 = vpop.permute.xlu0 %1889
        %1893 = vset.pattern.permute.xlu0 0
        %1894 = vperm.xlu0 %1893, %v1792
        %v1895 = vpop.permute.xlu0 %1894
        %1898 = vset.pattern.permute.xlu0 0
        %1899 = vperm.xlu0 %1898, %v1793
        %v1900 = vpop.permute.xlu0 %1899
        %1903 = vset.pattern.permute.xlu0 0
        %1904 = vperm.xlu0 %1903, %v1794
        %v1905 = vpop.permute.xlu0 %1904
        %1908 = vset.pattern.permute.xlu0 0
        %1909 = vperm.xlu0 %1908, %v1795
        %v1910 = vpop.permute.xlu0 %1909
        %1913 = vset.pattern.permute.xlu0 0
        %1914 = vperm.xlu0 %1913, %v1796
        %v1915 = vpop.permute.xlu0 %1914
        %1918 = vset.pattern.permute.xlu0 0
        %1919 = vperm.xlu0 %1918, %v1797
        %v1920 = vpop.permute.xlu0 %1919
        %1923 = vset.pattern.permute.xlu0 0
        %1924 = vperm.xlu0 %1923, %v1798
        %v1925 = vpop.permute.xlu0 %1924
        %1928 = vset.pattern.permute.xlu0 0
        %1929 = vperm.xlu0 %1928, %v1799
        %v1930 = vpop.permute.xlu0 %1929
        %1933 = vset.pattern.permute.xlu0 0
        %1934 = vperm.xlu0 %1933, %v1800
        %v1935 = vpop.permute.xlu0 %1934
        %1938 = vset.pattern.permute.xlu0 0
        %1939 = vperm.xlu0 %1938, %v1801
        %v1940 = vpop.permute.xlu0 %1939
        %1943 = vset.pattern.permute.xlu0 0
        %1944 = vperm.xlu0 %1943, %v1802
        %v1945 = vpop.permute.xlu0 %1944
        %1948 = vset.pattern.permute.xlu0 0
        %1949 = vperm.xlu0 %1948, %v1803
        %v1950 = vpop.permute.xlu0 %1949
        %1953 = vset.pattern.permute.xlu0 0
        %1954 = vperm.xlu0 %1953, %v1804
        %v1955 = vpop.permute.xlu0 %1954
        %1958 = vset.pattern.permute.xlu0 0
        %1959 = vperm.xlu0 %1958, %v1805
        %v1960 = vpop.permute.xlu0 %1959
        %1963 = vset.pattern.permute.xlu0 0
        %1964 = vperm.xlu0 %1963, %v1806
        %v1965 = vpop.permute.xlu0 %1964
        %v1967 = vmul.f32 %v1810, %v1743
        %v1968 = vmul.f32 %v1815, %v1744
        %v1969 = vmul.f32 %v1820, %v1745
        %v1970 = vmul.f32 %v1825, %v1746
        %v1971 = vmul.f32 %v1830, %v1747
        %v1972 = vmul.f32 %v1835, %v1748
        %v1973 = vmul.f32 %v1840, %v1749
        %v1974 = vmul.f32 %v1845, %v1750
        %v1975 = vmul.f32 %v1850, %v1751
        %v1976 = vmul.f32 %v1855, %v1752
        %v1977 = vmul.f32 %v1860, %v1753
        %v1978 = vmul.f32 %v1865, %v1754
        %v1979 = vmul.f32 %v1870, %v1755
        %v1980 = vmul.f32 %v1875, %v1756
        %v1981 = vmul.f32 %v1880, %v1757
        %v1982 = vmul.f32 %v1885, %v1758
        %v1983 = vmul.f32 %v1890, %v1759
        %v1984 = vmul.f32 %v1895, %v1760
        %v1985 = vmul.f32 %v1900, %v1761
        %v1986 = vmul.f32 %v1905, %v1762
        %v1987 = vmul.f32 %v1910, %v1763
        %v1988 = vmul.f32 %v1915, %v1764
        %v1989 = vmul.f32 %v1920, %v1765
        %v1990 = vmul.f32 %v1925, %v1766
        %v1991 = vmul.f32 %v1930, %v1767
        %v1992 = vmul.f32 %v1935, %v1768
        %v1993 = vmul.f32 %v1940, %v1769
        %v1994 = vmul.f32 %v1945, %v1770
        %v1995 = vmul.f32 %v1950, %v1771
        %v1996 = vmul.f32 %v1955, %v1772
        %v1997 = vmul.f32 %v1960, %v1773
        %v1998 = vmul.f32 %v1965, %v1774
        %v1999 = vpack.c.bf16 %v1968, %v1967
        %v2000 = vpack.c.bf16 %v1970, %v1969
        %v2001 = vpack.c.bf16 %v1972, %v1971
        %v2002 = vpack.c.bf16 %v1974, %v1973
        %v2003 = vpack.c.bf16 %v1976, %v1975
        %v2004 = vpack.c.bf16 %v1978, %v1977
        %v2005 = vpack.c.bf16 %v1980, %v1979
        %v2006 = vpack.c.bf16 %v1982, %v1981
        %v2007 = vpack.c.bf16 %v1984, %v1983
        %v2008 = vpack.c.bf16 %v1986, %v1985
        %v2009 = vpack.c.bf16 %v1988, %v1987
        %v2010 = vpack.c.bf16 %v1990, %v1989
        %v2011 = vpack.c.bf16 %v1992, %v1991
        %v2012 = vpack.c.bf16 %v1994, %v1993
        %v2013 = vpack.c.bf16 %v1996, %v1995
        %v2014 = vpack.c.bf16 %v1998, %v1997
        %v2015 = vld [vmem:[%s5] sm:$0xf]
        %v2016 = vld [vmem:[%s5 + $0x4] sm:$0xf]
        %v2017 = vld [vmem:[%s5 + $0x8] sm:$0xf]
        %v2018 = vld [vmem:[%s5 + $0xc] sm:$0xf]
        %v2019 = vld [vmem:[%s5 + $0x10] sm:$0xf]
        %v2020 = vld [vmem:[%s5 + $0x14] sm:$0xf]
        %v2021 = vld [vmem:[%s5 + $0x18] sm:$0xf]
        %v2022 = vld [vmem:[%s5 + $0x1c] sm:$0xf]
        %v2023 = vld [vmem:[%s5 + $0x20] sm:$0xf]
        %v2024 = vld [vmem:[%s5 + $0x24] sm:$0xf]
        %v2025 = vld [vmem:[%s5 + $0x28] sm:$0xf]
        %v2026 = vld [vmem:[%s5 + $0x2c] sm:$0xf]
        %v2027 = vld [vmem:[%s5 + $0x30] sm:$0xf]
        %v2028 = vld [vmem:[%s5 + $0x34] sm:$0xf]
        %v2029 = vld [vmem:[%s5 + $0x38] sm:$0xf]
        %v2030 = vld [vmem:[%s5 + $0x3c] sm:$0xf]
        %v2047 = vunpack.c.l.b16 %v2015
        %v2048 = vunpack.c.l.b16 %v2016
        %v2049 = vunpack.c.l.b16 %v2017
        %v2050 = vunpack.c.l.b16 %v2018
        %v2051 = vunpack.c.l.b16 %v2019
        %v2052 = vunpack.c.l.b16 %v2020
        %v2053 = vunpack.c.l.b16 %v2021
        %v2054 = vunpack.c.l.b16 %v2022
        %v2055 = vunpack.c.l.b16 %v2023
        %v2056 = vunpack.c.l.b16 %v2024
        %v2057 = vunpack.c.l.b16 %v2025
        %v2058 = vunpack.c.l.b16 %v2026
        %v2059 = vunpack.c.l.b16 %v2027
        %v2060 = vunpack.c.l.b16 %v2028
        %v2061 = vunpack.c.l.b16 %v2029
        %v2062 = vunpack.c.l.b16 %v2030
        %v2063 = vpack.c.b16 %v2048, %v2047
        %v2064 = vpack.c.b16 %v2050, %v2049
        %v2065 = vpack.c.b16 %v2052, %v2051
        %v2066 = vpack.c.b16 %v2054, %v2053
        %v2067 = vpack.c.b16 %v2056, %v2055
        %v2068 = vpack.c.b16 %v2058, %v2057
        %v2069 = vpack.c.b16 %v2060, %v2059
        %v2070 = vpack.c.b16 %v2062, %v2061
        %2079 = vmatpush.bf16.msra.mxu0 %v2070
        %2080 = vmatpush.bf16.msra.mxu0 %v2069
        %2081 = vmatpush.bf16.msra.mxu0 %v2068
        %2082 = vmatpush.bf16.msra.mxu0 %v2067
        %2083 = vmatpush.bf16.msra.mxu0 %v2066
        %2084 = vmatpush.bf16.msra.mxu0 %v2065
        %2085 = vmatpush.bf16.msra.mxu0 %v2064
        %2086 = vmatpush.bf16.msra.mxu0 %v2063
        %2087 = vmatmul.bf16.gmra.mxu0 %v1999
        %v2088 = vpop.f32.mrf.mxu0
        %v2089 = vadd.f32 0.0, %v2088
        %v2090 = vpop.f32.mrf.mxu0
        %v2091 = vadd.f32 0.0, %v2090
        %2092 = vmatmul.bf16.gmra.mxu0 %v2000
        %v2093 = vpop.f32.mrf.mxu0
        %v2094 = vadd.f32 0.0, %v2093
        %v2095 = vpop.f32.mrf.mxu0
        %v2096 = vadd.f32 0.0, %v2095
        %2097 = vmatmul.bf16.gmra.mxu0 %v2001
        %v2098 = vpop.f32.mrf.mxu0
        %v2099 = vadd.f32 0.0, %v2098
        %v2100 = vpop.f32.mrf.mxu0
        %v2101 = vadd.f32 0.0, %v2100
        %2102 = vmatmul.bf16.gmra.mxu0 %v2002
        %v2103 = vpop.f32.mrf.mxu0
        %v2104 = vadd.f32 0.0, %v2103
        %v2105 = vpop.f32.mrf.mxu0
        %v2106 = vadd.f32 0.0, %v2105
        %2107 = vmatmul.bf16.gmra.mxu0 %v2003
        %v2108 = vpop.f32.mrf.mxu0
        %v2109 = vadd.f32 0.0, %v2108
        %v2110 = vpop.f32.mrf.mxu0
        %v2111 = vadd.f32 0.0, %v2110
        %2112 = vmatmul.bf16.gmra.mxu0 %v2004
        %v2113 = vpop.f32.mrf.mxu0
        %v2114 = vadd.f32 0.0, %v2113
        %v2115 = vpop.f32.mrf.mxu0
        %v2116 = vadd.f32 0.0, %v2115
        %2117 = vmatmul.bf16.gmra.mxu0 %v2005
        %v2118 = vpop.f32.mrf.mxu0
        %v2119 = vadd.f32 0.0, %v2118
        %v2120 = vpop.f32.mrf.mxu0
        %v2121 = vadd.f32 0.0, %v2120
        %2122 = vmatmul.bf16.gmra.mxu0 %v2006
        %v2123 = vpop.f32.mrf.mxu0
        %v2124 = vadd.f32 0.0, %v2123
        %v2125 = vpop.f32.mrf.mxu0
        %v2126 = vadd.f32 0.0, %v2125
        %2127 = vmatmul.bf16.gmra.mxu0 %v2007
        %v2128 = vpop.f32.mrf.mxu0
        %v2129 = vadd.f32 0.0, %v2128
        %v2130 = vpop.f32.mrf.mxu0
        %v2131 = vadd.f32 0.0, %v2130
        %2132 = vmatmul.bf16.gmra.mxu0 %v2008
        %v2133 = vpop.f32.mrf.mxu0
        %v2134 = vadd.f32 0.0, %v2133
        %v2135 = vpop.f32.mrf.mxu0
        %v2136 = vadd.f32 0.0, %v2135
        %2137 = vmatmul.bf16.gmra.mxu0 %v2009
        %v2138 = vpop.f32.mrf.mxu0
        %v2139 = vadd.f32 0.0, %v2138
        %v2140 = vpop.f32.mrf.mxu0
        %v2141 = vadd.f32 0.0, %v2140
        %2142 = vmatmul.bf16.gmra.mxu0 %v2010
        %v2143 = vpop.f32.mrf.mxu0
        %v2144 = vadd.f32 0.0, %v2143
        %v2145 = vpop.f32.mrf.mxu0
        %v2146 = vadd.f32 0.0, %v2145
        %2147 = vmatmul.bf16.gmra.mxu0 %v2011
        %v2148 = vpop.f32.mrf.mxu0
        %v2149 = vadd.f32 0.0, %v2148
        %v2150 = vpop.f32.mrf.mxu0
        %v2151 = vadd.f32 0.0, %v2150
        %2152 = vmatmul.bf16.gmra.mxu0 %v2012
        %v2153 = vpop.f32.mrf.mxu0
        %v2154 = vadd.f32 0.0, %v2153
        %v2155 = vpop.f32.mrf.mxu0
        %v2156 = vadd.f32 0.0, %v2155
        %2157 = vmatmul.bf16.gmra.mxu0 %v2013
        %v2158 = vpop.f32.mrf.mxu0
        %v2159 = vadd.f32 0.0, %v2158
        %v2160 = vpop.f32.mrf.mxu0
        %v2161 = vadd.f32 0.0, %v2160
        %2162 = vmatmul.bf16.gmra.mxu0 %v2014
        %v2163 = vpop.f32.mrf.mxu0
        %v2164 = vadd.f32 0.0, %v2163
        %v2165 = vpop.f32.mrf.mxu0
        %v2166 = vadd.f32 0.0, %v2165
        %2167 = vdwg.mxu0
        %v2168 = vpack.c.bf16 %v2089, %v2089
        %v2169 = vpack.c.bf16 %v2091, %v2091
        %v2170 = vpack.c.bf16 %v2094, %v2094
        %v2171 = vpack.c.bf16 %v2096, %v2096
        %v2172 = vpack.c.bf16 %v2099, %v2099
        %v2173 = vpack.c.bf16 %v2101, %v2101
        %v2174 = vpack.c.bf16 %v2104, %v2104
        %v2175 = vpack.c.bf16 %v2106, %v2106
        %v2176 = vpack.c.bf16 %v2109, %v2109
        %v2177 = vpack.c.bf16 %v2111, %v2111
        %v2178 = vpack.c.bf16 %v2114, %v2114
        %v2179 = vpack.c.bf16 %v2116, %v2116
        %v2180 = vpack.c.bf16 %v2119, %v2119
        %v2181 = vpack.c.bf16 %v2121, %v2121
        %v2182 = vpack.c.bf16 %v2124, %v2124
        %v2183 = vpack.c.bf16 %v2126, %v2126
        %v2184 = vpack.c.bf16 %v2129, %v2129
        %v2185 = vpack.c.bf16 %v2131, %v2131
        %v2186 = vpack.c.bf16 %v2134, %v2134
        %v2187 = vpack.c.bf16 %v2136, %v2136
        %v2188 = vpack.c.bf16 %v2139, %v2139
        %v2189 = vpack.c.bf16 %v2141, %v2141
        %v2190 = vpack.c.bf16 %v2144, %v2144
        %v2191 = vpack.c.bf16 %v2146, %v2146
        %v2192 = vpack.c.bf16 %v2149, %v2149
        %v2193 = vpack.c.bf16 %v2151, %v2151
        %v2194 = vpack.c.bf16 %v2154, %v2154
        %v2195 = vpack.c.bf16 %v2156, %v2156
        %v2196 = vpack.c.bf16 %v2159, %v2159
        %v2197 = vpack.c.bf16 %v2161, %v2161
        %v2198 = vpack.c.bf16 %v2164, %v2164
        %v2199 = vpack.c.bf16 %v2166, %v2166
        %2200 = vst [vmem:[%s350] sm:$0xf] %v2168
        %2201 = vst [vmem:[%s350 + $0x4] sm:$0xf] %v2169
        %2202 = vst [vmem:[%s350 + $0x8] sm:$0xf] %v2170
        %2203 = vst [vmem:[%s350 + $0xc] sm:$0xf] %v2171
        %2204 = vst [vmem:[%s350 + $0x10] sm:$0xf] %v2172
        %2205 = vst [vmem:[%s350 + $0x14] sm:$0xf] %v2173
        %2206 = vst [vmem:[%s350 + $0x18] sm:$0xf] %v2174
        %2207 = vst [vmem:[%s350 + $0x1c] sm:$0xf] %v2175
        %2208 = vst [vmem:[%s350 + $0x20] sm:$0xf] %v2176
        %2209 = vst [vmem:[%s350 + $0x24] sm:$0xf] %v2177
        %2210 = vst [vmem:[%s350 + $0x28] sm:$0xf] %v2178
        %2211 = vst [vmem:[%s350 + $0x2c] sm:$0xf] %v2179
        %2212 = vst [vmem:[%s350 + $0x30] sm:$0xf] %v2180
        %2213 = vst [vmem:[%s350 + $0x34] sm:$0xf] %v2181
        %2214 = vst [vmem:[%s350 + $0x38] sm:$0xf] %v2182
        %2215 = vst [vmem:[%s350 + $0x3c] sm:$0xf] %v2183
        %2216 = vst [vmem:[%s350 + $0x40] sm:$0xf] %v2184
        %2217 = vst [vmem:[%s350 + $0x44] sm:$0xf] %v2185
        %2218 = vst [vmem:[%s350 + $0x48] sm:$0xf] %v2186
        %2219 = vst [vmem:[%s350 + $0x4c] sm:$0xf] %v2187
        %2220 = vst [vmem:[%s350 + $0x50] sm:$0xf] %v2188
        %2221 = vst [vmem:[%s350 + $0x54] sm:$0xf] %v2189
        %2222 = vst [vmem:[%s350 + $0x58] sm:$0xf] %v2190
        %2223 = vst [vmem:[%s350 + $0x5c] sm:$0xf] %v2191
        %2224 = vst [vmem:[%s350 + $0x60] sm:$0xf] %v2192
        %2225 = vst [vmem:[%s350 + $0x64] sm:$0xf] %v2193
        %2226 = vst [vmem:[%s350 + $0x68] sm:$0xf] %v2194
        %2227 = vst [vmem:[%s350 + $0x6c] sm:$0xf] %v2195
        %2228 = vst [vmem:[%s350 + $0x70] sm:$0xf] %v2196
        %2229 = vst [vmem:[%s350 + $0x74] sm:$0xf] %v2197
        %2230 = vst [vmem:[%s350 + $0x78] sm:$0xf] %v2198
        %2231 = vst [vmem:[%s350 + $0x7c] sm:$0xf] %v2199
      $region52: #{gcn_node_classifier.2} parent=43 // pred_fallthru
        _
      %s2232 = smul.u32 32, %s21
      %p2233 = scmp.lt.s32.totalorder %s2232, 63
      %s2234 = scalar_select %p2233, %s2232, 63
      %s2235 = smul.addr %s2234, 4
      %s2236 = scalar_lea.vmem %s6, %s2235
      // Predicated region
      $region53: #{gcn_node_classifier.2} parent=43 // pred_check
        %p2237 = pneg %p195
      $region54: #{gcn_node_classifier.2} parent=43 // pred_check_branch
        %2239 = sbr.rel (%p2237) target = $region56
      $region55: #{gcn_node_classifier.2} parent=43 // pred_region
        %s2240 = smul.u32 32, %s21
      $region56: #{gcn_node_classifier.2} parent=43 // pred_fallthru
        _
    $region44: #{gcn_node_classifier.2} parent=5 // pred_fallthru
      _
    %p2241 = scmp.le.s32.totalorder 2, %s12
    // Predicated region
    $region57: #{gcn_node_classifier.2} parent=5 // pred_check
      %p2242 = pneg %p2241
    $region58: #{gcn_node_classifier.2} parent=5 // pred_check_branch
      %2244 = sbr.rel (%p2242) target = $region60
    $region59: #{gcn_node_classifier.2} parent=5 // pred_region
      %s2245 = ssub.s32 %s12, 2
      // Predicated region
      $region61: #{gcn_node_classifier.2} parent=59 // pred_check
        %p2246 = pneg %p201
      $region62: #{gcn_node_classifier.2} parent=59 // pred_check_branch
        %2248 = sbr.rel (%p2246) target = $region64
      $region63: #{gcn_node_classifier.2} parent=59 // pred_region
        %s2249 = smul.u32 32, %s23
        %p2250 = scmp.lt.s32.totalorder %s2249, 63
        %s2251 = scalar_select %p2250, %s2249, 63
        %s2252 = smul.addr %s2251, 4
        %s2253 = scalar_lea.vmem %s6, %s2252
      $region64: #{gcn_node_classifier.2} parent=59 // pred_fallthru
        _
    $region60: #{gcn_node_classifier.2} parent=5 // pred_fallthru
      _
  $region6: #{gcn_node_classifier.2} parent=0 // loop_footer
    %s16 = sadd.s32 1, %s12
  $region7: #{gcn_node_classifier.2} parent=0 // loop_footer_branch
    %11 = sbr.rel target = $region3
  $region8: #{gcn_node_classifier.2} parent=0 // loop_exit
    _

</llo_original>
